<compile_context>
chip_gen: v5e
topology: v5e:2x2
jax: 0.10.0
libtpu: 0.0.40
codegen_flags: <defaults>
</compile_context>

<pallas_src>
import functools
import numpy as np

import jax
import jax.numpy as jnp
from jax.experimental import pallas as pl
from jax.experimental.pallas import tpu as pltpu

LN_EPS = 1e-5
INV_SQRT2 = np.float32(1.0 / np.sqrt(2.0))

# MXU operand dtype.  bf16 is the native MXU rate on every TPU generation;
# accumulation stays f32 (preferred_element_type).  Numerics differ from the
# f32 PyTorch reference at the ~1e-2 level -> tolerance below reflects that.
MXU_DTYPE = jnp.bfloat16


# ----------------------------------------------------------------------------
# window partition / reverse (pure reshapes, plain JAX glue)
# ----------------------------------------------------------------------------
def window_partition(x, window_size):
    B, H, W, C = x.shape
    x = x.reshape(B, H // window_size, window_size, W // window_size, window_size, C)
    return jnp.transpose(x, (0, 1, 3, 2, 4, 5)).reshape(-1, window_size, window_size, C)


def window_reverse(windows, window_size, H, W):
    B = windows.shape[0] // (H * W // window_size // window_size)
    x = windows.reshape(B, H // window_size, W // window_size, window_size, window_size, -1)
    return jnp.transpose(x, (0, 1, 3, 2, 4, 5)).reshape(B, H, W, -1)


# ----------------------------------------------------------------------------
# small tiling helpers
# ----------------------------------------------------------------------------
def _row_tile(R, target=512):
    """Row tile dividing R, multiple of 8 if possible, >=2 tiles when R allows."""
    cap = min(target, R)
    if R >= 16:
        cap = min(cap, R // 2)          # give megacore / pipelining >= 2 steps
    best = None
    for t in range(cap, 0, -1):
        if R % t == 0:
            if t % 8 == 0:
                return t
            if best is None:
                best = t
    return best or R


def _col_tile(Hd, target=512):
    """Hidden-dim tile dividing Hd, preferring multiples of 128."""
    if Hd <= target:
        return Hd
    for t in range(target, 0, -1):
        if Hd % t == 0 and t % 128 == 0:
            return t
    for t in range(target, 0, -1):
        if Hd % t == 0:
            return t
    return Hd


def _choose_window_tile(B_, nW, need_mask, cap=16):
    cap = max(1, min(cap, B_))
    if B_ >= 2:
        cap = min(cap, max(1, B_ // 2))  # >= 2 grid steps for megacore/pipeline
    for t in range(cap, 0, -1):
        if B_ % t == 0 and (not need_mask or nW % t == 0):
            return t
    return 1


def _vmem_limit(blocks, margin=4 << 20, cap=64 << 20):
    """Rough scoped-VMEM requirement from block (shape, dtype) pairs."""
    total = 0
    for shape, dtype in blocks:
        total += int(np.prod(shape)) * np.dtype(dtype).itemsize
    need = 2 * total + margin            # double-buffering + compiler scratch
    return int(min(cap, max(need, 16 << 20)))


# ----------------------------------------------------------------------------
# Standalone LayerNorm kernel (only used when the feature map must be padded
# before windowing; in the common unpadded case norm1 is fused into the
# attention kernel).
# ----------------------------------------------------------------------------
def _ln_kernel(x_ref, g_ref, b_ref, o_ref):
    x = x_ref[...].astype(jnp.float32)
    mu = jnp.mean(x, axis=-1, keepdims=True)
    var = jnp.mean(jnp.square(x - mu), axis=-1, keepdims=True)
    y = (x - mu) * jax.lax.rsqrt(var + LN_EPS)
    o_ref[...] = (y * g_ref[...] + b_ref[...]).astype(o_ref.dtype)


def layer_norm(x2d, gamma, beta, *, tile=512):
    R, C = x2d.shape
    t = _row_tile(R, tile)
    blocks = [((t, C), jnp.float32), ((1, C), jnp.float32), ((1, C), jnp.float32),
              ((t, C), jnp.float32)]
    return pl.pallas_call(
        _ln_kernel,
        out_shape=jax.ShapeDtypeStruct((R, C), x2d.dtype),
        grid=(R // t,),
        in_specs=[
            pl.BlockSpec((t, C), lambda i: (i, 0)),
            pl.BlockSpec((1, C), lambda i: (0, 0)),
            pl.BlockSpec((1, C), lambda i: (0, 0)),
        ],
        out_specs=pl.BlockSpec((t, C), lambda i: (i, 0)),
        compiler_params=pltpu.CompilerParams(
            dimension_semantics=("parallel",),
            vmem_limit_bytes=_vmem_limit(blocks)),
    )(x2d, gamma.reshape(1, C), beta.reshape(1, C))


# ----------------------------------------------------------------------------
# Fused window-attention kernel:
#   [norm1] -> QKV (one full-width matmul) -> per-head scores + bias(+mask)
#   -> softmax -> attn@V -> head repack -> output projection (one matmul)
# processed for WT windows per grid step.
# ----------------------------------------------------------------------------
def _window_attn_kernel(x_ref, wqkv_ref, bqkv_ref, wproj_ref, bproj_ref, bias_ref,
                        *rest, num_heads, head_dim, fuse_ln, has_mask):
    o_ref = rest[-1]
    pos = 0
    mask_ref = None
    if has_mask:
        mask_ref = rest[pos]
        pos += 1
    if fuse_ln:
        g_ref, b_ref = rest[pos], rest[pos + 1]

    WT, N, C = x_ref.shape
    nh, hd = num_heads, head_dim
    T = WT * N

    x = x_ref[...].astype(jnp.float32)                               # (WT, N, C)
    if fuse_ln:                                                      # norm1 prologue
        mu = jnp.mean(x, axis=-1, keepdims=True)
        var = jnp.mean(jnp.square(x - mu), axis=-1, keepdims=True)
        x = (x - mu) * jax.lax.rsqrt(var + LN_EPS)
        x = x * g_ref[...] + b_ref[...]

    # One full-width QKV projection (qk scale folded into the Q weights/bias).
    qkv = jnp.dot(x.reshape(T, C).astype(MXU_DTYPE), wqkv_ref[...],
                  preferred_element_type=jnp.float32) + bqkv_ref[...]   # (T, 3C) f32

    bias = bias_ref[...].astype(jnp.float32)                            # (nh, N, N)
    if has_mask:
        mask = mask_ref[...].astype(jnp.float32)                         # (WT, N, N)

    # Per-head loop: bounds the live score / probability tensors to one head's
    # worth while the MXU sees the same total FLOPs.
    head_out = []
    for h in range(nh):
        q = qkv[:, h * hd:(h + 1) * hd].reshape(WT, N, hd)
        k = qkv[:, C + h * hd:C + (h + 1) * hd].reshape(WT, N, hd)
        v = qkv[:, 2 * C + h * hd:2 * C + (h + 1) * hd].reshape(WT, N, hd)
        s = jnp.einsum("bqd,bkd->bqk", q.astype(MXU_DTYPE), k.astype(MXU_DTYPE),
                       preferred_element_type=jnp.float32)               # (WT, N, N)
        s = s + bias[h][None]
        if has_mask:
            s = s + mask
        s = s - jnp.max(s, axis=-1, keepdims=True)
        p = jnp.exp(s)
        p = p * pl.reciprocal(jnp.sum(p, axis=-1, keepdims=True), approx=True)
        o = jnp.einsum("bqk,bkd->bqd", p.astype(MXU_DTYPE), v.astype(MXU_DTYPE),
                       preferred_element_type=jnp.float32)               # (WT, N, hd)
        head_out.append(o.reshape(T, hd))

    # Repack heads along the lane dim -> single full-K output projection.
    attn_out = jnp.concatenate(head_out, axis=-1)                        # (T, C)
    y = jnp.dot(attn_out.astype(MXU_DTYPE), wproj_ref[...],
                preferred_element_type=jnp.float32) + bproj_ref[...]     # (T, C)
    o_ref[...] = y.reshape(WT, N, C).astype(o_ref.dtype)


def window_attention(x_windows, prep, *, mask, num_heads, fuse_ln, window_tile=16):
    B_, N, C = x_windows.shape
    nh = num_heads
    hd = C // nh
    need_mask = mask is not None
    nW = mask.shape[0] if need_mask else 1
    wt = _choose_window_tile(B_, nW, need_mask, cap=window_tile)

    in_specs = [
        pl.BlockSpec((wt, N, C), lambda i: (i, 0, 0)),
        pl.BlockSpec((C, 3 * C), lambda i: (0, 0)),
        pl.BlockSpec((1, 3 * C), lambda i: (0, 0)),
        pl.BlockSpec((C, C), lambda i: (0, 0)),
        pl.BlockSpec((1, C), lambda i: (0, 0)),
        pl.BlockSpec((nh, N, N), lambda i: (0, 0, 0)),
    ]
    args = [x_windows, prep["wqkv"], prep["bqkv"], prep["wproj"], prep["bproj"],
            prep["rel_bias"]]
    blocks = [((wt, N, C), x_windows.dtype),
              ((C, 3 * C), prep["wqkv"].dtype),
              ((1, 3 * C), jnp.float32),
              ((C, C), prep["wproj"].dtype),
              ((1, C), jnp.float32),
              ((nh, N, N), jnp.float32)]

    if need_mask:
        m = nW // wt
        in_specs.append(pl.BlockSpec((wt, N, N), lambda i, m=m: (i % m, 0, 0)))
        args.append(mask.astype(jnp.float32))
        blocks.append(((wt, N, N), jnp.float32))
    if fuse_ln:
        in_specs += [pl.BlockSpec((1, C), lambda i: (0, 0)),
                     pl.BlockSpec((1, C), lambda i: (0, 0))]
        args += [prep["norm1_g"], prep["norm1_b"]]
        blocks += [((1, C), jnp.float32), ((1, C), jnp.float32)]
    blocks.append(((wt, N, C), x_windows.dtype))     # output block

    kernel = functools.partial(_window_attn_kernel, num_heads=nh, head_dim=hd,
                               fuse_ln=fuse_ln, has_mask=need_mask)
    return pl.pallas_call(
        kernel,
        out_shape=jax.ShapeDtypeStruct((B_, N, C), x_windows.dtype),
        grid=(B_ // wt,),
        in_specs=in_specs,
        out_specs=pl.BlockSpec((wt, N, C), lambda i: (i, 0, 0)),
        compiler_params=pltpu.CompilerParams(
            dimension_semantics=("parallel",),
            vmem_limit_bytes=_vmem_limit(blocks)),
    )(*args)


# ----------------------------------------------------------------------------
# Fused MLP kernel:
#   (shortcut + attn_out) -> norm2 -> fc1(chunk) -> exact erf-GELU ->
#   fc2(chunk) accumulate -> + residual + b2
# Hidden dim is tiled over a second ("arbitrary") grid axis; the normalized
# activations and the residual are cached in VMEM scratch across chunks.
# ----------------------------------------------------------------------------
def _mlp_kernel(sc_ref, xo_ref, g_ref, b_ref, w1_ref, b1_ref, w2_ref, b2_ref,
                o_ref, x_sc, xn_sc, acc_sc):
    k = pl.program_id(1)

    @pl.when(k == 0)
    def _():
        x = sc_ref[...].astype(jnp.float32) + xo_ref[...].astype(jnp.float32)
        mu = jnp.mean(x, axis=-1, keepdims=True)
        var = jnp.mean(jnp.square(x - mu), axis=-1, keepdims=True)
        xn = (x - mu) * jax.lax.rsqrt(var + LN_EPS) * g_ref[...] + b_ref[...]
        x_sc[...] = x
        xn_sc[...] = xn
        acc_sc[...] = jnp.zeros_like(acc_sc)

    h = jnp.dot(xn_sc[...].astype(MXU_DTYPE), w1_ref[...],
                preferred_element_type=jnp.float32) + b1_ref[...]
    # exact (erf) GELU, matching PyTorch nn.GELU default
    h = 0.5 * h * (1.0 + jax.lax.erf(h * INV_SQRT2))
    acc_sc[...] += jnp.dot(h.astype(MXU_DTYPE), w2_ref[...],
                           preferred_element_type=jnp.float32)

    @pl.when(k == pl.num_programs(1) - 1)
    def _():
        o_ref[...] = (x_sc[...] + acc_sc[...] + b2_ref[...]).astype(o_ref.dtype)


def mlp_block(shortcut2d, xo2d, prep, *, row_tile=512, hidden_tile=512):
    R, C = shortcut2d.shape
    Hd = prep["w1"].shape[1]
    t = _row_tile(R, row_tile)
    th = _col_tile(Hd, hidden_tile)
    kh = Hd // th

    blocks = [((t, C), jnp.float32), ((t, C), jnp.float32),
              ((1, C), jnp.float32), ((1, C), jnp.float32),
              ((C, th), prep["w1"].dtype), ((1, th), jnp.float32),
              ((th, C), prep["w2"].dtype), ((1, C), jnp.float32),
              ((t, C), jnp.float32),                       # output
              ((t, C), jnp.float32), ((t, C), jnp.float32), ((t, C), jnp.float32)]

    return pl.pallas_call(
        _mlp_kernel,
        out_shape=jax.ShapeDtypeStruct((R, C), shortcut2d.dtype),
        grid=(R // t, kh),
        in_specs=[
            pl.BlockSpec((t, C), lambda i, k: (i, 0)),
            pl.BlockSpec((t, C), lambda i, k: (i, 0)),
            pl.BlockSpec((1, C), lambda i, k: (0, 0)),
            pl.BlockSpec((1, C), lambda i, k: (0, 0)),
            pl.BlockSpec((C, th), lambda i, k: (0, k)),
            pl.BlockSpec((1, th), lambda i, k: (0, k)),
            pl.BlockSpec((th, C), lambda i, k: (k, 0)),
            pl.BlockSpec((1, C), lambda i, k: (0, 0)),
        ],
        out_specs=pl.BlockSpec((t, C), lambda i, k: (i, 0)),
        scratch_shapes=[pltpu.VMEM((t, C), jnp.float32),
                        pltpu.VMEM((t, C), jnp.float32),
                        pltpu.VMEM((t, C), jnp.float32)],
        compiler_params=pltpu.CompilerParams(
            dimension_semantics=("parallel", "arbitrary"),
            vmem_limit_bytes=_vmem_limit(blocks)),
    )(shortcut2d, xo2d, prep["norm2_g"], prep["norm2_b"],
      prep["w1"], prep["b1"], prep["w2"], prep["b2"])


# ----------------------------------------------------------------------------
# One-time weight preparation (hoisted out of the per-forward trace):
#  - qk scale folded into the Q weight columns / bias
#  - weight matrices cast to bf16 (MXU operands), biases / norms kept f32
# ----------------------------------------------------------------------------
def prepare_block_params(params, num_heads):
    C = params["wqkv"].shape[0]
    hd = C // num_heads
    scale = np.float32(hd ** (-0.5))
    wqkv, bqkv = params["wqkv"], params["bqkv"]
    wqkv_s = jnp.concatenate([wqkv[:, :C] * scale, wqkv[:, C:]], axis=1)
    bqkv_s = jnp.concatenate([bqkv[:C] * scale, bqkv[C:]])
    return dict(
        wqkv=wqkv_s.astype(MXU_DTYPE),                                  # (C, 3C)
        bqkv=bqkv_s.reshape(1, 3 * C).astype(jnp.float32),
        wproj=params["wproj"].astype(MXU_DTYPE),                        # (C, C)
        bproj=params["bproj"].reshape(1, C).astype(jnp.float32),
        rel_bias=params["rel_bias"].astype(jnp.float32),                # (nh, N, N)
        norm1_g=params["norm1_g"].reshape(1, C).astype(jnp.float32),
        norm1_b=params["norm1_b"].reshape(1, C).astype(jnp.float32),
        norm2_g=params["norm2_g"].reshape(1, C).astype(jnp.float32),
        norm2_b=params["norm2_b"].reshape(1, C).astype(jnp.float32),
        w1=params["w1"].astype(MXU_DTYPE),
        b1=params["b1"].reshape(1, -1).astype(jnp.float32),
        w2=params["w2"].astype(MXU_DTYPE),
        b2=params["b2"].reshape(1, C).astype(jnp.float32),
    )


# ----------------------------------------------------------------------------
# SwinTransformerBlock forward
# ----------------------------------------------------------------------------
def swin_block_forward(x, mask_matrix, prep, *, H, W, num_heads,
                       window_size, shift_size, window_tile=16):
    B, L, C = x.shape
    assert L == H * W, "input feature has wrong size"
    shortcut2d = x.reshape(B * L, C)

    pad_r = (window_size - W % window_size) % window_size
    pad_b = (window_size - H % window_size) % window_size
    # Fuse norm1 into the attention kernel only when no padding is needed
    # (padded tokens must stay exactly zero post-norm, like the reference).
    fuse_norm1 = (pad_r == 0 and pad_b == 0)

    if fuse_norm1:
        xn = x.reshape(B, H, W, C)
    else:
        xn = layer_norm(shortcut2d, prep["norm1_g"], prep["norm1_b"])
        xn = xn.reshape(B, H, W, C)
        xn = jnp.pad(xn, ((0, 0), (0, pad_b), (0, pad_r), (0, 0)))

    Hp, Wp = H + pad_b, W + pad_r
    N = window_size * window_size

    # cyclic shift
    if shift_size > 0:
        shifted_x = jnp.roll(xn, shift=(-shift_size, -shift_size), axis=(1, 2))
    else:
        shifted_x = xn

    # window partition -> fused attention -> window reverse
    x_windows = window_partition(shifted_x, window_size).reshape(-1, N, C)
    attn_windows = window_attention(
        x_windows, prep,
        mask=(mask_matrix if shift_size > 0 else None),
        num_heads=num_heads, fuse_ln=fuse_norm1, window_tile=window_tile)
    attn_windows = attn_windows.reshape(-1, window_size, window_size, C)
    shifted_x = window_reverse(attn_windows, window_size, Hp, Wp)

    # reverse cyclic shift + crop
    if shift_size > 0:
        xo = jnp.roll(shifted_x, shift=(shift_size, shift_size), axis=(1, 2))
    else:
        xo = shifted_x
    xo2d = xo[:, :H, :W, :].reshape(B * L, C)

    # attention residual + norm2 + MLP + residual, fused in one kernel
    # (drop_path / dropout = identity at rate 0.0)
    out2d = mlp_block(shortcut2d, xo2d, prep)
    return out2d.reshape(B, L, C)


# ----------------------------------------------------------------------------
# Pure-JAX f32 reference (mirrors the PyTorch module) for the correctness check.
# ----------------------------------------------------------------------------
def swin_block_reference(x, mask_matrix, params, *, H, W, num_heads,
                         window_size, shift_size):
    B, L, C = x.shape
    nh = num_heads
    hd = C // nh
    scale = hd ** (-0.5)

    def ln(z, g, b):
        mu = jnp.mean(z, axis=-1, keepdims=True)
        var = jnp.mean(jnp.square(z - mu), axis=-1, keepdims=True)
        return (z - mu) / jnp.sqrt(var + LN_EPS) * g + b

    shortcut = x
    xn = ln(x, params["norm1_g"], params["norm1_b"]).reshape(B, H, W, C)
    pad_r = (window_size - W % window_size) % window_size
    pad_b = (window_size - H % window_size) % window_size
    xn = jnp.pad(xn, ((0, 0), (0, pad_b), (0, pad_r), (0, 0)))
    Hp, Wp = H + pad_b, W + pad_r
    xs = jnp.roll(xn, shift=(-shift_size, -shift_size), axis=(1, 2)) if shift_size > 0 else xn
    N = window_size * window_size
    xw = window_partition(xs, window_size).reshape(-1, N, C)
    B_ = xw.shape[0]
    qkv = xw @ params["wqkv"] + params["bqkv"]
    qkv = qkv.reshape(B_, N, 3, nh, hd).transpose(2, 0, 3, 1, 4)
    q, k, v = qkv[0] * scale, qkv[1], qkv[2]
    attn = q @ jnp.swapaxes(k, -1, -2) + params["rel_bias"][None]
    if shift_size > 0:
        nW = mask_matrix.shape[0]
        attn = attn.reshape(B_ // nW, nW, nh, N, N) + mask_matrix[None, :, None, :, :]
        attn = attn.reshape(B_, nh, N, N)
    attn = jax.nn.softmax(attn, axis=-1)
    out = (attn @ v).transpose(0, 2, 1, 3).reshape(B_, N, C)
    out = out @ params["wproj"] + params["bproj"]
    out = window_reverse(out.reshape(-1, window_size, window_size, C), window_size, Hp, Wp)
    if shift_size > 0:
        out = jnp.roll(out, shift=(shift_size, shift_size), axis=(1, 2))
    out = out[:, :H, :W, :].reshape(B, L, C)
    xr = shortcut + out
    xn2 = ln(xr, params["norm2_g"], params["norm2_b"])
    h = xn2 @ params["w1"] + params["b1"]
    h = 0.5 * h * (1.0 + jax.lax.erf(h * INV_SQRT2))
    return xr + h @ params["w2"] + params["b2"]


# ----------------------------------------------------------------------------
# deterministic parameter init (synthetic; shapes match the nn.Module)
# ----------------------------------------------------------------------------
def init_params(key, dim, num_heads, window_size, mlp_ratio=4.0):
    hidden = int(dim * mlp_ratio)
    N = window_size * window_size
    ks = jax.random.split(key, 9)

    table = 0.02 * jax.random.normal(
        ks[0], ((2 * window_size - 1) * (2 * window_size - 1), num_heads), jnp.float32)
    coords = np.stack(np.meshgrid(np.arange(window_size), np.arange(window_size),
                                  indexing="ij"))
    coords_flat = coords.reshape(2, -1)
    rel = coords_flat[:, :, None] - coords_flat[:, None, :]
    rel = rel.transpose(1, 2, 0).copy()
    rel[:, :, 0] += window_size - 1
    rel[:, :, 1] += window_size - 1
    rel[:, :, 0] *= 2 * window_size - 1
    rel_index = rel.sum(-1)
    rel_bias = table[rel_index.reshape(-1)].reshape(N, N, num_heads)
    rel_bias = jnp.transpose(rel_bias, (2, 0, 1))                      # (nh, N, N)

    def nrm(k, shape, s=0.2):
        return s * jax.random.normal(k, shape, jnp.float32)

    return dict(
        norm1_g=jnp.ones((dim,), jnp.float32), norm1_b=jnp.zeros((dim,), jnp.float32),
        norm2_g=jnp.ones((dim,), jnp.float32), norm2_b=jnp.zeros((dim,), jnp.float32),
        wqkv=nrm(ks[1], (dim, 3 * dim)), bqkv=nrm(ks[2], (3 * dim,), 0.02),
        wproj=nrm(ks[3], (dim, dim)), bproj=nrm(ks[4], (dim,), 0.02),
        w1=nrm(ks[5], (dim, hidden)), b1=nrm(ks[6], (hidden,), 0.02),
        w2=nrm(ks[7], (hidden, dim)), b2=nrm(ks[8], (dim,), 0.02),
        rel_bias=rel_bias,
    )


def build_attn_mask(Hp, Wp, window_size, shift_size):
    img_mask = np.zeros((1, Hp, Wp, 1), np.float32)
    h_slices = (slice(0, -window_size), slice(-window_size, -shift_size),
                slice(-shift_size, None))
    w_slices = (slice(0, -window_size), slice(-window_size, -shift_size),
                slice(-shift_size, None))
    cnt = 0
    for h in h_slices:
        for w in w_slices:
            img_mask[:, h, w, :] = cnt
            cnt += 1
    m = img_mask.reshape(1, Hp // window_size, window_size, Wp // window_size,
                         window_size, 1)
    m = m.transpose(0, 1, 3, 2, 4, 5).reshape(-1, window_size * window_size)
    diff = m[:, None, :] - m[:, :, None]
    mask = np.where(diff != 0, np.float32(-100.0), np.float32(0.0))
    return jnp.asarray(mask)


if __name__ == "__main__":
    B, H, W, C = 2, 16, 16, 32
    num_heads, window_size = 4, 8
    mlp_ratio = 4.0

    key = jax.random.PRNGKey(0)
    kx, kp = jax.random.split(key)
    x = jax.random.normal(kx, (B, H * W, C), jnp.float32)
    params = init_params(kp, C, num_heads, window_size, mlp_ratio)
    prep = prepare_block_params(params, num_heads)      # one-time weight prep

    Hp = H + (window_size - H % window_size) % window_size
    Wp = W + (window_size - W % window_size) % window_size

    # exercise both the SW-MSA (shifted, masked) and W-MSA (unshifted) paths
    for shift_size in (window_size // 2, 0):
        mask_matrix = (build_attn_mask(Hp, Wp, window_size, shift_size)
                       if shift_size > 0 else None)
        out = swin_block_forward(x, mask_matrix, prep, H=H, W=W,
                                 num_heads=num_heads, window_size=window_size,
                                 shift_size=shift_size)
        jax.block_until_ready(out)
        assert out.shape == (B, H * W, C) and out.dtype == jnp.float32

        with jax.default_matmul_precision("float32"):
            ref = swin_block_reference(x, mask_matrix, params, H=H, W=W,
                                       num_heads=num_heads, window_size=window_size,
                                       shift_size=shift_size)
        # bf16 MXU operands + approx softmax reciprocal -> tolerance reflects
        # the expected ~1e-2-level deviation from the pure-f32 reference.
        np.testing.assert_allclose(np.asarray(out), np.asarray(ref),
                                   rtol=5e-2, atol=5e-2)

    print("KERNEL_OK")
</pallas_src>

<mosaic_0001>
module attributes {stable_mosaic.version = 11 : i64} {
  func.func @_window_attn_kernel(%arg0: i32, %arg1: memref<4x64x32xf32, #tpu.memory_space<vmem>>, %arg2: memref<32x96xbf16, #tpu.memory_space<vmem>>, %arg3: memref<1x96xf32, #tpu.memory_space<vmem>>, %arg4: memref<32x32xbf16, #tpu.memory_space<vmem>>, %arg5: memref<1x32xf32, #tpu.memory_space<vmem>>, %arg6: memref<4x64x64xf32, #tpu.memory_space<vmem>>, %arg7: memref<4x64x64xf32, #tpu.memory_space<vmem>>, %arg8: memref<1x32xf32, #tpu.memory_space<vmem>>, %arg9: memref<1x32xf32, #tpu.memory_space<vmem>>, %arg10: memref<4x64x32xf32, #tpu.memory_space<vmem>>) attributes {dimension_semantics = [#tpu.dimension_semantics<parallel>], iteration_bounds = array<i64: 2>, scalar_prefetch = 0 : i64, scratch_operands = 0 : i64, tpu.core_type = #tpu.core_type<tc>, window_params = [{transform_indices = @transform_0, window_bounds = array<i64: 4, 64, 32>}, {pipeline_mode = #tpu.pipeline_mode<synchronous>, transform_indices = @transform_1, window_bounds = array<i64: 32, 96>}, {pipeline_mode = #tpu.pipeline_mode<synchronous>, transform_indices = @transform_2, window_bounds = array<i64: 1, 96>}, {pipeline_mode = #tpu.pipeline_mode<synchronous>, transform_indices = @transform_3, window_bounds = array<i64: 32, 32>}, {pipeline_mode = #tpu.pipeline_mode<synchronous>, transform_indices = @transform_4, window_bounds = array<i64: 1, 32>}, {pipeline_mode = #tpu.pipeline_mode<synchronous>, transform_indices = @transform_5, window_bounds = array<i64: 4, 64, 64>}, {transform_indices = @transform_6, window_bounds = array<i64: 4, 64, 64>}, {pipeline_mode = #tpu.pipeline_mode<synchronous>, transform_indices = @transform_7, window_bounds = array<i64: 1, 32>}, {pipeline_mode = #tpu.pipeline_mode<synchronous>, transform_indices = @transform_8, window_bounds = array<i64: 1, 32>}, {transform_indices = @transform_9, window_bounds = array<i64: 4, 64, 32>}]} {
    %c0 = arith.constant 0 : index
    %c0_0 = arith.constant 0 : index
    %c0_1 = arith.constant 0 : index
    %0 = vector.load %arg1[%c0, %c0_0, %c0_1] : memref<4x64x32xf32, #tpu.memory_space<vmem>>, vector<4x64x32xf32>
    %cst = arith.constant dense<0.000000e+00> : vector<4x64xf32>
    %1 = vector.multi_reduction <add>, %0, %cst [2] : vector<4x64x32xf32> to vector<4x64xf32>
    %2 = vector.shape_cast %1 : vector<4x64xf32> to vector<4x64x1xf32>
    %cst_2 = arith.constant 3.200000e+01 : f32
    %3 = vector.broadcast %cst_2 : f32 to vector<4x64x1xf32>
    %4 = arith.divf %2, %3 : vector<4x64x1xf32>
    %5 = vector.broadcast %4 : vector<4x64x1xf32> to vector<4x64x32xf32>
    %6 = arith.subf %0, %5 : vector<4x64x32xf32>
    %7 = arith.mulf %6, %6 : vector<4x64x32xf32>
    %cst_3 = arith.constant dense<0.000000e+00> : vector<4x64xf32>
    %8 = vector.multi_reduction <add>, %7, %cst_3 [2] : vector<4x64x32xf32> to vector<4x64xf32>
    %9 = vector.shape_cast %8 : vector<4x64xf32> to vector<4x64x1xf32>
    %cst_4 = arith.constant 3.200000e+01 : f32
    %10 = vector.broadcast %cst_4 : f32 to vector<4x64x1xf32>
    %11 = arith.divf %9, %10 : vector<4x64x1xf32>
    %12 = vector.broadcast %4 : vector<4x64x1xf32> to vector<4x64x32xf32>
    %13 = arith.subf %0, %12 : vector<4x64x32xf32>
    %cst_5 = arith.constant 9.99999974E-6 : f32
    %14 = vector.broadcast %cst_5 : f32 to vector<4x64x1xf32>
    %15 = arith.addf %11, %14 : vector<4x64x1xf32>
    %16 = math.rsqrt %15 : vector<4x64x1xf32>
    %17 = vector.broadcast %16 : vector<4x64x1xf32> to vector<4x64x32xf32>
    %18 = arith.mulf %13, %17 : vector<4x64x32xf32>
    %c0_6 = arith.constant 0 : index
    %c0_7 = arith.constant 0 : index
    %19 = vector.load %arg8[%c0_6, %c0_7] : memref<1x32xf32, #tpu.memory_space<vmem>>, vector<1x32xf32>
    %20 = vector.shape_cast %19 : vector<1x32xf32> to vector<1x1x32xf32>
    %21 = vector.broadcast %20 : vector<1x1x32xf32> to vector<4x64x32xf32>
    %22 = arith.mulf %18, %21 : vector<4x64x32xf32>
    %c0_8 = arith.constant 0 : index
    %c0_9 = arith.constant 0 : index
    %23 = vector.load %arg9[%c0_8, %c0_9] : memref<1x32xf32, #tpu.memory_space<vmem>>, vector<1x32xf32>
    %24 = vector.shape_cast %23 : vector<1x32xf32> to vector<1x1x32xf32>
    %25 = vector.broadcast %24 : vector<1x1x32xf32> to vector<4x64x32xf32>
    %26 = arith.addf %22, %25 : vector<4x64x32xf32>
    %27 = vector.shape_cast %26 : vector<4x64x32xf32> to vector<256x32xf32>
    %28 = arith.truncf %27 : vector<256x32xf32> to vector<256x32xbf16>
    %c0_10 = arith.constant 0 : index
    %c0_11 = arith.constant 0 : index
    %29 = vector.load %arg2[%c0_10, %c0_11] : memref<32x96xbf16, #tpu.memory_space<vmem>>, vector<32x96xbf16>
    %cst_12 = arith.constant dense<0.000000e+00> : vector<256x96xf32>
    %30 = tpu.matmul %28, %29, %cst_12 {dimension_numbers = #tpu.dot_dimension_numbers<[1], [0], [0], [1], [0, 0, 1, 1], [], []>} : vector<256x32xbf16>, vector<32x96xbf16>, vector<256x96xf32> -> vector<256x96xf32>
    %c0_13 = arith.constant 0 : index
    %c0_14 = arith.constant 0 : index
    %31 = vector.load %arg3[%c0_13, %c0_14] : memref<1x96xf32, #tpu.memory_space<vmem>>, vector<1x96xf32>
    %32 = vector.broadcast %31 : vector<1x96xf32> to vector<256x96xf32>
    %33 = arith.addf %30, %32 : vector<256x96xf32>
    %c0_15 = arith.constant 0 : index
    %c0_16 = arith.constant 0 : index
    %c0_17 = arith.constant 0 : index
    %34 = vector.load %arg6[%c0_15, %c0_16, %c0_17] : memref<4x64x64xf32, #tpu.memory_space<vmem>>, vector<4x64x64xf32>
    %c0_18 = arith.constant 0 : index
    %c0_19 = arith.constant 0 : index
    %c0_20 = arith.constant 0 : index
    %35 = vector.load %arg7[%c0_18, %c0_19, %c0_20] : memref<4x64x64xf32, #tpu.memory_space<vmem>>, vector<4x64x64xf32>
    %36 = vector.extract_strided_slice %33 {offsets = [0, 0], sizes = [256, 8], strides = [1, 1]} : vector<256x96xf32> to vector<256x8xf32>
    %37 = vector.shape_cast %36 : vector<256x8xf32> to vector<4x64x8xf32>
    %38 = vector.extract_strided_slice %33 {offsets = [0, 32], sizes = [256, 8], strides = [1, 1]} : vector<256x96xf32> to vector<256x8xf32>
    %39 = vector.shape_cast %38 : vector<256x8xf32> to vector<4x64x8xf32>
    %40 = vector.extract_strided_slice %33 {offsets = [0, 64], sizes = [256, 8], strides = [1, 1]} : vector<256x96xf32> to vector<256x8xf32>
    %41 = vector.shape_cast %40 : vector<256x8xf32> to vector<4x64x8xf32>
    %42 = arith.truncf %37 : vector<4x64x8xf32> to vector<4x64x8xbf16>
    %43 = arith.truncf %39 : vector<4x64x8xf32> to vector<4x64x8xbf16>
    "tpu.trace_start"() <{level = 10 : i32, message = "bqd,bkd->bqk"}> : () -> ()
    %cst_21 = arith.constant dense<0.000000e+00> : vector<4x64x64xf32>
    %44 = tpu.matmul %42, %43, %cst_21 {dimension_numbers = #tpu.dot_dimension_numbers<[2], [2], [1], [1], [0, 0, 0, 1, 1, 1], [0], [0]>} : vector<4x64x8xbf16>, vector<4x64x8xbf16>, vector<4x64x64xf32> -> vector<4x64x64xf32>
    "tpu.trace_stop"() : () -> ()
    %45 = vector.extract_strided_slice %34 {offsets = [0, 0, 0], sizes = [1, 64, 64], strides = [1, 1, 1]} : vector<4x64x64xf32> to vector<1x64x64xf32>
    %46 = vector.shape_cast %45 : vector<1x64x64xf32> to vector<64x64xf32>
    %47 = vector.shape_cast %46 : vector<64x64xf32> to vector<1x64x64xf32>
    %48 = vector.broadcast %47 : vector<1x64x64xf32> to vector<4x64x64xf32>
    %49 = arith.addf %44, %48 : vector<4x64x64xf32>
    %50 = arith.addf %49, %35 : vector<4x64x64xf32>
    %cst_22 = arith.constant dense<0xFF800000> : vector<4x64xf32>
    %51 = vector.multi_reduction <maximumf>, %50, %cst_22 [2] : vector<4x64x64xf32> to vector<4x64xf32>
    %52 = vector.shape_cast %51 : vector<4x64xf32> to vector<4x64x1xf32>
    %53 = vector.broadcast %52 : vector<4x64x1xf32> to vector<4x64x64xf32>
    %54 = arith.subf %50, %53 : vector<4x64x64xf32>
    %55 = math.exp %54 : vector<4x64x64xf32>
    %cst_23 = arith.constant dense<0.000000e+00> : vector<4x64xf32>
    %56 = vector.multi_reduction <add>, %55, %cst_23 [2] : vector<4x64x64xf32> to vector<4x64xf32>
    %57 = vector.shape_cast %56 : vector<4x64xf32> to vector<4x64x1xf32>
    %58 = tpu.reciprocal %57 {approx = true} : vector<4x64x1xf32> -> vector<4x64x1xf32>
    %59 = vector.broadcast %58 : vector<4x64x1xf32> to vector<4x64x64xf32>
    %60 = arith.mulf %55, %59 : vector<4x64x64xf32>
    %61 = arith.truncf %60 : vector<4x64x64xf32> to vector<4x64x64xbf16>
    %62 = arith.truncf %41 : vector<4x64x8xf32> to vector<4x64x8xbf16>
    "tpu.trace_start"() <{level = 10 : i32, message = "bqk,bkd->bqd"}> : () -> ()
    %cst_24 = arith.constant dense<0.000000e+00> : vector<4x64x8xf32>
    %63 = tpu.matmul %61, %62, %cst_24 {dimension_numbers = #tpu.dot_dimension_numbers<[2], [1], [1], [2], [0, 0, 0, 1, 1, 2], [0], [0]>} : vector<4x64x64xbf16>, vector<4x64x8xbf16>, vector<4x64x8xf32> -> vector<4x64x8xf32>
    "tpu.trace_stop"() : () -> ()
    %64 = vector.shape_cast %63 : vector<4x64x8xf32> to vector<256x8xf32>
    %65 = vector.extract_strided_slice %33 {offsets = [0, 8], sizes = [256, 8], strides = [1, 1]} : vector<256x96xf32> to vector<256x8xf32>
    %66 = vector.shape_cast %65 : vector<256x8xf32> to vector<4x64x8xf32>
    %67 = vector.extract_strided_slice %33 {offsets = [0, 40], sizes = [256, 8], strides = [1, 1]} : vector<256x96xf32> to vector<256x8xf32>
    %68 = vector.shape_cast %67 : vector<256x8xf32> to vector<4x64x8xf32>
    %69 = vector.extract_strided_slice %33 {offsets = [0, 72], sizes = [256, 8], strides = [1, 1]} : vector<256x96xf32> to vector<256x8xf32>
    %70 = vector.shape_cast %69 : vector<256x8xf32> to vector<4x64x8xf32>
    %71 = arith.truncf %66 : vector<4x64x8xf32> to vector<4x64x8xbf16>
    %72 = arith.truncf %68 : vector<4x64x8xf32> to vector<4x64x8xbf16>
    "tpu.trace_start"() <{level = 10 : i32, message = "bqd,bkd->bqk"}> : () -> ()
    %cst_25 = arith.constant dense<0.000000e+00> : vector<4x64x64xf32>
    %73 = tpu.matmul %71, %72, %cst_25 {dimension_numbers = #tpu.dot_dimension_numbers<[2], [2], [1], [1], [0, 0, 0, 1, 1, 1], [0], [0]>} : vector<4x64x8xbf16>, vector<4x64x8xbf16>, vector<4x64x64xf32> -> vector<4x64x64xf32>
    "tpu.trace_stop"() : () -> ()
    %74 = vector.extract_strided_slice %34 {offsets = [1, 0, 0], sizes = [1, 64, 64], strides = [1, 1, 1]} : vector<4x64x64xf32> to vector<1x64x64xf32>
    %75 = vector.shape_cast %74 : vector<1x64x64xf32> to vector<64x64xf32>
    %76 = vector.shape_cast %75 : vector<64x64xf32> to vector<1x64x64xf32>
    %77 = vector.broadcast %76 : vector<1x64x64xf32> to vector<4x64x64xf32>
    %78 = arith.addf %73, %77 : vector<4x64x64xf32>
    %79 = arith.addf %78, %35 : vector<4x64x64xf32>
    %cst_26 = arith.constant dense<0xFF800000> : vector<4x64xf32>
    %80 = vector.multi_reduction <maximumf>, %79, %cst_26 [2] : vector<4x64x64xf32> to vector<4x64xf32>
    %81 = vector.shape_cast %80 : vector<4x64xf32> to vector<4x64x1xf32>
    %82 = vector.broadcast %81 : vector<4x64x1xf32> to vector<4x64x64xf32>
    %83 = arith.subf %79, %82 : vector<4x64x64xf32>
    %84 = math.exp %83 : vector<4x64x64xf32>
    %cst_27 = arith.constant dense<0.000000e+00> : vector<4x64xf32>
    %85 = vector.multi_reduction <add>, %84, %cst_27 [2] : vector<4x64x64xf32> to vector<4x64xf32>
    %86 = vector.shape_cast %85 : vector<4x64xf32> to vector<4x64x1xf32>
    %87 = tpu.reciprocal %86 {approx = true} : vector<4x64x1xf32> -> vector<4x64x1xf32>
    %88 = vector.broadcast %87 : vector<4x64x1xf32> to vector<4x64x64xf32>
    %89 = arith.mulf %84, %88 : vector<4x64x64xf32>
    %90 = arith.truncf %89 : vector<4x64x64xf32> to vector<4x64x64xbf16>
    %91 = arith.truncf %70 : vector<4x64x8xf32> to vector<4x64x8xbf16>
    "tpu.trace_start"() <{level = 10 : i32, message = "bqk,bkd->bqd"}> : () -> ()
    %cst_28 = arith.constant dense<0.000000e+00> : vector<4x64x8xf32>
    %92 = tpu.matmul %90, %91, %cst_28 {dimension_numbers = #tpu.dot_dimension_numbers<[2], [1], [1], [2], [0, 0, 0, 1, 1, 2], [0], [0]>} : vector<4x64x64xbf16>, vector<4x64x8xbf16>, vector<4x64x8xf32> -> vector<4x64x8xf32>
    "tpu.trace_stop"() : () -> ()
    %93 = vector.shape_cast %92 : vector<4x64x8xf32> to vector<256x8xf32>
    %94 = vector.extract_strided_slice %33 {offsets = [0, 16], sizes = [256, 8], strides = [1, 1]} : vector<256x96xf32> to vector<256x8xf32>
    %95 = vector.shape_cast %94 : vector<256x8xf32> to vector<4x64x8xf32>
    %96 = vector.extract_strided_slice %33 {offsets = [0, 48], sizes = [256, 8], strides = [1, 1]} : vector<256x96xf32> to vector<256x8xf32>
    %97 = vector.shape_cast %96 : vector<256x8xf32> to vector<4x64x8xf32>
    %98 = vector.extract_strided_slice %33 {offsets = [0, 80], sizes = [256, 8], strides = [1, 1]} : vector<256x96xf32> to vector<256x8xf32>
    %99 = vector.shape_cast %98 : vector<256x8xf32> to vector<4x64x8xf32>
    %100 = arith.truncf %95 : vector<4x64x8xf32> to vector<4x64x8xbf16>
    %101 = arith.truncf %97 : vector<4x64x8xf32> to vector<4x64x8xbf16>
    "tpu.trace_start"() <{level = 10 : i32, message = "bqd,bkd->bqk"}> : () -> ()
    %cst_29 = arith.constant dense<0.000000e+00> : vector<4x64x64xf32>
    %102 = tpu.matmul %100, %101, %cst_29 {dimension_numbers = #tpu.dot_dimension_numbers<[2], [2], [1], [1], [0, 0, 0, 1, 1, 1], [0], [0]>} : vector<4x64x8xbf16>, vector<4x64x8xbf16>, vector<4x64x64xf32> -> vector<4x64x64xf32>
    "tpu.trace_stop"() : () -> ()
    %103 = vector.extract_strided_slice %34 {offsets = [2, 0, 0], sizes = [1, 64, 64], strides = [1, 1, 1]} : vector<4x64x64xf32> to vector<1x64x64xf32>
    %104 = vector.shape_cast %103 : vector<1x64x64xf32> to vector<64x64xf32>
    %105 = vector.shape_cast %104 : vector<64x64xf32> to vector<1x64x64xf32>
    %106 = vector.broadcast %105 : vector<1x64x64xf32> to vector<4x64x64xf32>
    %107 = arith.addf %102, %106 : vector<4x64x64xf32>
    %108 = arith.addf %107, %35 : vector<4x64x64xf32>
    %cst_30 = arith.constant dense<0xFF800000> : vector<4x64xf32>
    %109 = vector.multi_reduction <maximumf>, %108, %cst_30 [2] : vector<4x64x64xf32> to vector<4x64xf32>
    %110 = vector.shape_cast %109 : vector<4x64xf32> to vector<4x64x1xf32>
    %111 = vector.broadcast %110 : vector<4x64x1xf32> to vector<4x64x64xf32>
    %112 = arith.subf %108, %111 : vector<4x64x64xf32>
    %113 = math.exp %112 : vector<4x64x64xf32>
    %cst_31 = arith.constant dense<0.000000e+00> : vector<4x64xf32>
    %114 = vector.multi_reduction <add>, %113, %cst_31 [2] : vector<4x64x64xf32> to vector<4x64xf32>
    %115 = vector.shape_cast %114 : vector<4x64xf32> to vector<4x64x1xf32>
    %116 = tpu.reciprocal %115 {approx = true} : vector<4x64x1xf32> -> vector<4x64x1xf32>
    %117 = vector.broadcast %116 : vector<4x64x1xf32> to vector<4x64x64xf32>
    %118 = arith.mulf %113, %117 : vector<4x64x64xf32>
    %119 = arith.truncf %118 : vector<4x64x64xf32> to vector<4x64x64xbf16>
    %120 = arith.truncf %99 : vector<4x64x8xf32> to vector<4x64x8xbf16>
    "tpu.trace_start"() <{level = 10 : i32, message = "bqk,bkd->bqd"}> : () -> ()
    %cst_32 = arith.constant dense<0.000000e+00> : vector<4x64x8xf32>
    %121 = tpu.matmul %119, %120, %cst_32 {dimension_numbers = #tpu.dot_dimension_numbers<[2], [1], [1], [2], [0, 0, 0, 1, 1, 2], [0], [0]>} : vector<4x64x64xbf16>, vector<4x64x8xbf16>, vector<4x64x8xf32> -> vector<4x64x8xf32>
    "tpu.trace_stop"() : () -> ()
    %122 = vector.shape_cast %121 : vector<4x64x8xf32> to vector<256x8xf32>
    %123 = vector.extract_strided_slice %33 {offsets = [0, 24], sizes = [256, 8], strides = [1, 1]} : vector<256x96xf32> to vector<256x8xf32>
    %124 = vector.shape_cast %123 : vector<256x8xf32> to vector<4x64x8xf32>
    %125 = vector.extract_strided_slice %33 {offsets = [0, 56], sizes = [256, 8], strides = [1, 1]} : vector<256x96xf32> to vector<256x8xf32>
    %126 = vector.shape_cast %125 : vector<256x8xf32> to vector<4x64x8xf32>
    %127 = vector.extract_strided_slice %33 {offsets = [0, 88], sizes = [256, 8], strides = [1, 1]} : vector<256x96xf32> to vector<256x8xf32>
    %128 = vector.shape_cast %127 : vector<256x8xf32> to vector<4x64x8xf32>
    %129 = arith.truncf %124 : vector<4x64x8xf32> to vector<4x64x8xbf16>
    %130 = arith.truncf %126 : vector<4x64x8xf32> to vector<4x64x8xbf16>
    "tpu.trace_start"() <{level = 10 : i32, message = "bqd,bkd->bqk"}> : () -> ()
    %cst_33 = arith.constant dense<0.000000e+00> : vector<4x64x64xf32>
    %131 = tpu.matmul %129, %130, %cst_33 {dimension_numbers = #tpu.dot_dimension_numbers<[2], [2], [1], [1], [0, 0, 0, 1, 1, 1], [0], [0]>} : vector<4x64x8xbf16>, vector<4x64x8xbf16>, vector<4x64x64xf32> -> vector<4x64x64xf32>
    "tpu.trace_stop"() : () -> ()
    %132 = vector.extract_strided_slice %34 {offsets = [3, 0, 0], sizes = [1, 64, 64], strides = [1, 1, 1]} : vector<4x64x64xf32> to vector<1x64x64xf32>
    %133 = vector.shape_cast %132 : vector<1x64x64xf32> to vector<64x64xf32>
    %134 = vector.shape_cast %133 : vector<64x64xf32> to vector<1x64x64xf32>
    %135 = vector.broadcast %134 : vector<1x64x64xf32> to vector<4x64x64xf32>
    %136 = arith.addf %131, %135 : vector<4x64x64xf32>
    %137 = arith.addf %136, %35 : vector<4x64x64xf32>
    %cst_34 = arith.constant dense<0xFF800000> : vector<4x64xf32>
    %138 = vector.multi_reduction <maximumf>, %137, %cst_34 [2] : vector<4x64x64xf32> to vector<4x64xf32>
    %139 = vector.shape_cast %138 : vector<4x64xf32> to vector<4x64x1xf32>
    %140 = vector.broadcast %139 : vector<4x64x1xf32> to vector<4x64x64xf32>
    %141 = arith.subf %137, %140 : vector<4x64x64xf32>
    %142 = math.exp %141 : vector<4x64x64xf32>
    %cst_35 = arith.constant dense<0.000000e+00> : vector<4x64xf32>
    %143 = vector.multi_reduction <add>, %142, %cst_35 [2] : vector<4x64x64xf32> to vector<4x64xf32>
    %144 = vector.shape_cast %143 : vector<4x64xf32> to vector<4x64x1xf32>
    %145 = tpu.reciprocal %144 {approx = true} : vector<4x64x1xf32> -> vector<4x64x1xf32>
    %146 = vector.broadcast %145 : vector<4x64x1xf32> to vector<4x64x64xf32>
    %147 = arith.mulf %142, %146 : vector<4x64x64xf32>
    %148 = arith.truncf %147 : vector<4x64x64xf32> to vector<4x64x64xbf16>
    %149 = arith.truncf %128 : vector<4x64x8xf32> to vector<4x64x8xbf16>
    "tpu.trace_start"() <{level = 10 : i32, message = "bqk,bkd->bqd"}> : () -> ()
    %cst_36 = arith.constant dense<0.000000e+00> : vector<4x64x8xf32>
    %150 = tpu.matmul %148, %149, %cst_36 {dimension_numbers = #tpu.dot_dimension_numbers<[2], [1], [1], [2], [0, 0, 0, 1, 1, 2], [0], [0]>} : vector<4x64x64xbf16>, vector<4x64x8xbf16>, vector<4x64x8xf32> -> vector<4x64x8xf32>
    "tpu.trace_stop"() : () -> ()
    %151 = vector.shape_cast %150 : vector<4x64x8xf32> to vector<256x8xf32>
    %152 = tpu.concatenate %64, %93, %122, %151 in 1 : vector<256x8xf32>, vector<256x8xf32>, vector<256x8xf32>, vector<256x8xf32> -> vector<256x32xf32>
    %153 = arith.truncf %152 : vector<256x32xf32> to vector<256x32xbf16>
    %c0_37 = arith.constant 0 : index
    %c0_38 = arith.constant 0 : index
    %154 = vector.load %arg4[%c0_37, %c0_38] : memref<32x32xbf16, #tpu.memory_space<vmem>>, vector<32x32xbf16>
    %cst_39 = arith.constant dense<0.000000e+00> : vector<256x32xf32>
    %155 = tpu.matmul %153, %154, %cst_39 {dimension_numbers = #tpu.dot_dimension_numbers<[1], [0], [0], [1], [0, 0, 1, 1], [], []>} : vector<256x32xbf16>, vector<32x32xbf16>, vector<256x32xf32> -> vector<256x32xf32>
    %c0_40 = arith.constant 0 : index
    %c0_41 = arith.constant 0 : index
    %156 = vector.load %arg5[%c0_40, %c0_41] : memref<1x32xf32, #tpu.memory_space<vmem>>, vector<1x32xf32>
    %157 = vector.broadcast %156 : vector<1x32xf32> to vector<256x32xf32>
    %158 = arith.addf %155, %157 : vector<256x32xf32>
    %159 = vector.shape_cast %158 : vector<256x32xf32> to vector<4x64x32xf32>
    %c0_42 = arith.constant 0 : index
    %c0_43 = arith.constant 0 : index
    %c0_44 = arith.constant 0 : index
    %160 = vector.load %arg10[%c0_42, %c0_43, %c0_44] : memref<4x64x32xf32, #tpu.memory_space<vmem>>, vector<4x64x32xf32>
    tpu.vector_store %arg10[%c0_42, %c0_43, %c0_44], %159 {strides = array<i32>} : memref<4x64x32xf32, #tpu.memory_space<vmem>>, vector<4x64x32xf32>,
    return
  }
  func.func @transform_0(%arg0: i32) -> (i32, i32, i32) {
    %c0_i32 = arith.constant 0 : i32
    %c0_i32_0 = arith.constant 0 : i32
    %c0_i32_1 = arith.constant 0 : i32
    return %arg0, %c0_i32, %c0_i32_0 : i32, i32, i32
  }
  func.func @transform_1(%arg0: i32) -> (i32, i32) {
    %c0_i32 = arith.constant 0 : i32
    %c0_i32_0 = arith.constant 0 : i32
    %c0_i32_1 = arith.constant 0 : i32
    return %c0_i32, %c0_i32_0 : i32, i32
  }
  func.func @transform_2(%arg0: i32) -> (i32, i32) {
    %c0_i32 = arith.constant 0 : i32
    %c0_i32_0 = arith.constant 0 : i32
    %c0_i32_1 = arith.constant 0 : i32
    return %c0_i32, %c0_i32_0 : i32, i32
  }
  func.func @transform_3(%arg0: i32) -> (i32, i32) {
    %c0_i32 = arith.constant 0 : i32
    %c0_i32_0 = arith.constant 0 : i32
    %c0_i32_1 = arith.constant 0 : i32
    return %c0_i32, %c0_i32_0 : i32, i32
  }
  func.func @transform_4(%arg0: i32) -> (i32, i32) {
    %c0_i32 = arith.constant 0 : i32
    %c0_i32_0 = arith.constant 0 : i32
    %c0_i32_1 = arith.constant 0 : i32
    return %c0_i32, %c0_i32_0 : i32, i32
  }
  func.func @transform_5(%arg0: i32) -> (i32, i32, i32) {
    %c0_i32 = arith.constant 0 : i32
    %c0_i32_0 = arith.constant 0 : i32
    %c0_i32_1 = arith.constant 0 : i32
    %c0_i32_2 = arith.constant 0 : i32
    return %c0_i32, %c0_i32_0, %c0_i32_1 : i32, i32, i32
  }
  func.func @transform_6(%arg0: i32) -> (i32, i32, i32) {
    %c1_i32 = arith.constant 1 : i32
    %c0_i32 = arith.constant 0 : i32
    %0 = arith.cmpi eq, %c1_i32, %c0_i32 : i32
    %c1_i32_0 = arith.constant 1 : i32
    %1 = arith.select %0, %c1_i32_0, %c1_i32 : i32
    %2 = arith.remsi %arg0, %1 : i32
    %c0_i32_1 = arith.constant 0 : i32
    %3 = arith.cmpi ne, %2, %c0_i32_1 : i32
    %c0_i32_2 = arith.constant 0 : i32
    %4 = arith.cmpi slt, %2, %c0_i32_2 : i32
    %c0_i32_3 = arith.constant 0 : i32
    %5 = arith.cmpi slt, %1, %c0_i32_3 : i32
    %6 = arith.xori %4, %5 : i1
    %7 = arith.andi %6, %3 : i1
    %8 = arith.addi %2, %1 : i32
    %9 = arith.select %7, %8, %2 : i32
    %c0_i32_4 = arith.constant 0 : i32
    %c0_i32_5 = arith.constant 0 : i32
    %c0_i32_6 = arith.constant 0 : i32
    return %9, %c0_i32_4, %c0_i32_5 : i32, i32, i32
  }
  func.func @transform_7(%arg0: i32) -> (i32, i32) {
    %c0_i32 = arith.constant 0 : i32
    %c0_i32_0 = arith.constant 0 : i32
    %c0_i32_1 = arith.constant 0 : i32
    return %c0_i32, %c0_i32_0 : i32, i32
  }
  func.func @transform_8(%arg0: i32) -> (i32, i32) {
    %c0_i32 = arith.constant 0 : i32
    %c0_i32_0 = arith.constant 0 : i32
    %c0_i32_1 = arith.constant 0 : i32
    return %c0_i32, %c0_i32_0 : i32, i32
  }
  func.func @transform_9(%arg0: i32) -> (i32, i32, i32) {
    %c0_i32 = arith.constant 0 : i32
    %c0_i32_0 = arith.constant 0 : i32
    %c0_i32_1 = arith.constant 0 : i32
    return %arg0, %c0_i32, %c0_i32_0 : i32, i32, i32
  }
}

</mosaic_0001>

<llo_original>
// kernel: tpu_custom_call.1
$region0: #{tpu_custom_call.1}
  #allocation0 [shape = 'u32[]', space=smem, size = 0x4, offset = 0x4, fixed_abs, tag = 'smem constant byte address 0x4 - core index']
  #allocation1 [shape = 'u32[72,128]{1,0:T(1,128)}', space=vmem, size = 0x9000, scoped, tag = 'internal scratch']
  %s0 = inlined_call_operand.vmem [shape: f32[8,64,32], index: 0, kind: input, shape index: {}]
  %s1 = inlined_call_operand.vmem [shape: bf16[32,96], index: 1, kind: input, shape index: {}]
  %s2 = inlined_call_operand.vmem [shape: f32[1,96], index: 2, kind: input, shape index: {}]
  %s3 = inlined_call_operand.vmem [shape: bf16[32,32], index: 3, kind: input, shape index: {}]
  %s4 = inlined_call_operand.vmem [shape: f32[1,32], index: 4, kind: input, shape index: {}]
  %s5 = inlined_call_operand.vmem [shape: f32[4,64,64], index: 5, kind: input, shape index: {}]
  %s6 = inlined_call_operand.vmem [shape: f32[4,64,64], index: 6, kind: input, shape index: {}]
  %s7 = inlined_call_operand.vmem [shape: f32[1,32], index: 7, kind: input, shape index: {}]
  %s8 = inlined_call_operand.vmem [shape: f32[1,32], index: 8, kind: input, shape index: {}]
  %s9 = inlined_call_operand.vmem [shape: f32[8,64,32], index: 9, kind: output, shape index: {}]
  %s10 = sld [smem:[#allocation0]]
  $region69: #{tpu_custom_call.1} parent=0
    _
  %s12 = ssub.s32 1, %s10
  %s13 = scalar_select 0, %s12, %s10
  loop: start=0, step=1, limit=4
  $region2: #{tpu_custom_call.1} parent=0 // loop_pre_header
    _
  $region3: #{tpu_custom_call.1} parent=0 // loop_header
    %s15 = sphi 0, %s19
    %p16 = scmp.ge.s32.totalorder %s15, 4
    %s25 = sphi 0, %s27
    %s28 = sphi 0, %s25
    %s29 = sphi 0, %s28
    %s45 = sphi 0, %s29
    %s49 = sphi 0, %s49
    %s51 = sphi 0, %s49
    %s52 = sphi 0, %s51
    %s66 = sphi 0, %s52
    %s70 = sphi 0, %s70
    %s72 = sphi 0, %s70
    %s73 = sphi 0, %s72
    %s87 = sphi 0, %s73
    %s91 = sphi 0, %s91
    %s93 = sphi 0, %s91
    %s94 = sphi 0, %s93
    %s108 = sphi 0, %s94
    %s112 = sphi 0, %s112
    %s114 = sphi 0, %s112
    %s115 = sphi 0, %s114
    %s129 = sphi 0, %s115
    %s133 = sphi 0, %s133
    %s135 = sphi 0, %s133
    %s136 = sphi 0, %s135
    %s150 = sphi 0, %s136
    %s154 = sphi 0, %s154
    %s156 = sphi 0, %s154
    %s157 = sphi 0, %s156
    %s171 = sphi 0, %s157
    %s175 = sphi 0, %s175
    %s177 = sphi 0, %s175
    %s178 = sphi 0, %s177
    %s192 = sphi 0, %s178
    %s196 = sphi 0, %s196
    %s198 = sphi 0, %s196
    %s199 = sphi 0, %s198
    %s213 = sphi 0, %s199
    %s219 = sphi 0, %s221
    %s222 = sphi 0, %s219
    %s223 = sphi 0, %s222
    %s239 = sphi 0, %s223
  $region4: #{tpu_custom_call.1} parent=0 // loop_header_branch
    %18 = sbr.rel (%p16) target = $region8
  $region5: #{tpu_custom_call.1} parent=0 // loop_body
    %s20 = ssub.s32 %s15, 1
    %s21 = ssub.s32 %s15, 2
    %s22 = sadd.s32 %s15, 1
    %s23 = ssub.s32 %s15, %s22
    %p24 = scmp.eq.s32.totalorder %s23, 0
    %s26 = sadd.s32 %s25, 1
    %s27 = scalar_select %p24, %s25, %s26
    %p30 = pneg %p24
    %p31 = scmp.eq.s32.totalorder %s15, 1
    %p32 = por %p30, %p31
    %p33 = scmp.ne.s32.totalorder %s25, %s28
    %p34 = scmp.eq.s32.totalorder %s15, 0
    %p35 = por %p33, %p34
    %p36 = scmp.ne.s32.totalorder %s25, %s28
    %p37 = scmp.eq.s32.totalorder %s20, 1
    %p38 = por %p36, %p37
    %p39 = scmp.ne.s32.totalorder %s28, %s29
    %p40 = scmp.eq.s32.totalorder %s20, 0
    %p41 = por %p39, %p40
    %p42 = scmp.ne.s32.totalorder %s28, %s29
    %p43 = scmp.eq.s32.totalorder %s21, 1
    %p44 = por %p42, %p43
    %p46 = scmp.ne.s32.totalorder %s29, %s45
    %p47 = scmp.eq.s32.totalorder %s21, 0
    %p48 = por %p46, %p47
    %s50 = sadd.s32 %s49, 1
    %p53 = scmp.eq.s32.totalorder %s15, 1
    %p54 = scmp.ne.s32.totalorder %s49, %s51
    %p55 = scmp.eq.s32.totalorder %s15, 0
    %p56 = por %p54, %p55
    %p57 = scmp.ne.s32.totalorder %s49, %s51
    %p58 = scmp.eq.s32.totalorder %s20, 1
    %p59 = por %p57, %p58
    %p60 = scmp.ne.s32.totalorder %s51, %s52
    %p61 = scmp.eq.s32.totalorder %s20, 0
    %p62 = por %p60, %p61
    %p63 = scmp.ne.s32.totalorder %s51, %s52
    %p64 = scmp.eq.s32.totalorder %s21, 1
    %p65 = por %p63, %p64
    %p67 = scmp.ne.s32.totalorder %s52, %s66
    %p68 = scmp.eq.s32.totalorder %s21, 0
    %p69 = por %p67, %p68
    %s71 = sadd.s32 %s70, 1
    %p74 = scmp.eq.s32.totalorder %s15, 1
    %p75 = scmp.ne.s32.totalorder %s70, %s72
    %p76 = scmp.eq.s32.totalorder %s15, 0
    %p77 = por %p75, %p76
    %p78 = scmp.ne.s32.totalorder %s70, %s72
    %p79 = scmp.eq.s32.totalorder %s20, 1
    %p80 = por %p78, %p79
    %p81 = scmp.ne.s32.totalorder %s72, %s73
    %p82 = scmp.eq.s32.totalorder %s20, 0
    %p83 = por %p81, %p82
    %p84 = scmp.ne.s32.totalorder %s72, %s73
    %p85 = scmp.eq.s32.totalorder %s21, 1
    %p86 = por %p84, %p85
    %p88 = scmp.ne.s32.totalorder %s73, %s87
    %p89 = scmp.eq.s32.totalorder %s21, 0
    %p90 = por %p88, %p89
    %s92 = sadd.s32 %s91, 1
    %p95 = scmp.eq.s32.totalorder %s15, 1
    %p96 = scmp.ne.s32.totalorder %s91, %s93
    %p97 = scmp.eq.s32.totalorder %s15, 0
    %p98 = por %p96, %p97
    %p99 = scmp.ne.s32.totalorder %s91, %s93
    %p100 = scmp.eq.s32.totalorder %s20, 1
    %p101 = por %p99, %p100
    %p102 = scmp.ne.s32.totalorder %s93, %s94
    %p103 = scmp.eq.s32.totalorder %s20, 0
    %p104 = por %p102, %p103
    %p105 = scmp.ne.s32.totalorder %s93, %s94
    %p106 = scmp.eq.s32.totalorder %s21, 1
    %p107 = por %p105, %p106
    %p109 = scmp.ne.s32.totalorder %s94, %s108
    %p110 = scmp.eq.s32.totalorder %s21, 0
    %p111 = por %p109, %p110
    %s113 = sadd.s32 %s112, 1
    %p116 = scmp.eq.s32.totalorder %s15, 1
    %p117 = scmp.ne.s32.totalorder %s112, %s114
    %p118 = scmp.eq.s32.totalorder %s15, 0
    %p119 = por %p117, %p118
    %p120 = scmp.ne.s32.totalorder %s112, %s114
    %p121 = scmp.eq.s32.totalorder %s20, 1
    %p122 = por %p120, %p121
    %p123 = scmp.ne.s32.totalorder %s114, %s115
    %p124 = scmp.eq.s32.totalorder %s20, 0
    %p125 = por %p123, %p124
    %p126 = scmp.ne.s32.totalorder %s114, %s115
    %p127 = scmp.eq.s32.totalorder %s21, 1
    %p128 = por %p126, %p127
    %p130 = scmp.ne.s32.totalorder %s115, %s129
    %p131 = scmp.eq.s32.totalorder %s21, 0
    %p132 = por %p130, %p131
    %s134 = sadd.s32 %s133, 1
    %p137 = scmp.eq.s32.totalorder %s15, 1
    %p138 = scmp.ne.s32.totalorder %s133, %s135
    %p139 = scmp.eq.s32.totalorder %s15, 0
    %p140 = por %p138, %p139
    %p141 = scmp.ne.s32.totalorder %s133, %s135
    %p142 = scmp.eq.s32.totalorder %s20, 1
    %p143 = por %p141, %p142
    %p144 = scmp.ne.s32.totalorder %s135, %s136
    %p145 = scmp.eq.s32.totalorder %s20, 0
    %p146 = por %p144, %p145
    %p147 = scmp.ne.s32.totalorder %s135, %s136
    %p148 = scmp.eq.s32.totalorder %s21, 1
    %p149 = por %p147, %p148
    %p151 = scmp.ne.s32.totalorder %s136, %s150
    %p152 = scmp.eq.s32.totalorder %s21, 0
    %p153 = por %p151, %p152
    %s155 = sadd.s32 %s154, 1
    %p158 = scmp.eq.s32.totalorder %s15, 1
    %p159 = scmp.ne.s32.totalorder %s154, %s156
    %p160 = scmp.eq.s32.totalorder %s15, 0
    %p161 = por %p159, %p160
    %p162 = scmp.ne.s32.totalorder %s154, %s156
    %p163 = scmp.eq.s32.totalorder %s20, 1
    %p164 = por %p162, %p163
    %p165 = scmp.ne.s32.totalorder %s156, %s157
    %p166 = scmp.eq.s32.totalorder %s20, 0
    %p167 = por %p165, %p166
    %p168 = scmp.ne.s32.totalorder %s156, %s157
    %p169 = scmp.eq.s32.totalorder %s21, 1
    %p170 = por %p168, %p169
    %p172 = scmp.ne.s32.totalorder %s157, %s171
    %p173 = scmp.eq.s32.totalorder %s21, 0
    %p174 = por %p172, %p173
    %s176 = sadd.s32 %s175, 1
    %p179 = scmp.eq.s32.totalorder %s15, 1
    %p180 = scmp.ne.s32.totalorder %s175, %s177
    %p181 = scmp.eq.s32.totalorder %s15, 0
    %p182 = por %p180, %p181
    %p183 = scmp.ne.s32.totalorder %s175, %s177
    %p184 = scmp.eq.s32.totalorder %s20, 1
    %p185 = por %p183, %p184
    %p186 = scmp.ne.s32.totalorder %s177, %s178
    %p187 = scmp.eq.s32.totalorder %s20, 0
    %p188 = por %p186, %p187
    %p189 = scmp.ne.s32.totalorder %s177, %s178
    %p190 = scmp.eq.s32.totalorder %s21, 1
    %p191 = por %p189, %p190
    %p193 = scmp.ne.s32.totalorder %s178, %s192
    %p194 = scmp.eq.s32.totalorder %s21, 0
    %p195 = por %p193, %p194
    %s197 = sadd.s32 %s196, 1
    %p200 = scmp.eq.s32.totalorder %s15, 1
    %p201 = scmp.ne.s32.totalorder %s196, %s198
    %p202 = scmp.eq.s32.totalorder %s15, 0
    %p203 = por %p201, %p202
    %p204 = scmp.ne.s32.totalorder %s196, %s198
    %p205 = scmp.eq.s32.totalorder %s20, 1
    %p206 = por %p204, %p205
    %p207 = scmp.ne.s32.totalorder %s198, %s199
    %p208 = scmp.eq.s32.totalorder %s20, 0
    %p209 = por %p207, %p208
    %p210 = scmp.ne.s32.totalorder %s198, %s199
    %p211 = scmp.eq.s32.totalorder %s21, 1
    %p212 = por %p210, %p211
    %p214 = scmp.ne.s32.totalorder %s199, %s213
    %p215 = scmp.eq.s32.totalorder %s21, 0
    %p216 = por %p214, %p215
    %s217 = ssub.s32 %s15, %s22
    %p218 = scmp.eq.s32.totalorder %s217, 0
    %s220 = sadd.s32 %s219, 1
    %s221 = scalar_select %p218, %s219, %s220
    %p224 = pneg %p218
    %p225 = scmp.eq.s32.totalorder %s15, 1
    %p226 = por %p224, %p225
    %p227 = scmp.ne.s32.totalorder %s219, %s222
    %p228 = scmp.eq.s32.totalorder %s15, 0
    %p229 = por %p227, %p228
    %p230 = scmp.ne.s32.totalorder %s219, %s222
    %p231 = scmp.eq.s32.totalorder %s20, 1
    %p232 = por %p230, %p231
    %p233 = scmp.ne.s32.totalorder %s222, %s223
    %p234 = scmp.eq.s32.totalorder %s20, 0
    %p235 = por %p233, %p234
    %p236 = scmp.ne.s32.totalorder %s222, %s223
    %p237 = scmp.eq.s32.totalorder %s21, 1
    %p238 = por %p236, %p237
    %p240 = scmp.ne.s32.totalorder %s223, %s239
    %p241 = scmp.eq.s32.totalorder %s21, 0
    %p242 = por %p240, %p241
    %p243 = scmp.le.s32.totalorder 1, %s15
    %p244 = scmp.lt.s32.totalorder %s15, 3
    %p245 = pnand %p243, %p244
    %p246 = pneg %p245
    // Predicated region
    $region9: #{tpu_custom_call.1} parent=5 // pred_check
      _
    $region10: #{tpu_custom_call.1} parent=5 // pred_check_branch
      %248 = sbr.rel (%p245) target = $region12
    $region11: #{tpu_custom_call.1} parent=5 // pred_region
      %s249 = ssub.s32 %s15, 1
      // Predicated region
      $region13: #{tpu_custom_call.1} parent=11 // pred_check
        %p250 = pneg %p62
      $region14: #{tpu_custom_call.1} parent=11 // pred_check_branch
        %252 = sbr.rel (%p250) target = $region16
      $region15: #{tpu_custom_call.1} parent=11 // pred_region
        _
      $region16: #{tpu_custom_call.1} parent=11 // pred_fallthru
        _
      // Predicated region
      $region17: #{tpu_custom_call.1} parent=11 // pred_check
        %p253 = pneg %p83
      $region18: #{tpu_custom_call.1} parent=11 // pred_check_branch
        %255 = sbr.rel (%p253) target = $region20
      $region19: #{tpu_custom_call.1} parent=11 // pred_region
        _
      $region20: #{tpu_custom_call.1} parent=11 // pred_fallthru
        _
      // Predicated region
      $region21: #{tpu_custom_call.1} parent=11 // pred_check
        %p256 = pneg %p104
      $region22: #{tpu_custom_call.1} parent=11 // pred_check_branch
        %258 = sbr.rel (%p256) target = $region24
      $region23: #{tpu_custom_call.1} parent=11 // pred_region
        _
      $region24: #{tpu_custom_call.1} parent=11 // pred_fallthru
        _
      // Predicated region
      $region25: #{tpu_custom_call.1} parent=11 // pred_check
        %p259 = pneg %p125
      $region26: #{tpu_custom_call.1} parent=11 // pred_check_branch
        %261 = sbr.rel (%p259) target = $region28
      $region27: #{tpu_custom_call.1} parent=11 // pred_region
        _
      $region28: #{tpu_custom_call.1} parent=11 // pred_fallthru
        _
      // Predicated region
      $region29: #{tpu_custom_call.1} parent=11 // pred_check
        %p262 = pneg %p146
      $region30: #{tpu_custom_call.1} parent=11 // pred_check_branch
        %264 = sbr.rel (%p262) target = $region32
      $region31: #{tpu_custom_call.1} parent=11 // pred_region
        _
      $region32: #{tpu_custom_call.1} parent=11 // pred_fallthru
        _
      // Predicated region
      $region33: #{tpu_custom_call.1} parent=11 // pred_check
        %p265 = pneg %p167
      $region34: #{tpu_custom_call.1} parent=11 // pred_check_branch
        %267 = sbr.rel (%p265) target = $region36
      $region35: #{tpu_custom_call.1} parent=11 // pred_region
        _
      $region36: #{tpu_custom_call.1} parent=11 // pred_fallthru
        _
      // Predicated region
      $region37: #{tpu_custom_call.1} parent=11 // pred_check
        %p268 = pneg %p188
      $region38: #{tpu_custom_call.1} parent=11 // pred_check_branch
        %270 = sbr.rel (%p268) target = $region40
      $region39: #{tpu_custom_call.1} parent=11 // pred_region
        _
      $region40: #{tpu_custom_call.1} parent=11 // pred_fallthru
        _
      // Predicated region
      $region41: #{tpu_custom_call.1} parent=11 // pred_check
        %p271 = pneg %p209
      $region42: #{tpu_custom_call.1} parent=11 // pred_check_branch
        %273 = sbr.rel (%p271) target = $region44
      $region43: #{tpu_custom_call.1} parent=11 // pred_region
        _
      $region44: #{tpu_custom_call.1} parent=11 // pred_fallthru
        _
    $region12: #{tpu_custom_call.1} parent=5 // pred_fallthru
      _
    %p274 = scmp.lt.s32.totalorder %s15, 2
    // Predicated region
    $region45: #{tpu_custom_call.1} parent=5 // pred_check
      %p275 = pneg %p274
    $region46: #{tpu_custom_call.1} parent=5 // pred_check_branch
      %277 = sbr.rel (%p275) target = $region48
    $region47: #{tpu_custom_call.1} parent=5 // pred_region
      // Predicated region
      $region49: #{tpu_custom_call.1} parent=47 // pred_check
        %p278 = pneg %p35
      $region50: #{tpu_custom_call.1} parent=47 // pred_check_branch
        %280 = sbr.rel (%p278) target = $region52
      $region51: #{tpu_custom_call.1} parent=47 // pred_region
        %s281 = smul.u32 4, %s15
        %p282 = scmp.lt.s32.totalorder %s281, 7
        %s283 = scalar_select %p282, %s281, 7
        %s284 = smul.addr %s283, 8
        %s285 = smul.addr %s284, 8
        %s286 = scalar_lea.vmem %s0, %s285
        %s287 = smul.u32 4, %s15
      $region52: #{tpu_custom_call.1} parent=47 // pred_fallthru
        _
    $region48: #{tpu_custom_call.1} parent=5 // pred_fallthru
      _
    %p288 = scmp.le.s32.totalorder 1, %s15
    %p289 = scmp.lt.s32.totalorder %s15, 3
    %p290 = pnand %p288, %p289
    %p291 = pneg %p290
    // Predicated region
    $region53: #{tpu_custom_call.1} parent=5 // pred_check
      _
    $region54: #{tpu_custom_call.1} parent=5 // pred_check_branch
      %293 = sbr.rel (%p290) target = $region56
    $region55: #{tpu_custom_call.1} parent=5 // pred_region
      %s294 = ssub.s32 %s15, 1
      %s295 = smul.u32 4, %s20
      %p296 = scmp.lt.s32.totalorder %s295, 7
      %s297 = scalar_select %p296, %s295, 7
      %s298 = smul.addr %s297, 8
      %s299 = smul.addr %s298, 8
      %s300 = scalar_lea.vmem %s0, %s299
      %p301 = pneg %p41
      %p302 = pneg %p38
      %p303 = pneg %p62
      %p304 = pneg %p59
      %p305 = pneg %p83
      %p306 = pneg %p80
      %p307 = pneg %p104
      %p308 = pneg %p101
      %p309 = pneg %p125
      %p310 = pneg %p122
      %p311 = pneg %p146
      %p312 = pneg %p143
      %p313 = pneg %p167
      %p314 = pneg %p164
      %p315 = pneg %p188
      %p316 = pneg %p185
      %p317 = pneg %p209
      %p318 = pneg %p206
      %p319 = pneg %p235
      %p320 = pneg %p232
      %s321 = smul.u32 4, %s20
      %p322 = scmp.lt.s32.totalorder %s321, 7
      %s323 = scalar_select %p322, %s321, 7
      %s324 = smul.addr %s323, 8
      %s325 = smul.addr %s324, 8
      %s326 = scalar_lea.vmem %s9, %s325
      %s327 = smul.u32 4, %s20
      %p328 = scmp.lt.s32.totalorder %s327, 7
      %s329 = scalar_select %p328, %s327, 7
      %s330 = smul.addr %s329, 8
      %s331 = smul.addr %s330, 8
      %s332 = scalar_lea.vmem %s0, %s331
      %s333 = smul.u32 4, %s20
      %s334 = smul.u32 4, %s20
      %p335 = scmp.lt.s32.totalorder %s334, 7
      %s336 = scalar_select %p335, %s334, 7
      %s337 = smul.addr %s336, 8
      %s338 = smul.addr %s337, 8
      %s339 = scalar_lea.vmem %s9, %s338
      %s340 = smul.u32 4, %s20
      %v342 = vld [vmem:[%s332] sm:$0xff]
      %v343 = vld [vmem:[%s332 + $0x8] sm:$0xff]
      %v344 = vld [vmem:[%s332 + $0x10] sm:$0xff]
      %v345 = vld [vmem:[%s332 + $0x18] sm:$0xff]
      %v346 = vld [vmem:[%s332 + $0x20] sm:$0xff]
      %v347 = vld [vmem:[%s332 + $0x28] sm:$0xff]
      %v348 = vld [vmem:[%s332 + $0x30] sm:$0xff]
      %v349 = vld [vmem:[%s332 + $0x38] sm:$0xff]
      %v350 = vld [vmem:[%s332 + $0x40] sm:$0xff]
      %v351 = vld [vmem:[%s332 + $0x48] sm:$0xff]
      %v352 = vld [vmem:[%s332 + $0x50] sm:$0xff]
      %v353 = vld [vmem:[%s332 + $0x58] sm:$0xff]
      %v354 = vld [vmem:[%s332 + $0x60] sm:$0xff]
      %v355 = vld [vmem:[%s332 + $0x68] sm:$0xff]
      %v356 = vld [vmem:[%s332 + $0x70] sm:$0xff]
      %v357 = vld [vmem:[%s332 + $0x78] sm:$0xff]
      %v358 = vld [vmem:[%s332 + $0x80] sm:$0xff]
      %v359 = vld [vmem:[%s332 + $0x88] sm:$0xff]
      %v360 = vld [vmem:[%s332 + $0x90] sm:$0xff]
      %v361 = vld [vmem:[%s332 + $0x98] sm:$0xff]
      %v362 = vld [vmem:[%s332 + $0xa0] sm:$0xff]
      %v363 = vld [vmem:[%s332 + $0xa8] sm:$0xff]
      %v364 = vld [vmem:[%s332 + $0xb0] sm:$0xff]
      %v365 = vld [vmem:[%s332 + $0xb8] sm:$0xff]
      %v366 = vld [vmem:[%s332 + $0xc0] sm:$0xff]
      %v367 = vld [vmem:[%s332 + $0xc8] sm:$0xff]
      %v368 = vld [vmem:[%s332 + $0xd0] sm:$0xff]
      %v369 = vld [vmem:[%s332 + $0xd8] sm:$0xff]
      %v370 = vld [vmem:[%s332 + $0xe0] sm:$0xff]
      %v371 = vld [vmem:[%s332 + $0xe8] sm:$0xff]
      %v372 = vld [vmem:[%s332 + $0xf0] sm:$0xff]
      %v373 = vld [vmem:[%s332 + $0xf8] sm:$0xff]
      %vm374 = vcmask 261120
      %v375 = vsel %vm374, %v342, 0.0
      %376 = vadd.xlane.f32.xlu0 %v375
      %v377 = vpop.xlane.xlu0 %376
      %v378 = vsel %vm374, %v343, 0.0
      %379 = vadd.xlane.f32.xlu0 %v378
      %v380 = vpop.xlane.xlu0 %379
      %v381 = vsel %vm374, %v344, 0.0
      %382 = vadd.xlane.f32.xlu0 %v381
      %v383 = vpop.xlane.xlu0 %382
      %v384 = vsel %vm374, %v345, 0.0
      %385 = vadd.xlane.f32.xlu0 %v384
      %v386 = vpop.xlane.xlu0 %385
      %v387 = vsel %vm374, %v346, 0.0
      %388 = vadd.xlane.f32.xlu0 %v387
      %v389 = vpop.xlane.xlu0 %388
      %v390 = vsel %vm374, %v347, 0.0
      %391 = vadd.xlane.f32.xlu0 %v390
      %v392 = vpop.xlane.xlu0 %391
      %v393 = vsel %vm374, %v348, 0.0
      %394 = vadd.xlane.f32.xlu0 %v393
      %v395 = vpop.xlane.xlu0 %394
      %v396 = vsel %vm374, %v349, 0.0
      %397 = vadd.xlane.f32.xlu0 %v396
      %v398 = vpop.xlane.xlu0 %397
      %v399 = vsel %vm374, %v350, 0.0
      %400 = vadd.xlane.f32.xlu0 %v399
      %v401 = vpop.xlane.xlu0 %400
      %v402 = vsel %vm374, %v351, 0.0
      %403 = vadd.xlane.f32.xlu0 %v402
      %v404 = vpop.xlane.xlu0 %403
      %v405 = vsel %vm374, %v352, 0.0
      %406 = vadd.xlane.f32.xlu0 %v405
      %v407 = vpop.xlane.xlu0 %406
      %v408 = vsel %vm374, %v353, 0.0
      %409 = vadd.xlane.f32.xlu0 %v408
      %v410 = vpop.xlane.xlu0 %409
      %v411 = vsel %vm374, %v354, 0.0
      %412 = vadd.xlane.f32.xlu0 %v411
      %v413 = vpop.xlane.xlu0 %412
      %v414 = vsel %vm374, %v355, 0.0
      %415 = vadd.xlane.f32.xlu0 %v414
      %v416 = vpop.xlane.xlu0 %415
      %v417 = vsel %vm374, %v356, 0.0
      %418 = vadd.xlane.f32.xlu0 %v417
      %v419 = vpop.xlane.xlu0 %418
      %v420 = vsel %vm374, %v357, 0.0
      %421 = vadd.xlane.f32.xlu0 %v420
      %v422 = vpop.xlane.xlu0 %421
      %v423 = vsel %vm374, %v358, 0.0
      %424 = vadd.xlane.f32.xlu0 %v423
      %v425 = vpop.xlane.xlu0 %424
      %v426 = vsel %vm374, %v359, 0.0
      %427 = vadd.xlane.f32.xlu0 %v426
      %v428 = vpop.xlane.xlu0 %427
      %v429 = vsel %vm374, %v360, 0.0
      %430 = vadd.xlane.f32.xlu0 %v429
      %v431 = vpop.xlane.xlu0 %430
      %v432 = vsel %vm374, %v361, 0.0
      %433 = vadd.xlane.f32.xlu0 %v432
      %v434 = vpop.xlane.xlu0 %433
      %v435 = vsel %vm374, %v362, 0.0
      %436 = vadd.xlane.f32.xlu0 %v435
      %v437 = vpop.xlane.xlu0 %436
      %v438 = vsel %vm374, %v363, 0.0
      %439 = vadd.xlane.f32.xlu0 %v438
      %v440 = vpop.xlane.xlu0 %439
      %v441 = vsel %vm374, %v364, 0.0
      %442 = vadd.xlane.f32.xlu0 %v441
      %v443 = vpop.xlane.xlu0 %442
      %v444 = vsel %vm374, %v365, 0.0
      %445 = vadd.xlane.f32.xlu0 %v444
      %v446 = vpop.xlane.xlu0 %445
      %v447 = vsel %vm374, %v366, 0.0
      %448 = vadd.xlane.f32.xlu0 %v447
      %v449 = vpop.xlane.xlu0 %448
      %v450 = vsel %vm374, %v367, 0.0
      %451 = vadd.xlane.f32.xlu0 %v450
      %v452 = vpop.xlane.xlu0 %451
      %v453 = vsel %vm374, %v368, 0.0
      %454 = vadd.xlane.f32.xlu0 %v453
      %v455 = vpop.xlane.xlu0 %454
      %v456 = vsel %vm374, %v369, 0.0
      %457 = vadd.xlane.f32.xlu0 %v456
      %v458 = vpop.xlane.xlu0 %457
      %v459 = vsel %vm374, %v370, 0.0
      %460 = vadd.xlane.f32.xlu0 %v459
      %v461 = vpop.xlane.xlu0 %460
      %v462 = vsel %vm374, %v371, 0.0
      %463 = vadd.xlane.f32.xlu0 %v462
      %v464 = vpop.xlane.xlu0 %463
      %v465 = vsel %vm374, %v372, 0.0
      %466 = vadd.xlane.f32.xlu0 %v465
      %v467 = vpop.xlane.xlu0 %466
      %v468 = vsel %vm374, %v373, 0.0
      %469 = vadd.xlane.f32.xlu0 %v468
      %v470 = vpop.xlane.xlu0 %469
      %v471 = vrcp.pop 32.0
      %v472 = vmul.f32 32.0, %v471
      %v473 = vsub.f32 1.0, %v472
      %v474 = vmul.f32 %v471, %v473
      %v475 = vadd.f32 %v471, %v474
      %vm476 = vweird.f32 %v471
      %v477 = vsel %vm476, %v471, %v475
      %v478 = vmul.f32 %v377, %v477
      %v479 = vmul.f32 %v380, %v477
      %v480 = vmul.f32 %v383, %v477
      %v481 = vmul.f32 %v386, %v477
      %v482 = vmul.f32 %v389, %v477
      %v483 = vmul.f32 %v392, %v477
      %v484 = vmul.f32 %v395, %v477
      %v485 = vmul.f32 %v398, %v477
      %v486 = vmul.f32 %v401, %v477
      %v487 = vmul.f32 %v404, %v477
      %v488 = vmul.f32 %v407, %v477
      %v489 = vmul.f32 %v410, %v477
      %v490 = vmul.f32 %v413, %v477
      %v491 = vmul.f32 %v416, %v477
      %v492 = vmul.f32 %v419, %v477
      %v493 = vmul.f32 %v422, %v477
      %v494 = vmul.f32 %v425, %v477
      %v495 = vmul.f32 %v428, %v477
      %v496 = vmul.f32 %v431, %v477
      %v497 = vmul.f32 %v434, %v477
      %v498 = vmul.f32 %v437, %v477
      %v499 = vmul.f32 %v440, %v477
      %v500 = vmul.f32 %v443, %v477
      %v501 = vmul.f32 %v446, %v477
      %v502 = vmul.f32 %v449, %v477
      %v503 = vmul.f32 %v452, %v477
      %v504 = vmul.f32 %v455, %v477
      %v505 = vmul.f32 %v458, %v477
      %v506 = vmul.f32 %v461, %v477
      %v507 = vmul.f32 %v464, %v477
      %v508 = vmul.f32 %v467, %v477
      %v509 = vmul.f32 %v470, %v477
      %v510 = vsub.f32 %v342, %v478
      %v511 = vsub.f32 %v343, %v479
      %v512 = vsub.f32 %v344, %v480
      %v513 = vsub.f32 %v345, %v481
      %v514 = vsub.f32 %v346, %v482
      %v515 = vsub.f32 %v347, %v483
      %v516 = vsub.f32 %v348, %v484
      %v517 = vsub.f32 %v349, %v485
      %v518 = vsub.f32 %v350, %v486
      %v519 = vsub.f32 %v351, %v487
      %v520 = vsub.f32 %v352, %v488
      %v521 = vsub.f32 %v353, %v489
      %v522 = vsub.f32 %v354, %v490
      %v523 = vsub.f32 %v355, %v491
      %v524 = vsub.f32 %v356, %v492
      %v525 = vsub.f32 %v357, %v493
      %v526 = vsub.f32 %v358, %v494
      %v527 = vsub.f32 %v359, %v495
      %v528 = vsub.f32 %v360, %v496
      %v529 = vsub.f32 %v361, %v497
      %v530 = vsub.f32 %v362, %v498
      %v531 = vsub.f32 %v363, %v499
      %v532 = vsub.f32 %v364, %v500
      %v533 = vsub.f32 %v365, %v501
      %v534 = vsub.f32 %v366, %v502
      %v535 = vsub.f32 %v367, %v503
      %v536 = vsub.f32 %v368, %v504
      %v537 = vsub.f32 %v369, %v505
      %v538 = vsub.f32 %v370, %v506
      %v539 = vsub.f32 %v371, %v507
      %v540 = vsub.f32 %v372, %v508
      %v541 = vsub.f32 %v373, %v509
      %v542 = vmul.f32 %v510, %v510
      %v543 = vmul.f32 %v511, %v511
      %v544 = vmul.f32 %v512, %v512
      %v545 = vmul.f32 %v513, %v513
      %v546 = vmul.f32 %v514, %v514
      %v547 = vmul.f32 %v515, %v515
      %v548 = vmul.f32 %v516, %v516
      %v549 = vmul.f32 %v517, %v517
      %v550 = vmul.f32 %v518, %v518
      %v551 = vmul.f32 %v519, %v519
      %v552 = vmul.f32 %v520, %v520
      %v553 = vmul.f32 %v521, %v521
      %v554 = vmul.f32 %v522, %v522
      %v555 = vmul.f32 %v523, %v523
      %v556 = vmul.f32 %v524, %v524
      %v557 = vmul.f32 %v525, %v525
      %v558 = vmul.f32 %v526, %v526
      %v559 = vmul.f32 %v527, %v527
      %v560 = vmul.f32 %v528, %v528
      %v561 = vmul.f32 %v529, %v529
      %v562 = vmul.f32 %v530, %v530
      %v563 = vmul.f32 %v531, %v531
      %v564 = vmul.f32 %v532, %v532
      %v565 = vmul.f32 %v533, %v533
      %v566 = vmul.f32 %v534, %v534
      %v567 = vmul.f32 %v535, %v535
      %v568 = vmul.f32 %v536, %v536
      %v569 = vmul.f32 %v537, %v537
      %v570 = vmul.f32 %v538, %v538
      %v571 = vmul.f32 %v539, %v539
      %v572 = vmul.f32 %v540, %v540
      %v573 = vmul.f32 %v541, %v541
      %v574 = vsel %vm374, %v542, 0.0
      %575 = vadd.xlane.f32.xlu0 %v574
      %v576 = vpop.xlane.xlu0 %575
      %v577 = vsel %vm374, %v543, 0.0
      %578 = vadd.xlane.f32.xlu0 %v577
      %v579 = vpop.xlane.xlu0 %578
      %v580 = vsel %vm374, %v544, 0.0
      %581 = vadd.xlane.f32.xlu0 %v580
      %v582 = vpop.xlane.xlu0 %581
      %v583 = vsel %vm374, %v545, 0.0
      %584 = vadd.xlane.f32.xlu0 %v583
      %v585 = vpop.xlane.xlu0 %584
      %v586 = vsel %vm374, %v546, 0.0
      %587 = vadd.xlane.f32.xlu0 %v586
      %v588 = vpop.xlane.xlu0 %587
      %v589 = vsel %vm374, %v547, 0.0
      %590 = vadd.xlane.f32.xlu0 %v589
      %v591 = vpop.xlane.xlu0 %590
      %v592 = vsel %vm374, %v548, 0.0
      %593 = vadd.xlane.f32.xlu0 %v592
      %v594 = vpop.xlane.xlu0 %593
      %v595 = vsel %vm374, %v549, 0.0
      %596 = vadd.xlane.f32.xlu0 %v595
      %v597 = vpop.xlane.xlu0 %596
      %v598 = vsel %vm374, %v550, 0.0
      %599 = vadd.xlane.f32.xlu0 %v598
      %v600 = vpop.xlane.xlu0 %599
      %v601 = vsel %vm374, %v551, 0.0
      %602 = vadd.xlane.f32.xlu0 %v601
      %v603 = vpop.xlane.xlu0 %602
      %v604 = vsel %vm374, %v552, 0.0
      %605 = vadd.xlane.f32.xlu0 %v604
      %v606 = vpop.xlane.xlu0 %605
      %v607 = vsel %vm374, %v553, 0.0
      %608 = vadd.xlane.f32.xlu0 %v607
      %v609 = vpop.xlane.xlu0 %608
      %v610 = vsel %vm374, %v554, 0.0
      %611 = vadd.xlane.f32.xlu0 %v610
      %v612 = vpop.xlane.xlu0 %611
      %v613 = vsel %vm374, %v555, 0.0
      %614 = vadd.xlane.f32.xlu0 %v613
      %v615 = vpop.xlane.xlu0 %614
      %v616 = vsel %vm374, %v556, 0.0
      %617 = vadd.xlane.f32.xlu0 %v616
      %v618 = vpop.xlane.xlu0 %617
      %v619 = vsel %vm374, %v557, 0.0
      %620 = vadd.xlane.f32.xlu0 %v619
      %v621 = vpop.xlane.xlu0 %620
      %v622 = vsel %vm374, %v558, 0.0
      %623 = vadd.xlane.f32.xlu0 %v622
      %v624 = vpop.xlane.xlu0 %623
      %v625 = vsel %vm374, %v559, 0.0
      %626 = vadd.xlane.f32.xlu0 %v625
      %v627 = vpop.xlane.xlu0 %626
      %v628 = vsel %vm374, %v560, 0.0
      %629 = vadd.xlane.f32.xlu0 %v628
      %v630 = vpop.xlane.xlu0 %629
      %v631 = vsel %vm374, %v561, 0.0
      %632 = vadd.xlane.f32.xlu0 %v631
      %v633 = vpop.xlane.xlu0 %632
      %v634 = vsel %vm374, %v562, 0.0
      %635 = vadd.xlane.f32.xlu0 %v634
      %v636 = vpop.xlane.xlu0 %635
      %v637 = vsel %vm374, %v563, 0.0
      %638 = vadd.xlane.f32.xlu0 %v637
      %v639 = vpop.xlane.xlu0 %638
      %v640 = vsel %vm374, %v564, 0.0
      %641 = vadd.xlane.f32.xlu0 %v640
      %v642 = vpop.xlane.xlu0 %641
      %v643 = vsel %vm374, %v565, 0.0
      %644 = vadd.xlane.f32.xlu0 %v643
      %v645 = vpop.xlane.xlu0 %644
      %v646 = vsel %vm374, %v566, 0.0
      %647 = vadd.xlane.f32.xlu0 %v646
      %v648 = vpop.xlane.xlu0 %647
      %v649 = vsel %vm374, %v567, 0.0
      %650 = vadd.xlane.f32.xlu0 %v649
      %v651 = vpop.xlane.xlu0 %650
      %v652 = vsel %vm374, %v568, 0.0
      %653 = vadd.xlane.f32.xlu0 %v652
      %v654 = vpop.xlane.xlu0 %653
      %v655 = vsel %vm374, %v569, 0.0
      %656 = vadd.xlane.f32.xlu0 %v655
      %v657 = vpop.xlane.xlu0 %656
      %v658 = vsel %vm374, %v570, 0.0
      %659 = vadd.xlane.f32.xlu0 %v658
      %v660 = vpop.xlane.xlu0 %659
      %v661 = vsel %vm374, %v571, 0.0
      %662 = vadd.xlane.f32.xlu0 %v661
      %v663 = vpop.xlane.xlu0 %662
      %v664 = vsel %vm374, %v572, 0.0
      %665 = vadd.xlane.f32.xlu0 %v664
      %v666 = vpop.xlane.xlu0 %665
      %v667 = vsel %vm374, %v573, 0.0
      %668 = vadd.xlane.f32.xlu0 %v667
      %v669 = vpop.xlane.xlu0 %668
      %v670 = vmul.f32 %v576, %v477
      %v671 = vmul.f32 %v579, %v477
      %v672 = vmul.f32 %v582, %v477
      %v673 = vmul.f32 %v585, %v477
      %v674 = vmul.f32 %v588, %v477
      %v675 = vmul.f32 %v591, %v477
      %v676 = vmul.f32 %v594, %v477
      %v677 = vmul.f32 %v597, %v477
      %v678 = vmul.f32 %v600, %v477
      %v679 = vmul.f32 %v603, %v477
      %v680 = vmul.f32 %v606, %v477
      %v681 = vmul.f32 %v609, %v477
      %v682 = vmul.f32 %v612, %v477
      %v683 = vmul.f32 %v615, %v477
      %v684 = vmul.f32 %v618, %v477
      %v685 = vmul.f32 %v621, %v477
      %v686 = vmul.f32 %v624, %v477
      %v687 = vmul.f32 %v627, %v477
      %v688 = vmul.f32 %v630, %v477
      %v689 = vmul.f32 %v633, %v477
      %v690 = vmul.f32 %v636, %v477
      %v691 = vmul.f32 %v639, %v477
      %v692 = vmul.f32 %v642, %v477
      %v693 = vmul.f32 %v645, %v477
      %v694 = vmul.f32 %v648, %v477
      %v695 = vmul.f32 %v651, %v477
      %v696 = vmul.f32 %v654, %v477
      %v697 = vmul.f32 %v657, %v477
      %v698 = vmul.f32 %v660, %v477
      %v699 = vmul.f32 %v663, %v477
      %v700 = vmul.f32 %v666, %v477
      %v701 = vmul.f32 %v669, %v477
      %v702 = vadd.f32 %v670, 1e-05
      %v703 = vadd.f32 %v671, 1e-05
      %v704 = vadd.f32 %v672, 1e-05
      %v705 = vadd.f32 %v673, 1e-05
      %v706 = vadd.f32 %v674, 1e-05
      %v707 = vadd.f32 %v675, 1e-05
      %v708 = vadd.f32 %v676, 1e-05
      %v709 = vadd.f32 %v677, 1e-05
      %v710 = vadd.f32 %v678, 1e-05
      %v711 = vadd.f32 %v679, 1e-05
      %v712 = vadd.f32 %v680, 1e-05
      %v713 = vadd.f32 %v681, 1e-05
      %v714 = vadd.f32 %v682, 1e-05
      %v715 = vadd.f32 %v683, 1e-05
      %v716 = vadd.f32 %v684, 1e-05
      %v717 = vadd.f32 %v685, 1e-05
      %v718 = vadd.f32 %v686, 1e-05
      %v719 = vadd.f32 %v687, 1e-05
      %v720 = vadd.f32 %v688, 1e-05
      %v721 = vadd.f32 %v689, 1e-05
      %v722 = vadd.f32 %v690, 1e-05
      %v723 = vadd.f32 %v691, 1e-05
      %v724 = vadd.f32 %v692, 1e-05
      %v725 = vadd.f32 %v693, 1e-05
      %v726 = vadd.f32 %v694, 1e-05
      %v727 = vadd.f32 %v695, 1e-05
      %v728 = vadd.f32 %v696, 1e-05
      %v729 = vadd.f32 %v697, 1e-05
      %v730 = vadd.f32 %v698, 1e-05
      %v731 = vadd.f32 %v699, 1e-05
      %v732 = vadd.f32 %v700, 1e-05
      %v733 = vadd.f32 %v701, 1e-05
      %v734 = vrsqrt.pop %v702
      %v735 = vmul.f32 %v734, %v702
      %v736 = vmul.f32 %v735, %v734
      %v737 = vmul.f32 0.5, %v736
      %v738 = vsub.f32 1.5, %v737
      %v739 = vmul.f32 %v734, %v738
      %vm740 = vweird.f32 %v702
      %vm741 = vweird.f32 %v734
      %vm742 = vmor %vm740, %vm741
      %v743 = vsel %vm742, %v734, %v739
      %v744 = vrsqrt.pop %v703
      %v745 = vmul.f32 %v744, %v703
      %v746 = vmul.f32 %v745, %v744
      %v747 = vmul.f32 0.5, %v746
      %v748 = vsub.f32 1.5, %v747
      %v749 = vmul.f32 %v744, %v748
      %vm750 = vweird.f32 %v703
      %vm751 = vweird.f32 %v744
      %vm752 = vmor %vm750, %vm751
      %v753 = vsel %vm752, %v744, %v749
      %v754 = vrsqrt.pop %v704
      %v755 = vmul.f32 %v754, %v704
      %v756 = vmul.f32 %v755, %v754
      %v757 = vmul.f32 0.5, %v756
      %v758 = vsub.f32 1.5, %v757
      %v759 = vmul.f32 %v754, %v758
      %vm760 = vweird.f32 %v704
      %vm761 = vweird.f32 %v754
      %vm762 = vmor %vm760, %vm761
      %v763 = vsel %vm762, %v754, %v759
      %v764 = vrsqrt.pop %v705
      %v765 = vmul.f32 %v764, %v705
      %v766 = vmul.f32 %v765, %v764
      %v767 = vmul.f32 0.5, %v766
      %v768 = vsub.f32 1.5, %v767
      %v769 = vmul.f32 %v764, %v768
      %vm770 = vweird.f32 %v705
      %vm771 = vweird.f32 %v764
      %vm772 = vmor %vm770, %vm771
      %v773 = vsel %vm772, %v764, %v769
      %v774 = vrsqrt.pop %v706
      %v775 = vmul.f32 %v774, %v706
      %v776 = vmul.f32 %v775, %v774
      %v777 = vmul.f32 0.5, %v776
      %v778 = vsub.f32 1.5, %v777
      %v779 = vmul.f32 %v774, %v778
      %vm780 = vweird.f32 %v706
      %vm781 = vweird.f32 %v774
      %vm782 = vmor %vm780, %vm781
      %v783 = vsel %vm782, %v774, %v779
      %v784 = vrsqrt.pop %v707
      %v785 = vmul.f32 %v784, %v707
      %v786 = vmul.f32 %v785, %v784
      %v787 = vmul.f32 0.5, %v786
      %v788 = vsub.f32 1.5, %v787
      %v789 = vmul.f32 %v784, %v788
      %vm790 = vweird.f32 %v707
      %vm791 = vweird.f32 %v784
      %vm792 = vmor %vm790, %vm791
      %v793 = vsel %vm792, %v784, %v789
      %v794 = vrsqrt.pop %v708
      %v795 = vmul.f32 %v794, %v708
      %v796 = vmul.f32 %v795, %v794
      %v797 = vmul.f32 0.5, %v796
      %v798 = vsub.f32 1.5, %v797
      %v799 = vmul.f32 %v794, %v798
      %vm800 = vweird.f32 %v708
      %vm801 = vweird.f32 %v794
      %vm802 = vmor %vm800, %vm801
      %v803 = vsel %vm802, %v794, %v799
      %v804 = vrsqrt.pop %v709
      %v805 = vmul.f32 %v804, %v709
      %v806 = vmul.f32 %v805, %v804
      %v807 = vmul.f32 0.5, %v806
      %v808 = vsub.f32 1.5, %v807
      %v809 = vmul.f32 %v804, %v808
      %vm810 = vweird.f32 %v709
      %vm811 = vweird.f32 %v804
      %vm812 = vmor %vm810, %vm811
      %v813 = vsel %vm812, %v804, %v809
      %v814 = vrsqrt.pop %v710
      %v815 = vmul.f32 %v814, %v710
      %v816 = vmul.f32 %v815, %v814
      %v817 = vmul.f32 0.5, %v816
      %v818 = vsub.f32 1.5, %v817
      %v819 = vmul.f32 %v814, %v818
      %vm820 = vweird.f32 %v710
      %vm821 = vweird.f32 %v814
      %vm822 = vmor %vm820, %vm821
      %v823 = vsel %vm822, %v814, %v819
      %v824 = vrsqrt.pop %v711
      %v825 = vmul.f32 %v824, %v711
      %v826 = vmul.f32 %v825, %v824
      %v827 = vmul.f32 0.5, %v826
      %v828 = vsub.f32 1.5, %v827
      %v829 = vmul.f32 %v824, %v828
      %vm830 = vweird.f32 %v711
      %vm831 = vweird.f32 %v824
      %vm832 = vmor %vm830, %vm831
      %v833 = vsel %vm832, %v824, %v829
      %v834 = vrsqrt.pop %v712
      %v835 = vmul.f32 %v834, %v712
      %v836 = vmul.f32 %v835, %v834
      %v837 = vmul.f32 0.5, %v836
      %v838 = vsub.f32 1.5, %v837
      %v839 = vmul.f32 %v834, %v838
      %vm840 = vweird.f32 %v712
      %vm841 = vweird.f32 %v834
      %vm842 = vmor %vm840, %vm841
      %v843 = vsel %vm842, %v834, %v839
      %v844 = vrsqrt.pop %v713
      %v845 = vmul.f32 %v844, %v713
      %v846 = vmul.f32 %v845, %v844
      %v847 = vmul.f32 0.5, %v846
      %v848 = vsub.f32 1.5, %v847
      %v849 = vmul.f32 %v844, %v848
      %vm850 = vweird.f32 %v713
      %vm851 = vweird.f32 %v844
      %vm852 = vmor %vm850, %vm851
      %v853 = vsel %vm852, %v844, %v849
      %v854 = vrsqrt.pop %v714
      %v855 = vmul.f32 %v854, %v714
      %v856 = vmul.f32 %v855, %v854
      %v857 = vmul.f32 0.5, %v856
      %v858 = vsub.f32 1.5, %v857
      %v859 = vmul.f32 %v854, %v858
      %vm860 = vweird.f32 %v714
      %vm861 = vweird.f32 %v854
      %vm862 = vmor %vm860, %vm861
      %v863 = vsel %vm862, %v854, %v859
      %v864 = vrsqrt.pop %v715
      %v865 = vmul.f32 %v864, %v715
      %v866 = vmul.f32 %v865, %v864
      %v867 = vmul.f32 0.5, %v866
      %v868 = vsub.f32 1.5, %v867
      %v869 = vmul.f32 %v864, %v868
      %vm870 = vweird.f32 %v715
      %vm871 = vweird.f32 %v864
      %vm872 = vmor %vm870, %vm871
      %v873 = vsel %vm872, %v864, %v869
      %v874 = vrsqrt.pop %v716
      %v875 = vmul.f32 %v874, %v716
      %v876 = vmul.f32 %v875, %v874
      %v877 = vmul.f32 0.5, %v876
      %v878 = vsub.f32 1.5, %v877
      %v879 = vmul.f32 %v874, %v878
      %vm880 = vweird.f32 %v716
      %vm881 = vweird.f32 %v874
      %vm882 = vmor %vm880, %vm881
      %v883 = vsel %vm882, %v874, %v879
      %v884 = vrsqrt.pop %v717
      %v885 = vmul.f32 %v884, %v717
      %v886 = vmul.f32 %v885, %v884
      %v887 = vmul.f32 0.5, %v886
      %v888 = vsub.f32 1.5, %v887
      %v889 = vmul.f32 %v884, %v888
      %vm890 = vweird.f32 %v717
      %vm891 = vweird.f32 %v884
      %vm892 = vmor %vm890, %vm891
      %v893 = vsel %vm892, %v884, %v889
      %v894 = vrsqrt.pop %v718
      %v895 = vmul.f32 %v894, %v718
      %v896 = vmul.f32 %v895, %v894
      %v897 = vmul.f32 0.5, %v896
      %v898 = vsub.f32 1.5, %v897
      %v899 = vmul.f32 %v894, %v898
      %vm900 = vweird.f32 %v718
      %vm901 = vweird.f32 %v894
      %vm902 = vmor %vm900, %vm901
      %v903 = vsel %vm902, %v894, %v899
      %v904 = vrsqrt.pop %v719
      %v905 = vmul.f32 %v904, %v719
      %v906 = vmul.f32 %v905, %v904
      %v907 = vmul.f32 0.5, %v906
      %v908 = vsub.f32 1.5, %v907
      %v909 = vmul.f32 %v904, %v908
      %vm910 = vweird.f32 %v719
      %vm911 = vweird.f32 %v904
      %vm912 = vmor %vm910, %vm911
      %v913 = vsel %vm912, %v904, %v909
      %v914 = vrsqrt.pop %v720
      %v915 = vmul.f32 %v914, %v720
      %v916 = vmul.f32 %v915, %v914
      %v917 = vmul.f32 0.5, %v916
      %v918 = vsub.f32 1.5, %v917
      %v919 = vmul.f32 %v914, %v918
      %vm920 = vweird.f32 %v720
      %vm921 = vweird.f32 %v914
      %vm922 = vmor %vm920, %vm921
      %v923 = vsel %vm922, %v914, %v919
      %v924 = vrsqrt.pop %v721
      %v925 = vmul.f32 %v924, %v721
      %v926 = vmul.f32 %v925, %v924
      %v927 = vmul.f32 0.5, %v926
      %v928 = vsub.f32 1.5, %v927
      %v929 = vmul.f32 %v924, %v928
      %vm930 = vweird.f32 %v721
      %vm931 = vweird.f32 %v924
      %vm932 = vmor %vm930, %vm931
      %v933 = vsel %vm932, %v924, %v929
      %v934 = vrsqrt.pop %v722
      %v935 = vmul.f32 %v934, %v722
      %v936 = vmul.f32 %v935, %v934
      %v937 = vmul.f32 0.5, %v936
      %v938 = vsub.f32 1.5, %v937
      %v939 = vmul.f32 %v934, %v938
      %vm940 = vweird.f32 %v722
      %vm941 = vweird.f32 %v934
      %vm942 = vmor %vm940, %vm941
      %v943 = vsel %vm942, %v934, %v939
      %v944 = vrsqrt.pop %v723
      %v945 = vmul.f32 %v944, %v723
      %v946 = vmul.f32 %v945, %v944
      %v947 = vmul.f32 0.5, %v946
      %v948 = vsub.f32 1.5, %v947
      %v949 = vmul.f32 %v944, %v948
      %vm950 = vweird.f32 %v723
      %vm951 = vweird.f32 %v944
      %vm952 = vmor %vm950, %vm951
      %v953 = vsel %vm952, %v944, %v949
      %v954 = vrsqrt.pop %v724
      %v955 = vmul.f32 %v954, %v724
      %v956 = vmul.f32 %v955, %v954
      %v957 = vmul.f32 0.5, %v956
      %v958 = vsub.f32 1.5, %v957
      %v959 = vmul.f32 %v954, %v958
      %vm960 = vweird.f32 %v724
      %vm961 = vweird.f32 %v954
      %vm962 = vmor %vm960, %vm961
      %v963 = vsel %vm962, %v954, %v959
      %v964 = vrsqrt.pop %v725
      %v965 = vmul.f32 %v964, %v725
      %v966 = vmul.f32 %v965, %v964
      %v967 = vmul.f32 0.5, %v966
      %v968 = vsub.f32 1.5, %v967
      %v969 = vmul.f32 %v964, %v968
      %vm970 = vweird.f32 %v725
      %vm971 = vweird.f32 %v964
      %vm972 = vmor %vm970, %vm971
      %v973 = vsel %vm972, %v964, %v969
      %v974 = vrsqrt.pop %v726
      %v975 = vmul.f32 %v974, %v726
      %v976 = vmul.f32 %v975, %v974
      %v977 = vmul.f32 0.5, %v976
      %v978 = vsub.f32 1.5, %v977
      %v979 = vmul.f32 %v974, %v978
      %vm980 = vweird.f32 %v726
      %vm981 = vweird.f32 %v974
      %vm982 = vmor %vm980, %vm981
      %v983 = vsel %vm982, %v974, %v979
      %v984 = vrsqrt.pop %v727
      %v985 = vmul.f32 %v984, %v727
      %v986 = vmul.f32 %v985, %v984
      %v987 = vmul.f32 0.5, %v986
      %v988 = vsub.f32 1.5, %v987
      %v989 = vmul.f32 %v984, %v988
      %vm990 = vweird.f32 %v727
      %vm991 = vweird.f32 %v984
      %vm992 = vmor %vm990, %vm991
      %v993 = vsel %vm992, %v984, %v989
      %v994 = vrsqrt.pop %v728
      %v995 = vmul.f32 %v994, %v728
      %v996 = vmul.f32 %v995, %v994
      %v997 = vmul.f32 0.5, %v996
      %v998 = vsub.f32 1.5, %v997
      %v999 = vmul.f32 %v994, %v998
      %vm1000 = vweird.f32 %v728
      %vm1001 = vweird.f32 %v994
      %vm1002 = vmor %vm1000, %vm1001
      %v1003 = vsel %vm1002, %v994, %v999
      %v1004 = vrsqrt.pop %v729
      %v1005 = vmul.f32 %v1004, %v729
      %v1006 = vmul.f32 %v1005, %v1004
      %v1007 = vmul.f32 0.5, %v1006
      %v1008 = vsub.f32 1.5, %v1007
      %v1009 = vmul.f32 %v1004, %v1008
      %vm1010 = vweird.f32 %v729
      %vm1011 = vweird.f32 %v1004
      %vm1012 = vmor %vm1010, %vm1011
      %v1013 = vsel %vm1012, %v1004, %v1009
      %v1014 = vrsqrt.pop %v730
      %v1015 = vmul.f32 %v1014, %v730
      %v1016 = vmul.f32 %v1015, %v1014
      %v1017 = vmul.f32 0.5, %v1016
      %v1018 = vsub.f32 1.5, %v1017
      %v1019 = vmul.f32 %v1014, %v1018
      %vm1020 = vweird.f32 %v730
      %vm1021 = vweird.f32 %v1014
      %vm1022 = vmor %vm1020, %vm1021
      %v1023 = vsel %vm1022, %v1014, %v1019
      %v1024 = vrsqrt.pop %v731
      %v1025 = vmul.f32 %v1024, %v731
      %v1026 = vmul.f32 %v1025, %v1024
      %v1027 = vmul.f32 0.5, %v1026
      %v1028 = vsub.f32 1.5, %v1027
      %v1029 = vmul.f32 %v1024, %v1028
      %vm1030 = vweird.f32 %v731
      %vm1031 = vweird.f32 %v1024
      %vm1032 = vmor %vm1030, %vm1031
      %v1033 = vsel %vm1032, %v1024, %v1029
      %v1034 = vrsqrt.pop %v732
      %v1035 = vmul.f32 %v1034, %v732
      %v1036 = vmul.f32 %v1035, %v1034
      %v1037 = vmul.f32 0.5, %v1036
      %v1038 = vsub.f32 1.5, %v1037
      %v1039 = vmul.f32 %v1034, %v1038
      %vm1040 = vweird.f32 %v732
      %vm1041 = vweird.f32 %v1034
      %vm1042 = vmor %vm1040, %vm1041
      %v1043 = vsel %vm1042, %v1034, %v1039
      %v1044 = vrsqrt.pop %v733
      %v1045 = vmul.f32 %v1044, %v733
      %v1046 = vmul.f32 %v1045, %v1044
      %v1047 = vmul.f32 0.5, %v1046
      %v1048 = vsub.f32 1.5, %v1047
      %v1049 = vmul.f32 %v1044, %v1048
      %vm1050 = vweird.f32 %v733
      %vm1051 = vweird.f32 %v1044
      %vm1052 = vmor %vm1050, %vm1051
      %v1053 = vsel %vm1052, %v1044, %v1049
      %v1054 = vmul.f32 %v510, %v743
      %v1055 = vmul.f32 %v511, %v753
      %v1056 = vmul.f32 %v512, %v763
      %v1057 = vmul.f32 %v513, %v773
      %v1058 = vmul.f32 %v514, %v783
      %v1059 = vmul.f32 %v515, %v793
      %v1060 = vmul.f32 %v516, %v803
      %v1061 = vmul.f32 %v517, %v813
      %v1062 = vmul.f32 %v518, %v823
      %v1063 = vmul.f32 %v519, %v833
      %v1064 = vmul.f32 %v520, %v843
      %v1065 = vmul.f32 %v521, %v853
      %v1066 = vmul.f32 %v522, %v863
      %v1067 = vmul.f32 %v523, %v873
      %v1068 = vmul.f32 %v524, %v883
      %v1069 = vmul.f32 %v525, %v893
      %v1070 = vmul.f32 %v526, %v903
      %v1071 = vmul.f32 %v527, %v913
      %v1072 = vmul.f32 %v528, %v923
      %v1073 = vmul.f32 %v529, %v933
      %v1074 = vmul.f32 %v530, %v943
      %v1075 = vmul.f32 %v531, %v953
      %v1076 = vmul.f32 %v532, %v963
      %v1077 = vmul.f32 %v533, %v973
      %v1078 = vmul.f32 %v534, %v983
      %v1079 = vmul.f32 %v535, %v993
      %v1080 = vmul.f32 %v536, %v1003
      %v1081 = vmul.f32 %v537, %v1013
      %v1082 = vmul.f32 %v538, %v1023
      %v1083 = vmul.f32 %v539, %v1033
      %v1084 = vmul.f32 %v540, %v1043
      %v1085 = vmul.f32 %v541, %v1053
      %v1086 = vld [vmem:[%s7] sm:$0x1]
      %v1088 = vperm.slane %v1086, 0
      %v1090 = vmul.f32 %v1054, %v1088
      %v1091 = vmul.f32 %v1055, %v1088
      %v1092 = vmul.f32 %v1056, %v1088
      %v1093 = vmul.f32 %v1057, %v1088
      %v1094 = vmul.f32 %v1058, %v1088
      %v1095 = vmul.f32 %v1059, %v1088
      %v1096 = vmul.f32 %v1060, %v1088
      %v1097 = vmul.f32 %v1061, %v1088
      %v1098 = vmul.f32 %v1062, %v1088
      %v1099 = vmul.f32 %v1063, %v1088
      %v1100 = vmul.f32 %v1064, %v1088
      %v1101 = vmul.f32 %v1065, %v1088
      %v1102 = vmul.f32 %v1066, %v1088
      %v1103 = vmul.f32 %v1067, %v1088
      %v1104 = vmul.f32 %v1068, %v1088
      %v1105 = vmul.f32 %v1069, %v1088
      %v1106 = vmul.f32 %v1070, %v1088
      %v1107 = vmul.f32 %v1071, %v1088
      %v1108 = vmul.f32 %v1072, %v1088
      %v1109 = vmul.f32 %v1073, %v1088
      %v1110 = vmul.f32 %v1074, %v1088
      %v1111 = vmul.f32 %v1075, %v1088
      %v1112 = vmul.f32 %v1076, %v1088
      %v1113 = vmul.f32 %v1077, %v1088
      %v1114 = vmul.f32 %v1078, %v1088
      %v1115 = vmul.f32 %v1079, %v1088
      %v1116 = vmul.f32 %v1080, %v1088
      %v1117 = vmul.f32 %v1081, %v1088
      %v1118 = vmul.f32 %v1082, %v1088
      %v1119 = vmul.f32 %v1083, %v1088
      %v1120 = vmul.f32 %v1084, %v1088
      %v1121 = vmul.f32 %v1085, %v1088
      %v1122 = vld [vmem:[%s8] sm:$0x1]
      %v1124 = vperm.slane %v1122, 0
      %v1126 = vadd.f32 %v1090, %v1124
      %v1127 = vadd.f32 %v1091, %v1124
      %v1128 = vadd.f32 %v1092, %v1124
      %v1129 = vadd.f32 %v1093, %v1124
      %v1130 = vadd.f32 %v1094, %v1124
      %v1131 = vadd.f32 %v1095, %v1124
      %v1132 = vadd.f32 %v1096, %v1124
      %v1133 = vadd.f32 %v1097, %v1124
      %v1134 = vadd.f32 %v1098, %v1124
      %v1135 = vadd.f32 %v1099, %v1124
      %v1136 = vadd.f32 %v1100, %v1124
      %v1137 = vadd.f32 %v1101, %v1124
      %v1138 = vadd.f32 %v1102, %v1124
      %v1139 = vadd.f32 %v1103, %v1124
      %v1140 = vadd.f32 %v1104, %v1124
      %v1141 = vadd.f32 %v1105, %v1124
      %v1142 = vadd.f32 %v1106, %v1124
      %v1143 = vadd.f32 %v1107, %v1124
      %v1144 = vadd.f32 %v1108, %v1124
      %v1145 = vadd.f32 %v1109, %v1124
      %v1146 = vadd.f32 %v1110, %v1124
      %v1147 = vadd.f32 %v1111, %v1124
      %v1148 = vadd.f32 %v1112, %v1124
      %v1149 = vadd.f32 %v1113, %v1124
      %v1150 = vadd.f32 %v1114, %v1124
      %v1151 = vadd.f32 %v1115, %v1124
      %v1152 = vadd.f32 %v1116, %v1124
      %v1153 = vadd.f32 %v1117, %v1124
      %v1154 = vadd.f32 %v1118, %v1124
      %v1155 = vadd.f32 %v1119, %v1124
      %v1156 = vadd.f32 %v1120, %v1124
      %v1157 = vadd.f32 %v1121, %v1124
      %v1158 = vpack.c.bf16 %v1127, %v1126
      %v1159 = vpack.c.bf16 %v1129, %v1128
      %v1160 = vpack.c.bf16 %v1131, %v1130
      %v1161 = vpack.c.bf16 %v1133, %v1132
      %v1162 = vpack.c.bf16 %v1135, %v1134
      %v1163 = vpack.c.bf16 %v1137, %v1136
      %v1164 = vpack.c.bf16 %v1139, %v1138
      %v1165 = vpack.c.bf16 %v1141, %v1140
      %v1166 = vpack.c.bf16 %v1143, %v1142
      %v1167 = vpack.c.bf16 %v1145, %v1144
      %v1168 = vpack.c.bf16 %v1147, %v1146
      %v1169 = vpack.c.bf16 %v1149, %v1148
      %v1170 = vpack.c.bf16 %v1151, %v1150
      %v1171 = vpack.c.bf16 %v1153, %v1152
      %v1172 = vpack.c.bf16 %v1155, %v1154
      %v1173 = vpack.c.bf16 %v1157, %v1156
      %v1174 = vld [vmem:[%s1] sm:$0xf]
      %v1175 = vld [vmem:[%s1 + $0x4] sm:$0xf]
      %v1176 = vld [vmem:[%s1 + $0x8] sm:$0xf]
      %v1177 = vld [vmem:[%s1 + $0xc] sm:$0xf]
      %v1178 = vld [vmem:[%s2] sm:$0x1]
      %v1180 = vperm.slane %v1178, 0
      %v1186 = vunpack.c.l.b16 %v1174
      %v1187 = vunpack.c.l.b16 %v1175
      %v1188 = vunpack.c.l.b16 %v1176
      %v1189 = vunpack.c.l.b16 %v1177
      %v1190 = vpack.c.b16 %v1187, %v1186
      %v1191 = vpack.c.b16 %v1189, %v1188
      %v1195 = vsel %vm374, %v1158, 0
      %v1198 = vsel %vm374, %v1159, 0
      %v1201 = vsel %vm374, %v1160, 0
      %v1204 = vsel %vm374, %v1161, 0
      %v1207 = vsel %vm374, %v1162, 0
      %v1210 = vsel %vm374, %v1163, 0
      %v1213 = vsel %vm374, %v1164, 0
      %v1216 = vsel %vm374, %v1165, 0
      %v1219 = vsel %vm374, %v1166, 0
      %v1222 = vsel %vm374, %v1167, 0
      %v1225 = vsel %vm374, %v1168, 0
      %v1228 = vsel %vm374, %v1169, 0
      %v1231 = vsel %vm374, %v1170, 0
      %v1234 = vsel %vm374, %v1171, 0
      %v1237 = vsel %vm374, %v1172, 0
      %v1240 = vsel %vm374, %v1173, 0
      %1242 = vmatpush.bf16.msra.mxu0 0
      %1243 = vmatpush.bf16.msra.mxu0 0
      %1244 = vmatpush.bf16.msra.mxu0 0
      %1245 = vmatpush.bf16.msra.mxu0 0
      %1246 = vmatpush.bf16.msra.mxu0 0
      %1247 = vmatpush.bf16.msra.mxu0 0
      %1248 = vmatpush.bf16.msra.mxu0 %v1191
      %1249 = vmatpush.bf16.msra.mxu0 %v1190
      %1250 = vmatmul.bf16.gmra.mxu0 %v1195
      %v1251 = vpop.f32.mrf.mxu0
      %v1252 = vadd.f32 %v1180, %v1251
      %v1253 = vpop.f32.mrf.mxu0
      %v1254 = vadd.f32 %v1180, %v1253
      %1255 = vmatmul.bf16.gmra.mxu0 %v1198
      %v1256 = vpop.f32.mrf.mxu0
      %v1257 = vadd.f32 %v1180, %v1256
      %v1258 = vpop.f32.mrf.mxu0
      %v1259 = vadd.f32 %v1180, %v1258
      %1260 = vmatmul.bf16.gmra.mxu0 %v1201
      %v1261 = vpop.f32.mrf.mxu0
      %v1262 = vadd.f32 %v1180, %v1261
      %v1263 = vpop.f32.mrf.mxu0
      %v1264 = vadd.f32 %v1180, %v1263
      %1265 = vmatmul.bf16.gmra.mxu0 %v1204
      %v1266 = vpop.f32.mrf.mxu0
      %v1267 = vadd.f32 %v1180, %v1266
      %v1268 = vpop.f32.mrf.mxu0
      %v1269 = vadd.f32 %v1180, %v1268
      %1270 = vmatmul.bf16.gmra.mxu0 %v1207
      %v1271 = vpop.f32.mrf.mxu0
      %v1272 = vadd.f32 %v1180, %v1271
      %v1273 = vpop.f32.mrf.mxu0
      %v1274 = vadd.f32 %v1180, %v1273
      %1275 = vmatmul.bf16.gmra.mxu0 %v1210
      %v1276 = vpop.f32.mrf.mxu0
      %v1277 = vadd.f32 %v1180, %v1276
      %v1278 = vpop.f32.mrf.mxu0
      %v1279 = vadd.f32 %v1180, %v1278
      %1280 = vmatmul.bf16.gmra.mxu0 %v1213
      %v1281 = vpop.f32.mrf.mxu0
      %v1282 = vadd.f32 %v1180, %v1281
      %v1283 = vpop.f32.mrf.mxu0
      %v1284 = vadd.f32 %v1180, %v1283
      %1285 = vmatmul.bf16.gmra.mxu0 %v1216
      %v1286 = vpop.f32.mrf.mxu0
      %v1287 = vadd.f32 %v1180, %v1286
      %v1288 = vpop.f32.mrf.mxu0
      %v1289 = vadd.f32 %v1180, %v1288
      %1290 = vmatmul.bf16.gmra.mxu0 %v1219
      %v1291 = vpop.f32.mrf.mxu0
      %v1292 = vadd.f32 %v1180, %v1291
      %v1293 = vpop.f32.mrf.mxu0
      %v1294 = vadd.f32 %v1180, %v1293
      %1295 = vmatmul.bf16.gmra.mxu0 %v1222
      %v1296 = vpop.f32.mrf.mxu0
      %v1297 = vadd.f32 %v1180, %v1296
      %v1298 = vpop.f32.mrf.mxu0
      %v1299 = vadd.f32 %v1180, %v1298
      %1300 = vmatmul.bf16.gmra.mxu0 %v1225
      %v1301 = vpop.f32.mrf.mxu0
      %v1302 = vadd.f32 %v1180, %v1301
      %v1303 = vpop.f32.mrf.mxu0
      %v1304 = vadd.f32 %v1180, %v1303
      %1305 = vmatmul.bf16.gmra.mxu0 %v1228
      %v1306 = vpop.f32.mrf.mxu0
      %v1307 = vadd.f32 %v1180, %v1306
      %v1308 = vpop.f32.mrf.mxu0
      %v1309 = vadd.f32 %v1180, %v1308
      %1310 = vmatmul.bf16.gmra.mxu0 %v1231
      %v1311 = vpop.f32.mrf.mxu0
      %v1312 = vadd.f32 %v1180, %v1311
      %v1313 = vpop.f32.mrf.mxu0
      %v1314 = vadd.f32 %v1180, %v1313
      %1315 = vmatmul.bf16.gmra.mxu0 %v1234
      %v1316 = vpop.f32.mrf.mxu0
      %v1317 = vadd.f32 %v1180, %v1316
      %v1318 = vpop.f32.mrf.mxu0
      %v1319 = vadd.f32 %v1180, %v1318
      %1320 = vmatmul.bf16.gmra.mxu0 %v1237
      %v1321 = vpop.f32.mrf.mxu0
      %v1322 = vadd.f32 %v1180, %v1321
      %v1323 = vpop.f32.mrf.mxu0
      %v1324 = vadd.f32 %v1180, %v1323
      %1325 = vmatmul.bf16.gmra.mxu0 %v1240
      %v1326 = vpop.f32.mrf.mxu0
      %v1327 = vadd.f32 %v1180, %v1326
      %v1328 = vpop.f32.mrf.mxu0
      %v1329 = vadd.f32 %v1180, %v1328
      %1330 = vdwg.mxu0
      %v1331 = vld [vmem:[%s5] sm:$0xff]
      %v1332 = vld [vmem:[%s5 + $0x8] sm:$0xff]
      %v1333 = vld [vmem:[%s5 + $0x10] sm:$0xff]
      %v1334 = vld [vmem:[%s5 + $0x18] sm:$0xff]
      %v1335 = vld [vmem:[%s5 + $0x20] sm:$0xff]
      %v1336 = vld [vmem:[%s5 + $0x28] sm:$0xff]
      %v1337 = vld [vmem:[%s5 + $0x30] sm:$0xff]
      %v1338 = vld [vmem:[%s5 + $0x38] sm:$0xff]
      %v1339 = vld [vmem:[%s5 + $0x40] sm:$0xff]
      %v1340 = vld [vmem:[%s5 + $0x48] sm:$0xff]
      %v1341 = vld [vmem:[%s5 + $0x50] sm:$0xff]
      %v1342 = vld [vmem:[%s5 + $0x58] sm:$0xff]
      %v1343 = vld [vmem:[%s5 + $0x60] sm:$0xff]
      %v1344 = vld [vmem:[%s5 + $0x68] sm:$0xff]
      %v1345 = vld [vmem:[%s5 + $0x70] sm:$0xff]
      %v1346 = vld [vmem:[%s5 + $0x78] sm:$0xff]
      %v1347 = vld [vmem:[%s5 + $0x80] sm:$0xff]
      %v1348 = vld [vmem:[%s5 + $0x88] sm:$0xff]
      %v1349 = vld [vmem:[%s5 + $0x90] sm:$0xff]
      %v1350 = vld [vmem:[%s5 + $0x98] sm:$0xff]
      %v1351 = vld [vmem:[%s5 + $0xa0] sm:$0xff]
      %v1352 = vld [vmem:[%s5 + $0xa8] sm:$0xff]
      %v1353 = vld [vmem:[%s5 + $0xb0] sm:$0xff]
      %v1354 = vld [vmem:[%s5 + $0xb8] sm:$0xff]
      %v1355 = vld [vmem:[%s5 + $0xc0] sm:$0xff]
      %v1356 = vld [vmem:[%s5 + $0xc8] sm:$0xff]
      %v1357 = vld [vmem:[%s5 + $0xd0] sm:$0xff]
      %v1358 = vld [vmem:[%s5 + $0xd8] sm:$0xff]
      %v1359 = vld [vmem:[%s5 + $0xe0] sm:$0xff]
      %v1360 = vld [vmem:[%s5 + $0xe8] sm:$0xff]
      %v1361 = vld [vmem:[%s5 + $0xf0] sm:$0xff]
      %v1362 = vld [vmem:[%s5 + $0xf8] sm:$0xff]
      %v1363 = vld [vmem:[%s6] sm:$0xff]
      %v1364 = vld [vmem:[%s6 + $0x8] sm:$0xff]
      %v1365 = vld [vmem:[%s6 + $0x10] sm:$0xff]
      %v1366 = vld [vmem:[%s6 + $0x18] sm:$0xff]
      %v1367 = vld [vmem:[%s6 + $0x20] sm:$0xff]
      %v1368 = vld [vmem:[%s6 + $0x28] sm:$0xff]
      %v1369 = vld [vmem:[%s6 + $0x30] sm:$0xff]
      %v1370 = vld [vmem:[%s6 + $0x38] sm:$0xff]
      %v1371 = vld [vmem:[%s6 + $0x40] sm:$0xff]
      %v1372 = vld [vmem:[%s6 + $0x48] sm:$0xff]
      %v1373 = vld [vmem:[%s6 + $0x50] sm:$0xff]
      %v1374 = vld [vmem:[%s6 + $0x58] sm:$0xff]
      %v1375 = vld [vmem:[%s6 + $0x60] sm:$0xff]
      %v1376 = vld [vmem:[%s6 + $0x68] sm:$0xff]
      %v1377 = vld [vmem:[%s6 + $0x70] sm:$0xff]
      %v1378 = vld [vmem:[%s6 + $0x78] sm:$0xff]
      %v1379 = vld [vmem:[%s6 + $0x80] sm:$0xff]
      %v1380 = vld [vmem:[%s6 + $0x88] sm:$0xff]
      %v1381 = vld [vmem:[%s6 + $0x90] sm:$0xff]
      %v1382 = vld [vmem:[%s6 + $0x98] sm:$0xff]
      %v1383 = vld [vmem:[%s6 + $0xa0] sm:$0xff]
      %v1384 = vld [vmem:[%s6 + $0xa8] sm:$0xff]
      %v1385 = vld [vmem:[%s6 + $0xb0] sm:$0xff]
      %v1386 = vld [vmem:[%s6 + $0xb8] sm:$0xff]
      %v1387 = vld [vmem:[%s6 + $0xc0] sm:$0xff]
      %v1388 = vld [vmem:[%s6 + $0xc8] sm:$0xff]
      %v1389 = vld [vmem:[%s6 + $0xd0] sm:$0xff]
      %v1390 = vld [vmem:[%s6 + $0xd8] sm:$0xff]
      %v1391 = vld [vmem:[%s6 + $0xe0] sm:$0xff]
      %v1392 = vld [vmem:[%s6 + $0xe8] sm:$0xff]
      %v1393 = vld [vmem:[%s6 + $0xf0] sm:$0xff]
      %v1394 = vld [vmem:[%s6 + $0xf8] sm:$0xff]
      %v1395 = vpack.c.bf16 %v1252, %v1252
      %v1396 = vpack.c.bf16 %v1254, %v1254
      %v1397 = vpack.c.bf16 %v1257, %v1257
      %v1398 = vpack.c.bf16 %v1259, %v1259
      %v1399 = vpack.c.bf16 %v1262, %v1262
      %v1400 = vpack.c.bf16 %v1264, %v1264
      %v1401 = vpack.c.bf16 %v1267, %v1267
      %v1402 = vpack.c.bf16 %v1269, %v1269
      %v1403 = vpack.c.bf16 %v1272, %v1272
      %v1404 = vpack.c.bf16 %v1274, %v1274
      %v1405 = vpack.c.bf16 %v1277, %v1277
      %v1406 = vpack.c.bf16 %v1279, %v1279
      %v1407 = vpack.c.bf16 %v1282, %v1282
      %v1408 = vpack.c.bf16 %v1284, %v1284
      %v1409 = vpack.c.bf16 %v1287, %v1287
      %v1410 = vpack.c.bf16 %v1289, %v1289
      %v1411 = vpack.c.bf16 %v1292, %v1292
      %v1412 = vpack.c.bf16 %v1294, %v1294
      %v1413 = vpack.c.bf16 %v1297, %v1297
      %v1414 = vpack.c.bf16 %v1299, %v1299
      %v1415 = vpack.c.bf16 %v1302, %v1302
      %v1416 = vpack.c.bf16 %v1304, %v1304
      %v1417 = vpack.c.bf16 %v1307, %v1307
      %v1418 = vpack.c.bf16 %v1309, %v1309
      %v1419 = vpack.c.bf16 %v1312, %v1312
      %v1420 = vpack.c.bf16 %v1314, %v1314
      %v1421 = vpack.c.bf16 %v1317, %v1317
      %v1422 = vpack.c.bf16 %v1319, %v1319
      %v1423 = vpack.c.bf16 %v1322, %v1322
      %v1424 = vpack.c.bf16 %v1324, %v1324
      %v1425 = vpack.c.bf16 %v1327, %v1327
      %v1426 = vpack.c.bf16 %v1329, %v1329
      %v1435 = vunpack.c.l.b16 %v1395
      %v1436 = vunpack.c.l.b16 %v1396
      %v1437 = vunpack.c.l.b16 %v1397
      %v1438 = vunpack.c.l.b16 %v1398
      %v1439 = vunpack.c.l.b16 %v1399
      %v1440 = vunpack.c.l.b16 %v1400
      %v1441 = vunpack.c.l.b16 %v1401
      %v1442 = vunpack.c.l.b16 %v1402
      %v1443 = vpack.c.b16 %v1436, %v1435
      %v1444 = vpack.c.b16 %v1438, %v1437
      %v1445 = vpack.c.b16 %v1440, %v1439
      %v1446 = vpack.c.b16 %v1442, %v1441
      %1447 = vrot.lane.b32.xlu0 %v1443, 96
      %v1448 = vpop.permute.xlu0 %1447
      %1449 = vrot.lane.b32.xlu0 %v1444, 96
      %v1450 = vpop.permute.xlu0 %1449
      %1451 = vrot.lane.b32.xlu0 %v1445, 96
      %v1452 = vpop.permute.xlu0 %1451
      %1453 = vrot.lane.b32.xlu0 %v1446, 96
      %v1454 = vpop.permute.xlu0 %1453
      %vm1455 = vcmask 64512
      %v1457 = vsel %vm1455, %v1443, 0
      %v1460 = vsel %vm1455, %v1444, 0
      %v1463 = vsel %vm1455, %v1445, 0
      %v1466 = vsel %vm1455, %v1446, 0
      %v1469 = vsel %vm1455, %v1448, 0
      %v1472 = vsel %vm1455, %v1450, 0
      %v1475 = vsel %vm1455, %v1452, 0
      %v1478 = vsel %vm1455, %v1454, 0
      %1480 = vmatpush.bf16.xpose.msra.mxu0 0
      %1481 = vmatpush.bf16.xpose.msra.mxu0 0
      %1482 = vmatpush.bf16.xpose.msra.mxu0 0
      %1483 = vmatpush.bf16.xpose.msra.mxu0 0
      %1484 = vmatpush.bf16.xpose.msra.mxu0 %v1478
      %1485 = vmatpush.bf16.xpose.msra.mxu0 %v1475
      %1486 = vmatpush.bf16.xpose.msra.mxu0 %v1472
      %1487 = vmatpush.bf16.xpose.msra.mxu0 %v1469
      %1488 = vmatmul.bf16.gmra.mxu0 %v1457
      %v1489 = vpop.f32.mrf.mxu0
      %v1490 = vadd.f32 %v1331, %v1489
      %v1491 = vpop.f32.mrf.mxu0
      %v1492 = vadd.f32 %v1332, %v1491
      %1493 = vmatmul.bf16.gmra.mxu0 %v1460
      %v1494 = vpop.f32.mrf.mxu0
      %v1495 = vadd.f32 %v1333, %v1494
      %v1496 = vpop.f32.mrf.mxu0
      %v1497 = vadd.f32 %v1334, %v1496
      %1498 = vmatmul.bf16.gmra.mxu0 %v1463
      %v1499 = vpop.f32.mrf.mxu0
      %v1500 = vadd.f32 %v1335, %v1499
      %v1501 = vpop.f32.mrf.mxu0
      %v1502 = vadd.f32 %v1336, %v1501
      %1503 = vmatmul.bf16.gmra.mxu0 %v1466
      %v1504 = vpop.f32.mrf.mxu0
      %v1505 = vadd.f32 %v1337, %v1504
      %v1506 = vpop.f32.mrf.mxu0
      %v1507 = vadd.f32 %v1338, %v1506
      %1508 = vdwg.mxu0
      %v1517 = vunpack.c.l.b16 %v1403
      %v1518 = vunpack.c.l.b16 %v1404
      %v1519 = vunpack.c.l.b16 %v1405
      %v1520 = vunpack.c.l.b16 %v1406
      %v1521 = vunpack.c.l.b16 %v1407
      %v1522 = vunpack.c.l.b16 %v1408
      %v1523 = vunpack.c.l.b16 %v1409
      %v1524 = vunpack.c.l.b16 %v1410
      %v1525 = vpack.c.b16 %v1518, %v1517
      %v1526 = vpack.c.b16 %v1520, %v1519
      %v1527 = vpack.c.b16 %v1522, %v1521
      %v1528 = vpack.c.b16 %v1524, %v1523
      %1529 = vrot.lane.b32.xlu0 %v1525, 96
      %v1530 = vpop.permute.xlu0 %1529
      %1531 = vrot.lane.b32.xlu0 %v1526, 96
      %v1532 = vpop.permute.xlu0 %1531
      %1533 = vrot.lane.b32.xlu0 %v1527, 96
      %v1534 = vpop.permute.xlu0 %1533
      %1535 = vrot.lane.b32.xlu0 %v1528, 96
      %v1536 = vpop.permute.xlu0 %1535
      %v1538 = vsel %vm1455, %v1525, 0
      %v1541 = vsel %vm1455, %v1526, 0
      %v1544 = vsel %vm1455, %v1527, 0
      %v1547 = vsel %vm1455, %v1528, 0
      %v1550 = vsel %vm1455, %v1530, 0
      %v1553 = vsel %vm1455, %v1532, 0
      %v1556 = vsel %vm1455, %v1534, 0
      %v1559 = vsel %vm1455, %v1536, 0
      %1561 = vmatpush.bf16.xpose.msra.mxu0 0
      %1562 = vmatpush.bf16.xpose.msra.mxu0 0
      %1563 = vmatpush.bf16.xpose.msra.mxu0 0
      %1564 = vmatpush.bf16.xpose.msra.mxu0 0
      %1565 = vmatpush.bf16.xpose.msra.mxu0 %v1559
      %1566 = vmatpush.bf16.xpose.msra.mxu0 %v1556
      %1567 = vmatpush.bf16.xpose.msra.mxu0 %v1553
      %1568 = vmatpush.bf16.xpose.msra.mxu0 %v1550
      %1569 = vmatmul.bf16.gmra.mxu0 %v1538
      %v1570 = vpop.f32.mrf.mxu0
      %v1571 = vadd.f32 %v1331, %v1570
      %v1572 = vpop.f32.mrf.mxu0
      %v1573 = vadd.f32 %v1332, %v1572
      %1574 = vmatmul.bf16.gmra.mxu0 %v1541
      %v1575 = vpop.f32.mrf.mxu0
      %v1576 = vadd.f32 %v1333, %v1575
      %v1577 = vpop.f32.mrf.mxu0
      %v1578 = vadd.f32 %v1334, %v1577
      %1579 = vmatmul.bf16.gmra.mxu0 %v1544
      %v1580 = vpop.f32.mrf.mxu0
      %v1581 = vadd.f32 %v1335, %v1580
      %v1582 = vpop.f32.mrf.mxu0
      %v1583 = vadd.f32 %v1336, %v1582
      %1584 = vmatmul.bf16.gmra.mxu0 %v1547
      %v1585 = vpop.f32.mrf.mxu0
      %v1586 = vadd.f32 %v1337, %v1585
      %v1587 = vpop.f32.mrf.mxu0
      %v1588 = vadd.f32 %v1338, %v1587
      %1589 = vdwg.mxu0
      %v1598 = vunpack.c.l.b16 %v1411
      %v1599 = vunpack.c.l.b16 %v1412
      %v1600 = vunpack.c.l.b16 %v1413
      %v1601 = vunpack.c.l.b16 %v1414
      %v1602 = vunpack.c.l.b16 %v1415
      %v1603 = vunpack.c.l.b16 %v1416
      %v1604 = vunpack.c.l.b16 %v1417
      %v1605 = vunpack.c.l.b16 %v1418
      %v1606 = vpack.c.b16 %v1599, %v1598
      %v1607 = vpack.c.b16 %v1601, %v1600
      %v1608 = vpack.c.b16 %v1603, %v1602
      %v1609 = vpack.c.b16 %v1605, %v1604
      %1610 = vrot.lane.b32.xlu0 %v1606, 96
      %v1611 = vpop.permute.xlu0 %1610
      %1612 = vrot.lane.b32.xlu0 %v1607, 96
      %v1613 = vpop.permute.xlu0 %1612
      %1614 = vrot.lane.b32.xlu0 %v1608, 96
      %v1615 = vpop.permute.xlu0 %1614
      %1616 = vrot.lane.b32.xlu0 %v1609, 96
      %v1617 = vpop.permute.xlu0 %1616
      %v1619 = vsel %vm1455, %v1606, 0
      %v1622 = vsel %vm1455, %v1607, 0
      %v1625 = vsel %vm1455, %v1608, 0
      %v1628 = vsel %vm1455, %v1609, 0
      %v1631 = vsel %vm1455, %v1611, 0
      %v1634 = vsel %vm1455, %v1613, 0
      %v1637 = vsel %vm1455, %v1615, 0
      %v1640 = vsel %vm1455, %v1617, 0
      %1642 = vmatpush.bf16.xpose.msra.mxu0 0
      %1643 = vmatpush.bf16.xpose.msra.mxu0 0
      %1644 = vmatpush.bf16.xpose.msra.mxu0 0
      %1645 = vmatpush.bf16.xpose.msra.mxu0 0
      %1646 = vmatpush.bf16.xpose.msra.mxu0 %v1640
      %1647 = vmatpush.bf16.xpose.msra.mxu0 %v1637
      %1648 = vmatpush.bf16.xpose.msra.mxu0 %v1634
      %1649 = vmatpush.bf16.xpose.msra.mxu0 %v1631
      %1650 = vmatmul.bf16.gmra.mxu0 %v1619
      %v1651 = vpop.f32.mrf.mxu0
      %v1652 = vadd.f32 %v1331, %v1651
      %v1653 = vpop.f32.mrf.mxu0
      %v1654 = vadd.f32 %v1332, %v1653
      %1655 = vmatmul.bf16.gmra.mxu0 %v1622
      %v1656 = vpop.f32.mrf.mxu0
      %v1657 = vadd.f32 %v1333, %v1656
      %v1658 = vpop.f32.mrf.mxu0
      %v1659 = vadd.f32 %v1334, %v1658
      %1660 = vmatmul.bf16.gmra.mxu0 %v1625
      %v1661 = vpop.f32.mrf.mxu0
      %v1662 = vadd.f32 %v1335, %v1661
      %v1663 = vpop.f32.mrf.mxu0
      %v1664 = vadd.f32 %v1336, %v1663
      %1665 = vmatmul.bf16.gmra.mxu0 %v1628
      %v1666 = vpop.f32.mrf.mxu0
      %v1667 = vadd.f32 %v1337, %v1666
      %v1668 = vpop.f32.mrf.mxu0
      %v1669 = vadd.f32 %v1338, %v1668
      %1670 = vdwg.mxu0
      %v1679 = vunpack.c.l.b16 %v1419
      %v1680 = vunpack.c.l.b16 %v1420
      %v1681 = vunpack.c.l.b16 %v1421
      %v1682 = vunpack.c.l.b16 %v1422
      %v1683 = vunpack.c.l.b16 %v1423
      %v1684 = vunpack.c.l.b16 %v1424
      %v1685 = vunpack.c.l.b16 %v1425
      %v1686 = vunpack.c.l.b16 %v1426
      %v1687 = vpack.c.b16 %v1680, %v1679
      %v1688 = vpack.c.b16 %v1682, %v1681
      %v1689 = vpack.c.b16 %v1684, %v1683
      %v1690 = vpack.c.b16 %v1686, %v1685
      %1691 = vrot.lane.b32.xlu0 %v1687, 96
      %v1692 = vpop.permute.xlu0 %1691
      %1693 = vrot.lane.b32.xlu0 %v1688, 96
      %v1694 = vpop.permute.xlu0 %1693
      %1695 = vrot.lane.b32.xlu0 %v1689, 96
      %v1696 = vpop.permute.xlu0 %1695
      %1697 = vrot.lane.b32.xlu0 %v1690, 96
      %v1698 = vpop.permute.xlu0 %1697
      %v1700 = vsel %vm1455, %v1687, 0
      %v1703 = vsel %vm1455, %v1688, 0
      %v1706 = vsel %vm1455, %v1689, 0
      %v1709 = vsel %vm1455, %v1690, 0
      %v1712 = vsel %vm1455, %v1692, 0
      %v1715 = vsel %vm1455, %v1694, 0
      %v1718 = vsel %vm1455, %v1696, 0
      %v1721 = vsel %vm1455, %v1698, 0
      %1723 = vmatpush.bf16.xpose.msra.mxu0 0
      %1724 = vmatpush.bf16.xpose.msra.mxu0 0
      %1725 = vmatpush.bf16.xpose.msra.mxu0 0
      %1726 = vmatpush.bf16.xpose.msra.mxu0 0
      %1727 = vmatpush.bf16.xpose.msra.mxu0 %v1721
      %1728 = vmatpush.bf16.xpose.msra.mxu0 %v1718
      %1729 = vmatpush.bf16.xpose.msra.mxu0 %v1715
      %1730 = vmatpush.bf16.xpose.msra.mxu0 %v1712
      %1731 = vmatmul.bf16.gmra.mxu0 %v1700
      %v1732 = vpop.f32.mrf.mxu0
      %v1733 = vadd.f32 %v1331, %v1732
      %v1734 = vpop.f32.mrf.mxu0
      %v1735 = vadd.f32 %v1332, %v1734
      %1736 = vmatmul.bf16.gmra.mxu0 %v1703
      %v1737 = vpop.f32.mrf.mxu0
      %v1738 = vadd.f32 %v1333, %v1737
      %v1739 = vpop.f32.mrf.mxu0
      %v1740 = vadd.f32 %v1334, %v1739
      %1741 = vmatmul.bf16.gmra.mxu0 %v1706
      %v1742 = vpop.f32.mrf.mxu0
      %v1743 = vadd.f32 %v1335, %v1742
      %v1744 = vpop.f32.mrf.mxu0
      %v1745 = vadd.f32 %v1336, %v1744
      %1746 = vmatmul.bf16.gmra.mxu0 %v1709
      %v1747 = vpop.f32.mrf.mxu0
      %v1748 = vadd.f32 %v1337, %v1747
      %v1749 = vpop.f32.mrf.mxu0
      %v1750 = vadd.f32 %v1338, %v1749
      %1751 = vdwg.mxu0
      %v1752 = vadd.f32 %v1490, %v1363
      %v1753 = vadd.f32 %v1492, %v1364
      %v1754 = vadd.f32 %v1495, %v1365
      %v1755 = vadd.f32 %v1497, %v1366
      %v1756 = vadd.f32 %v1500, %v1367
      %v1757 = vadd.f32 %v1502, %v1368
      %v1758 = vadd.f32 %v1505, %v1369
      %v1759 = vadd.f32 %v1507, %v1370
      %v1760 = vadd.f32 %v1571, %v1371
      %v1761 = vadd.f32 %v1573, %v1372
      %v1762 = vadd.f32 %v1576, %v1373
      %v1763 = vadd.f32 %v1578, %v1374
      %v1764 = vadd.f32 %v1581, %v1375
      %v1765 = vadd.f32 %v1583, %v1376
      %v1766 = vadd.f32 %v1586, %v1377
      %v1767 = vadd.f32 %v1588, %v1378
      %v1768 = vadd.f32 %v1652, %v1379
      %v1769 = vadd.f32 %v1654, %v1380
      %v1770 = vadd.f32 %v1657, %v1381
      %v1771 = vadd.f32 %v1659, %v1382
      %v1772 = vadd.f32 %v1662, %v1383
      %v1773 = vadd.f32 %v1664, %v1384
      %v1774 = vadd.f32 %v1667, %v1385
      %v1775 = vadd.f32 %v1669, %v1386
      %v1776 = vadd.f32 %v1733, %v1387
      %v1777 = vadd.f32 %v1735, %v1388
      %v1778 = vadd.f32 %v1738, %v1389
      %v1779 = vadd.f32 %v1740, %v1390
      %v1780 = vadd.f32 %v1743, %v1391
      %v1781 = vadd.f32 %v1745, %v1392
      %v1782 = vadd.f32 %v1748, %v1393
      %v1783 = vadd.f32 %v1750, %v1394
      %vm1784 = vcmask 523264
      %v1785 = vsel %vm1784, %v1752, -inf
      %1786 = vmax.xlane.f32.xlu0 %v1785
      %v1787 = vpop.xlane.xlu0 %1786
      %v1788 = vsel %vm1784, %v1753, -inf
      %1789 = vmax.xlane.f32.xlu0 %v1788
      %v1790 = vpop.xlane.xlu0 %1789
      %v1791 = vsel %vm1784, %v1754, -inf
      %1792 = vmax.xlane.f32.xlu0 %v1791
      %v1793 = vpop.xlane.xlu0 %1792
      %v1794 = vsel %vm1784, %v1755, -inf
      %1795 = vmax.xlane.f32.xlu0 %v1794
      %v1796 = vpop.xlane.xlu0 %1795
      %v1797 = vsel %vm1784, %v1756, -inf
      %1798 = vmax.xlane.f32.xlu0 %v1797
      %v1799 = vpop.xlane.xlu0 %1798
      %v1800 = vsel %vm1784, %v1757, -inf
      %1801 = vmax.xlane.f32.xlu0 %v1800
      %v1802 = vpop.xlane.xlu0 %1801
      %v1803 = vsel %vm1784, %v1758, -inf
      %1804 = vmax.xlane.f32.xlu0 %v1803
      %v1805 = vpop.xlane.xlu0 %1804
      %v1806 = vsel %vm1784, %v1759, -inf
      %1807 = vmax.xlane.f32.xlu0 %v1806
      %v1808 = vpop.xlane.xlu0 %1807
      %v1809 = vsel %vm1784, %v1760, -inf
      %1810 = vmax.xlane.f32.xlu0 %v1809
      %v1811 = vpop.xlane.xlu0 %1810
      %v1812 = vsel %vm1784, %v1761, -inf
      %1813 = vmax.xlane.f32.xlu0 %v1812
      %v1814 = vpop.xlane.xlu0 %1813
      %v1815 = vsel %vm1784, %v1762, -inf
      %1816 = vmax.xlane.f32.xlu0 %v1815
      %v1817 = vpop.xlane.xlu0 %1816
      %v1818 = vsel %vm1784, %v1763, -inf
      %1819 = vmax.xlane.f32.xlu0 %v1818
      %v1820 = vpop.xlane.xlu0 %1819
      %v1821 = vsel %vm1784, %v1764, -inf
      %1822 = vmax.xlane.f32.xlu0 %v1821
      %v1823 = vpop.xlane.xlu0 %1822
      %v1824 = vsel %vm1784, %v1765, -inf
      %1825 = vmax.xlane.f32.xlu0 %v1824
      %v1826 = vpop.xlane.xlu0 %1825
      %v1827 = vsel %vm1784, %v1766, -inf
      %1828 = vmax.xlane.f32.xlu0 %v1827
      %v1829 = vpop.xlane.xlu0 %1828
      %v1830 = vsel %vm1784, %v1767, -inf
      %1831 = vmax.xlane.f32.xlu0 %v1830
      %v1832 = vpop.xlane.xlu0 %1831
      %v1833 = vsel %vm1784, %v1768, -inf
      %1834 = vmax.xlane.f32.xlu0 %v1833
      %v1835 = vpop.xlane.xlu0 %1834
      %v1836 = vsel %vm1784, %v1769, -inf
      %1837 = vmax.xlane.f32.xlu0 %v1836
      %v1838 = vpop.xlane.xlu0 %1837
      %v1839 = vsel %vm1784, %v1770, -inf
      %1840 = vmax.xlane.f32.xlu0 %v1839
      %v1841 = vpop.xlane.xlu0 %1840
      %v1842 = vsel %vm1784, %v1771, -inf
      %1843 = vmax.xlane.f32.xlu0 %v1842
      %v1844 = vpop.xlane.xlu0 %1843
      %v1845 = vsel %vm1784, %v1772, -inf
      %1846 = vmax.xlane.f32.xlu0 %v1845
      %v1847 = vpop.xlane.xlu0 %1846
      %v1848 = vsel %vm1784, %v1773, -inf
      %1849 = vmax.xlane.f32.xlu0 %v1848
      %v1850 = vpop.xlane.xlu0 %1849
      %v1851 = vsel %vm1784, %v1774, -inf
      %1852 = vmax.xlane.f32.xlu0 %v1851
      %v1853 = vpop.xlane.xlu0 %1852
      %v1854 = vsel %vm1784, %v1775, -inf
      %1855 = vmax.xlane.f32.xlu0 %v1854
      %v1856 = vpop.xlane.xlu0 %1855
      %v1857 = vsel %vm1784, %v1776, -inf
      %1858 = vmax.xlane.f32.xlu0 %v1857
      %v1859 = vpop.xlane.xlu0 %1858
      %v1860 = vsel %vm1784, %v1777, -inf
      %1861 = vmax.xlane.f32.xlu0 %v1860
      %v1862 = vpop.xlane.xlu0 %1861
      %v1863 = vsel %vm1784, %v1778, -inf
      %1864 = vmax.xlane.f32.xlu0 %v1863
      %v1865 = vpop.xlane.xlu0 %1864
      %v1866 = vsel %vm1784, %v1779, -inf
      %1867 = vmax.xlane.f32.xlu0 %v1866
      %v1868 = vpop.xlane.xlu0 %1867
      %v1869 = vsel %vm1784, %v1780, -inf
      %1870 = vmax.xlane.f32.xlu0 %v1869
      %v1871 = vpop.xlane.xlu0 %1870
      %v1872 = vsel %vm1784, %v1781, -inf
      %1873 = vmax.xlane.f32.xlu0 %v1872
      %v1874 = vpop.xlane.xlu0 %1873
      %v1875 = vsel %vm1784, %v1782, -inf
      %1876 = vmax.xlane.f32.xlu0 %v1875
      %v1877 = vpop.xlane.xlu0 %1876
      %v1878 = vsel %vm1784, %v1783, -inf
      %1879 = vmax.xlane.f32.xlu0 %v1878
      %v1880 = vpop.xlane.xlu0 %1879
      %v1881 = vsub.f32 %v1752, %v1787
      %v1882 = vsub.f32 %v1753, %v1790
      %v1883 = vsub.f32 %v1754, %v1793
      %v1884 = vsub.f32 %v1755, %v1796
      %v1885 = vsub.f32 %v1756, %v1799
      %v1886 = vsub.f32 %v1757, %v1802
      %v1887 = vsub.f32 %v1758, %v1805
      %v1888 = vsub.f32 %v1759, %v1808
      %v1889 = vsub.f32 %v1760, %v1811
      %v1890 = vsub.f32 %v1761, %v1814
      %v1891 = vsub.f32 %v1762, %v1817
      %v1892 = vsub.f32 %v1763, %v1820
      %v1893 = vsub.f32 %v1764, %v1823
      %v1894 = vsub.f32 %v1765, %v1826
      %v1895 = vsub.f32 %v1766, %v1829
      %v1896 = vsub.f32 %v1767, %v1832
      %v1897 = vsub.f32 %v1768, %v1835
      %v1898 = vsub.f32 %v1769, %v1838
      %v1899 = vsub.f32 %v1770, %v1841
      %v1900 = vsub.f32 %v1771, %v1844
      %v1901 = vsub.f32 %v1772, %v1847
      %v1902 = vsub.f32 %v1773, %v1850
      %v1903 = vsub.f32 %v1774, %v1853
      %v1904 = vsub.f32 %v1775, %v1856
      %v1905 = vsub.f32 %v1776, %v1859
      %v1906 = vsub.f32 %v1777, %v1862
      %v1907 = vsub.f32 %v1778, %v1865
      %v1908 = vsub.f32 %v1779, %v1868
      %v1909 = vsub.f32 %v1780, %v1871
      %v1910 = vsub.f32 %v1781, %v1874
      %v1911 = vsub.f32 %v1782, %v1877
      %v1912 = vsub.f32 %v1783, %v1880
      %v1913 = vmul.f32 %v1881, 1.442695
      %v1914 = vpow.pop %v1913
      %v1915 = vmul.f32 %v1882, 1.442695
      %v1916 = vpow.pop %v1915
      %v1917 = vmul.f32 %v1883, 1.442695
      %v1918 = vpow.pop %v1917
      %v1919 = vmul.f32 %v1884, 1.442695
      %v1920 = vpow.pop %v1919
      %v1921 = vmul.f32 %v1885, 1.442695
      %v1922 = vpow.pop %v1921
      %v1923 = vmul.f32 %v1886, 1.442695
      %v1924 = vpow.pop %v1923
      %v1925 = vmul.f32 %v1887, 1.442695
      %v1926 = vpow.pop %v1925
      %v1927 = vmul.f32 %v1888, 1.442695
      %v1928 = vpow.pop %v1927
      %v1929 = vmul.f32 %v1889, 1.442695
      %v1930 = vpow.pop %v1929
      %v1931 = vmul.f32 %v1890, 1.442695
      %v1932 = vpow.pop %v1931
      %v1933 = vmul.f32 %v1891, 1.442695
      %v1934 = vpow.pop %v1933
      %v1935 = vmul.f32 %v1892, 1.442695
      %v1936 = vpow.pop %v1935
      %v1937 = vmul.f32 %v1893, 1.442695
      %v1938 = vpow.pop %v1937
      %v1939 = vmul.f32 %v1894, 1.442695
      %v1940 = vpow.pop %v1939
      %v1941 = vmul.f32 %v1895, 1.442695
      %v1942 = vpow.pop %v1941
      %v1943 = vmul.f32 %v1896, 1.442695
      %v1944 = vpow.pop %v1943
      %v1945 = vmul.f32 %v1897, 1.442695
      %v1946 = vpow.pop %v1945
      %v1947 = vmul.f32 %v1898, 1.442695
      %v1948 = vpow.pop %v1947
      %v1949 = vmul.f32 %v1899, 1.442695
      %v1950 = vpow.pop %v1949
      %v1951 = vmul.f32 %v1900, 1.442695
      %v1952 = vpow.pop %v1951
      %v1953 = vmul.f32 %v1901, 1.442695
      %v1954 = vpow.pop %v1953
      %v1955 = vmul.f32 %v1902, 1.442695
      %v1956 = vpow.pop %v1955
      %v1957 = vmul.f32 %v1903, 1.442695
      %v1958 = vpow.pop %v1957
      %v1959 = vmul.f32 %v1904, 1.442695
      %v1960 = vpow.pop %v1959
      %v1961 = vmul.f32 %v1905, 1.442695
      %v1962 = vpow.pop %v1961
      %v1963 = vmul.f32 %v1906, 1.442695
      %v1964 = vpow.pop %v1963
      %v1965 = vmul.f32 %v1907, 1.442695
      %v1966 = vpow.pop %v1965
      %v1967 = vmul.f32 %v1908, 1.442695
      %v1968 = vpow.pop %v1967
      %v1969 = vmul.f32 %v1909, 1.442695
      %v1970 = vpow.pop %v1969
      %v1971 = vmul.f32 %v1910, 1.442695
      %v1972 = vpow.pop %v1971
      %v1973 = vmul.f32 %v1911, 1.442695
      %v1974 = vpow.pop %v1973
      %v1975 = vmul.f32 %v1912, 1.442695
      %v1976 = vpow.pop %v1975
      %v1977 = vsel %vm1784, %v1914, 0.0
      %1978 = vadd.xlane.f32.xlu0 %v1977
      %v1979 = vpop.xlane.xlu0 %1978
      %v1980 = vsel %vm1784, %v1916, 0.0
      %1981 = vadd.xlane.f32.xlu0 %v1980
      %v1982 = vpop.xlane.xlu0 %1981
      %v1983 = vsel %vm1784, %v1918, 0.0
      %1984 = vadd.xlane.f32.xlu0 %v1983
      %v1985 = vpop.xlane.xlu0 %1984
      %v1986 = vsel %vm1784, %v1920, 0.0
      %1987 = vadd.xlane.f32.xlu0 %v1986
      %v1988 = vpop.xlane.xlu0 %1987
      %v1989 = vsel %vm1784, %v1922, 0.0
      %1990 = vadd.xlane.f32.xlu0 %v1989
      %v1991 = vpop.xlane.xlu0 %1990
      %v1992 = vsel %vm1784, %v1924, 0.0
      %1993 = vadd.xlane.f32.xlu0 %v1992
      %v1994 = vpop.xlane.xlu0 %1993
      %v1995 = vsel %vm1784, %v1926, 0.0
      %1996 = vadd.xlane.f32.xlu0 %v1995
      %v1997 = vpop.xlane.xlu0 %1996
      %v1998 = vsel %vm1784, %v1928, 0.0
      %1999 = vadd.xlane.f32.xlu0 %v1998
      %v2000 = vpop.xlane.xlu0 %1999
      %v2001 = vsel %vm1784, %v1930, 0.0
      %2002 = vadd.xlane.f32.xlu0 %v2001
      %v2003 = vpop.xlane.xlu0 %2002
      %v2004 = vsel %vm1784, %v1932, 0.0
      %2005 = vadd.xlane.f32.xlu0 %v2004
      %v2006 = vpop.xlane.xlu0 %2005
      %v2007 = vsel %vm1784, %v1934, 0.0
      %2008 = vadd.xlane.f32.xlu0 %v2007
      %v2009 = vpop.xlane.xlu0 %2008
      %v2010 = vsel %vm1784, %v1936, 0.0
      %2011 = vadd.xlane.f32.xlu0 %v2010
      %v2012 = vpop.xlane.xlu0 %2011
      %v2013 = vsel %vm1784, %v1938, 0.0
      %2014 = vadd.xlane.f32.xlu0 %v2013
      %v2015 = vpop.xlane.xlu0 %2014
      %v2016 = vsel %vm1784, %v1940, 0.0
      %2017 = vadd.xlane.f32.xlu0 %v2016
      %v2018 = vpop.xlane.xlu0 %2017
      %v2019 = vsel %vm1784, %v1942, 0.0
      %2020 = vadd.xlane.f32.xlu0 %v2019
      %v2021 = vpop.xlane.xlu0 %2020
      %v2022 = vsel %vm1784, %v1944, 0.0
      %2023 = vadd.xlane.f32.xlu0 %v2022
      %v2024 = vpop.xlane.xlu0 %2023
      %v2025 = vsel %vm1784, %v1946, 0.0
      %2026 = vadd.xlane.f32.xlu0 %v2025
      %v2027 = vpop.xlane.xlu0 %2026
      %v2028 = vsel %vm1784, %v1948, 0.0
      %2029 = vadd.xlane.f32.xlu0 %v2028
      %v2030 = vpop.xlane.xlu0 %2029
      %v2031 = vsel %vm1784, %v1950, 0.0
      %2032 = vadd.xlane.f32.xlu0 %v2031
      %v2033 = vpop.xlane.xlu0 %2032
      %v2034 = vsel %vm1784, %v1952, 0.0
      %2035 = vadd.xlane.f32.xlu0 %v2034
      %v2036 = vpop.xlane.xlu0 %2035
      %v2037 = vsel %vm1784, %v1954, 0.0
      %2038 = vadd.xlane.f32.xlu0 %v2037
      %v2039 = vpop.xlane.xlu0 %2038
      %v2040 = vsel %vm1784, %v1956, 0.0
      %2041 = vadd.xlane.f32.xlu0 %v2040
      %v2042 = vpop.xlane.xlu0 %2041
      %v2043 = vsel %vm1784, %v1958, 0.0
      %2044 = vadd.xlane.f32.xlu0 %v2043
      %v2045 = vpop.xlane.xlu0 %2044
      %v2046 = vsel %vm1784, %v1960, 0.0
      %2047 = vadd.xlane.f32.xlu0 %v2046
      %v2048 = vpop.xlane.xlu0 %2047
      %v2049 = vsel %vm1784, %v1962, 0.0
      %2050 = vadd.xlane.f32.xlu0 %v2049
      %v2051 = vpop.xlane.xlu0 %2050
      %v2052 = vsel %vm1784, %v1964, 0.0
      %2053 = vadd.xlane.f32.xlu0 %v2052
      %v2054 = vpop.xlane.xlu0 %2053
      %v2055 = vsel %vm1784, %v1966, 0.0
      %2056 = vadd.xlane.f32.xlu0 %v2055
      %v2057 = vpop.xlane.xlu0 %2056
      %v2058 = vsel %vm1784, %v1968, 0.0
      %2059 = vadd.xlane.f32.xlu0 %v2058
      %v2060 = vpop.xlane.xlu0 %2059
      %v2061 = vsel %vm1784, %v1970, 0.0
      %2062 = vadd.xlane.f32.xlu0 %v2061
      %v2063 = vpop.xlane.xlu0 %2062
      %v2064 = vsel %vm1784, %v1972, 0.0
      %2065 = vadd.xlane.f32.xlu0 %v2064
      %v2066 = vpop.xlane.xlu0 %2065
      %v2067 = vsel %vm1784, %v1974, 0.0
      %2068 = vadd.xlane.f32.xlu0 %v2067
      %v2069 = vpop.xlane.xlu0 %2068
      %v2070 = vsel %vm1784, %v1976, 0.0
      %2071 = vadd.xlane.f32.xlu0 %v2070
      %v2072 = vpop.xlane.xlu0 %2071
      %v2073 = vrcp.pop %v1979
      %v2074 = vrcp.pop %v1982
      %v2075 = vrcp.pop %v1985
      %v2076 = vrcp.pop %v1988
      %v2077 = vrcp.pop %v1991
      %v2078 = vrcp.pop %v1994
      %v2079 = vrcp.pop %v1997
      %v2080 = vrcp.pop %v2000
      %v2081 = vrcp.pop %v2003
      %v2082 = vrcp.pop %v2006
      %v2083 = vrcp.pop %v2009
      %v2084 = vrcp.pop %v2012
      %v2085 = vrcp.pop %v2015
      %v2086 = vrcp.pop %v2018
      %v2087 = vrcp.pop %v2021
      %v2088 = vrcp.pop %v2024
      %v2089 = vrcp.pop %v2027
      %v2090 = vrcp.pop %v2030
      %v2091 = vrcp.pop %v2033
      %v2092 = vrcp.pop %v2036
      %v2093 = vrcp.pop %v2039
      %v2094 = vrcp.pop %v2042
      %v2095 = vrcp.pop %v2045
      %v2096 = vrcp.pop %v2048
      %v2097 = vrcp.pop %v2051
      %v2098 = vrcp.pop %v2054
      %v2099 = vrcp.pop %v2057
      %v2100 = vrcp.pop %v2060
      %v2101 = vrcp.pop %v2063
      %v2102 = vrcp.pop %v2066
      %v2103 = vrcp.pop %v2069
      %v2104 = vrcp.pop %v2072
      %v2105 = vmul.f32 %v1914, %v2073
      %v2106 = vmul.f32 %v1916, %v2074
      %v2107 = vmul.f32 %v1918, %v2075
      %v2108 = vmul.f32 %v1920, %v2076
      %v2109 = vmul.f32 %v1922, %v2077
      %v2110 = vmul.f32 %v1924, %v2078
      %v2111 = vmul.f32 %v1926, %v2079
      %v2112 = vmul.f32 %v1928, %v2080
      %v2113 = vmul.f32 %v1930, %v2081
      %v2114 = vmul.f32 %v1932, %v2082
      %v2115 = vmul.f32 %v1934, %v2083
      %v2116 = vmul.f32 %v1936, %v2084
      %v2117 = vmul.f32 %v1938, %v2085
      %v2118 = vmul.f32 %v1940, %v2086
      %v2119 = vmul.f32 %v1942, %v2087
      %v2120 = vmul.f32 %v1944, %v2088
      %v2121 = vmul.f32 %v1946, %v2089
      %v2122 = vmul.f32 %v1948, %v2090
      %v2123 = vmul.f32 %v1950, %v2091
      %v2124 = vmul.f32 %v1952, %v2092
      %v2125 = vmul.f32 %v1954, %v2093
      %v2126 = vmul.f32 %v1956, %v2094
      %v2127 = vmul.f32 %v1958, %v2095
      %v2128 = vmul.f32 %v1960, %v2096
      %v2129 = vmul.f32 %v1962, %v2097
      %v2130 = vmul.f32 %v1964, %v2098
      %v2131 = vmul.f32 %v1966, %v2099
      %v2132 = vmul.f32 %v1968, %v2100
      %v2133 = vmul.f32 %v1970, %v2101
      %v2134 = vmul.f32 %v1972, %v2102
      %v2135 = vmul.f32 %v1974, %v2103
      %v2136 = vmul.f32 %v1976, %v2104
      %v2137 = vpack.c.bf16 %v2105, %v2105
      %v2138 = vpack.c.bf16 %v2106, %v2106
      %v2139 = vpack.c.bf16 %v2107, %v2107
      %v2140 = vpack.c.bf16 %v2108, %v2108
      %v2141 = vpack.c.bf16 %v2109, %v2109
      %v2142 = vpack.c.bf16 %v2110, %v2110
      %v2143 = vpack.c.bf16 %v2111, %v2111
      %v2144 = vpack.c.bf16 %v2112, %v2112
      %v2145 = vpack.c.bf16 %v2113, %v2113
      %v2146 = vpack.c.bf16 %v2114, %v2114
      %v2147 = vpack.c.bf16 %v2115, %v2115
      %v2148 = vpack.c.bf16 %v2116, %v2116
      %v2149 = vpack.c.bf16 %v2117, %v2117
      %v2150 = vpack.c.bf16 %v2118, %v2118
      %v2151 = vpack.c.bf16 %v2119, %v2119
      %v2152 = vpack.c.bf16 %v2120, %v2120
      %v2153 = vpack.c.bf16 %v2121, %v2121
      %v2154 = vpack.c.bf16 %v2122, %v2122
      %v2155 = vpack.c.bf16 %v2123, %v2123
      %v2156 = vpack.c.bf16 %v2124, %v2124
      %v2157 = vpack.c.bf16 %v2125, %v2125
      %v2158 = vpack.c.bf16 %v2126, %v2126
      %v2159 = vpack.c.bf16 %v2127, %v2127
      %v2160 = vpack.c.bf16 %v2128, %v2128
      %v2161 = vpack.c.bf16 %v2129, %v2129
      %v2162 = vpack.c.bf16 %v2130, %v2130
      %v2163 = vpack.c.bf16 %v2131, %v2131
      %v2164 = vpack.c.bf16 %v2132, %v2132
      %v2165 = vpack.c.bf16 %v2133, %v2133
      %v2166 = vpack.c.bf16 %v2134, %v2134
      %v2167 = vpack.c.bf16 %v2135, %v2135
      %v2168 = vpack.c.bf16 %v2136, %v2136
      %v2177 = vunpack.c.l.b16 %v2137
      %v2178 = vunpack.c.l.b16 %v2138
      %v2179 = vunpack.c.l.b16 %v2139
      %v2180 = vunpack.c.l.b16 %v2140
      %v2181 = vunpack.c.l.b16 %v2141
      %v2182 = vunpack.c.l.b16 %v2142
      %v2183 = vunpack.c.l.b16 %v2143
      %v2184 = vunpack.c.l.b16 %v2144
      %v2185 = vpack.c.b16 %v2178, %v2177
      %v2186 = vpack.c.b16 %v2180, %v2179
      %v2187 = vpack.c.b16 %v2182, %v2181
      %v2188 = vpack.c.b16 %v2184, %v2183
      %2189 = vrot.lane.b32.xlu0 %v1443, 64
      %v2190 = vpop.permute.xlu0 %2189
      %2191 = vrot.lane.b32.xlu0 %v1444, 64
      %v2192 = vpop.permute.xlu0 %2191
      %2193 = vrot.lane.b32.xlu0 %v1445, 64
      %v2194 = vpop.permute.xlu0 %2193
      %2195 = vrot.lane.b32.xlu0 %v1446, 64
      %v2196 = vpop.permute.xlu0 %2195
      %v2202 = vsel %vm1784, %v2185, 0
      %v2205 = vsel %vm1784, %v2186, 0
      %v2208 = vsel %vm1784, %v2187, 0
      %v2211 = vsel %vm1784, %v2188, 0
      %2213 = vmatpush.bf16.msra.mxu0 0
      %2214 = vmatpush.bf16.msra.mxu0 0
      %2215 = vmatpush.bf16.msra.mxu0 0
      %2216 = vmatpush.bf16.msra.mxu0 0
      %2217 = vmatpush.bf16.msra.mxu0 %v2196
      %2218 = vmatpush.bf16.msra.mxu0 %v2194
      %2219 = vmatpush.bf16.msra.mxu0 %v2192
      %2220 = vmatpush.bf16.msra.mxu0 %v2190
      %2221 = vmatmul.bf16.gmra.mxu0 %v2202
      %v2222 = vpop.f32.mrf.mxu0
      %v2223 = vadd.f32 0.0, %v2222
      %v2224 = vpop.f32.mrf.mxu0
      %v2225 = vadd.f32 0.0, %v2224
      %2226 = vmatmul.bf16.gmra.mxu0 %v2205
      %v2227 = vpop.f32.mrf.mxu0
      %v2228 = vadd.f32 0.0, %v2227
      %v2229 = vpop.f32.mrf.mxu0
      %v2230 = vadd.f32 0.0, %v2229
      %2231 = vmatmul.bf16.gmra.mxu0 %v2208
      %v2232 = vpop.f32.mrf.mxu0
      %v2233 = vadd.f32 0.0, %v2232
      %v2234 = vpop.f32.mrf.mxu0
      %v2235 = vadd.f32 0.0, %v2234
      %2236 = vmatmul.bf16.gmra.mxu0 %v2211
      %v2237 = vpop.f32.mrf.mxu0
      %v2238 = vadd.f32 0.0, %v2237
      %v2239 = vpop.f32.mrf.mxu0
      %v2240 = vadd.f32 0.0, %v2239
      %2241 = vdwg.mxu0
      %v2250 = vunpack.c.l.b16 %v2145
      %v2251 = vunpack.c.l.b16 %v2146
      %v2252 = vunpack.c.l.b16 %v2147
      %v2253 = vunpack.c.l.b16 %v2148
      %v2254 = vunpack.c.l.b16 %v2149
      %v2255 = vunpack.c.l.b16 %v2150
      %v2256 = vunpack.c.l.b16 %v2151
      %v2257 = vunpack.c.l.b16 %v2152
      %v2258 = vpack.c.b16 %v2251, %v2250
      %v2259 = vpack.c.b16 %v2253, %v2252
      %v2260 = vpack.c.b16 %v2255, %v2254
      %v2261 = vpack.c.b16 %v2257, %v2256
      %2262 = vrot.lane.b32.xlu0 %v1525, 64
      %v2263 = vpop.permute.xlu0 %2262
      %2264 = vrot.lane.b32.xlu0 %v1526, 64
      %v2265 = vpop.permute.xlu0 %2264
      %2266 = vrot.lane.b32.xlu0 %v1527, 64
      %v2267 = vpop.permute.xlu0 %2266
      %2268 = vrot.lane.b32.xlu0 %v1528, 64
      %v2269 = vpop.permute.xlu0 %2268
      %v2275 = vsel %vm1784, %v2258, 0
      %v2278 = vsel %vm1784, %v2259, 0
      %v2281 = vsel %vm1784, %v2260, 0
      %v2284 = vsel %vm1784, %v2261, 0
      %2286 = vmatpush.bf16.msra.mxu0 0
      %2287 = vmatpush.bf16.msra.mxu0 0
      %2288 = vmatpush.bf16.msra.mxu0 0
      %2289 = vmatpush.bf16.msra.mxu0 0
      %2290 = vmatpush.bf16.msra.mxu0 %v2269
      %2291 = vmatpush.bf16.msra.mxu0 %v2267
      %2292 = vmatpush.bf16.msra.mxu0 %v2265
      %2293 = vmatpush.bf16.msra.mxu0 %v2263
      %2294 = vmatmul.bf16.gmra.mxu0 %v2275
      %v2295 = vpop.f32.mrf.mxu0
      %v2296 = vadd.f32 0.0, %v2295
      %v2297 = vpop.f32.mrf.mxu0
      %v2298 = vadd.f32 0.0, %v2297
      %2299 = vmatmul.bf16.gmra.mxu0 %v2278
      %v2300 = vpop.f32.mrf.mxu0
      %v2301 = vadd.f32 0.0, %v2300
      %v2302 = vpop.f32.mrf.mxu0
      %v2303 = vadd.f32 0.0, %v2302
      %2304 = vmatmul.bf16.gmra.mxu0 %v2281
      %v2305 = vpop.f32.mrf.mxu0
      %v2306 = vadd.f32 0.0, %v2305
      %v2307 = vpop.f32.mrf.mxu0
      %v2308 = vadd.f32 0.0, %v2307
      %2309 = vmatmul.bf16.gmra.mxu0 %v2284
      %v2310 = vpop.f32.mrf.mxu0
      %v2311 = vadd.f32 0.0, %v2310
      %v2312 = vpop.f32.mrf.mxu0
      %v2313 = vadd.f32 0.0, %v2312
      %2314 = vdwg.mxu0
      %v2323 = vunpack.c.l.b16 %v2153
      %v2324 = vunpack.c.l.b16 %v2154
      %v2325 = vunpack.c.l.b16 %v2155
      %v2326 = vunpack.c.l.b16 %v2156
      %v2327 = vunpack.c.l.b16 %v2157
      %v2328 = vunpack.c.l.b16 %v2158
      %v2329 = vunpack.c.l.b16 %v2159
      %v2330 = vunpack.c.l.b16 %v2160
      %v2331 = vpack.c.b16 %v2324, %v2323
      %v2332 = vpack.c.b16 %v2326, %v2325
      %v2333 = vpack.c.b16 %v2328, %v2327
      %v2334 = vpack.c.b16 %v2330, %v2329
      %2335 = vrot.lane.b32.xlu0 %v1606, 64
      %v2336 = vpop.permute.xlu0 %2335
      %2337 = vrot.lane.b32.xlu0 %v1607, 64
      %v2338 = vpop.permute.xlu0 %2337
      %2339 = vrot.lane.b32.xlu0 %v1608, 64
      %v2340 = vpop.permute.xlu0 %2339
      %2341 = vrot.lane.b32.xlu0 %v1609, 64
      %v2342 = vpop.permute.xlu0 %2341
      %v2348 = vsel %vm1784, %v2331, 0
      %v2351 = vsel %vm1784, %v2332, 0
      %v2354 = vsel %vm1784, %v2333, 0
      %v2357 = vsel %vm1784, %v2334, 0
      %2359 = vmatpush.bf16.msra.mxu0 0
      %2360 = vmatpush.bf16.msra.mxu0 0
      %2361 = vmatpush.bf16.msra.mxu0 0
      %2362 = vmatpush.bf16.msra.mxu0 0
      %2363 = vmatpush.bf16.msra.mxu0 %v2342
      %2364 = vmatpush.bf16.msra.mxu0 %v2340
      %2365 = vmatpush.bf16.msra.mxu0 %v2338
      %2366 = vmatpush.bf16.msra.mxu0 %v2336
      %2367 = vmatmul.bf16.gmra.mxu0 %v2348
      %v2368 = vpop.f32.mrf.mxu0
      %v2369 = vadd.f32 0.0, %v2368
      %v2370 = vpop.f32.mrf.mxu0
      %v2371 = vadd.f32 0.0, %v2370
      %2372 = vmatmul.bf16.gmra.mxu0 %v2351
      %v2373 = vpop.f32.mrf.mxu0
      %v2374 = vadd.f32 0.0, %v2373
      %v2375 = vpop.f32.mrf.mxu0
      %v2376 = vadd.f32 0.0, %v2375
      %2377 = vmatmul.bf16.gmra.mxu0 %v2354
      %v2378 = vpop.f32.mrf.mxu0
      %v2379 = vadd.f32 0.0, %v2378
      %v2380 = vpop.f32.mrf.mxu0
      %v2381 = vadd.f32 0.0, %v2380
      %2382 = vmatmul.bf16.gmra.mxu0 %v2357
      %v2383 = vpop.f32.mrf.mxu0
      %v2384 = vadd.f32 0.0, %v2383
      %v2385 = vpop.f32.mrf.mxu0
      %v2386 = vadd.f32 0.0, %v2385
      %2387 = vdwg.mxu0
      %v2396 = vunpack.c.l.b16 %v2161
      %v2397 = vunpack.c.l.b16 %v2162
      %v2398 = vunpack.c.l.b16 %v2163
      %v2399 = vunpack.c.l.b16 %v2164
      %v2400 = vunpack.c.l.b16 %v2165
      %v2401 = vunpack.c.l.b16 %v2166
      %v2402 = vunpack.c.l.b16 %v2167
      %v2403 = vunpack.c.l.b16 %v2168
      %v2404 = vpack.c.b16 %v2397, %v2396
      %v2405 = vpack.c.b16 %v2399, %v2398
      %v2406 = vpack.c.b16 %v2401, %v2400
      %v2407 = vpack.c.b16 %v2403, %v2402
      %2408 = vrot.lane.b32.xlu0 %v1687, 64
      %v2409 = vpop.permute.xlu0 %2408
      %2410 = vrot.lane.b32.xlu0 %v1688, 64
      %v2411 = vpop.permute.xlu0 %2410
      %2412 = vrot.lane.b32.xlu0 %v1689, 64
      %v2413 = vpop.permute.xlu0 %2412
      %2414 = vrot.lane.b32.xlu0 %v1690, 64
      %v2415 = vpop.permute.xlu0 %2414
      %v2421 = vsel %vm1784, %v2404, 0
      %v2424 = vsel %vm1784, %v2405, 0
      %v2427 = vsel %vm1784, %v2406, 0
      %v2430 = vsel %vm1784, %v2407, 0
      %2432 = vmatpush.bf16.msra.mxu0 0
      %2433 = vmatpush.bf16.msra.mxu0 0
      %2434 = vmatpush.bf16.msra.mxu0 0
      %2435 = vmatpush.bf16.msra.mxu0 0
      %2436 = vmatpush.bf16.msra.mxu0 %v2415
      %2437 = vmatpush.bf16.msra.mxu0 %v2413
      %2438 = vmatpush.bf16.msra.mxu0 %v2411
      %2439 = vmatpush.bf16.msra.mxu0 %v2409
      %2440 = vmatmul.bf16.gmra.mxu0 %v2421
      %v2441 = vpop.f32.mrf.mxu0
      %v2442 = vadd.f32 0.0, %v2441
      %v2443 = vpop.f32.mrf.mxu0
      %v2444 = vadd.f32 0.0, %v2443
      %2445 = vmatmul.bf16.gmra.mxu0 %v2424
      %v2446 = vpop.f32.mrf.mxu0
      %v2447 = vadd.f32 0.0, %v2446
      %v2448 = vpop.f32.mrf.mxu0
      %v2449 = vadd.f32 0.0, %v2448
      %2450 = vmatmul.bf16.gmra.mxu0 %v2427
      %v2451 = vpop.f32.mrf.mxu0
      %v2452 = vadd.f32 0.0, %v2451
      %v2453 = vpop.f32.mrf.mxu0
      %v2454 = vadd.f32 0.0, %v2453
      %2455 = vmatmul.bf16.gmra.mxu0 %v2430
      %v2456 = vpop.f32.mrf.mxu0
      %v2457 = vadd.f32 0.0, %v2456
      %v2458 = vpop.f32.mrf.mxu0
      %v2459 = vadd.f32 0.0, %v2458
      %2460 = vdwg.mxu0
      %2461 = vrot.lane.b32.xlu0 %v1443, 120
      %v2462 = vpop.permute.xlu0 %2461
      %2463 = vrot.lane.b32.xlu0 %v1444, 120
      %v2464 = vpop.permute.xlu0 %2463
      %2465 = vrot.lane.b32.xlu0 %v1445, 120
      %v2466 = vpop.permute.xlu0 %2465
      %2467 = vrot.lane.b32.xlu0 %v1446, 120
      %v2468 = vpop.permute.xlu0 %2467
      %2469 = vrot.lane.b32.xlu0 %v1443, 88
      %v2470 = vpop.permute.xlu0 %2469
      %2471 = vrot.lane.b32.xlu0 %v1444, 88
      %v2472 = vpop.permute.xlu0 %2471
      %2473 = vrot.lane.b32.xlu0 %v1445, 88
      %v2474 = vpop.permute.xlu0 %2473
      %2475 = vrot.lane.b32.xlu0 %v1446, 88
      %v2476 = vpop.permute.xlu0 %2475
      %v2478 = vsel %vm1455, %v2462, 0
      %v2481 = vsel %vm1455, %v2464, 0
      %v2484 = vsel %vm1455, %v2466, 0
      %v2487 = vsel %vm1455, %v2468, 0
      %v2490 = vsel %vm1455, %v2470, 0
      %v2493 = vsel %vm1455, %v2472, 0
      %v2496 = vsel %vm1455, %v2474, 0
      %v2499 = vsel %vm1455, %v2476, 0
      %2501 = vmatpush.bf16.xpose.msra.mxu0 0
      %2502 = vmatpush.bf16.xpose.msra.mxu0 0
      %2503 = vmatpush.bf16.xpose.msra.mxu0 0
      %2504 = vmatpush.bf16.xpose.msra.mxu0 0
      %2505 = vmatpush.bf16.xpose.msra.mxu0 %v2499
      %2506 = vmatpush.bf16.xpose.msra.mxu0 %v2496
      %2507 = vmatpush.bf16.xpose.msra.mxu0 %v2493
      %2508 = vmatpush.bf16.xpose.msra.mxu0 %v2490
      %2509 = vmatmul.bf16.gmra.mxu0 %v2478
      %v2510 = vpop.f32.mrf.mxu0
      %v2511 = vadd.f32 %v1339, %v2510
      %v2512 = vpop.f32.mrf.mxu0
      %v2513 = vadd.f32 %v1340, %v2512
      %2514 = vmatmul.bf16.gmra.mxu0 %v2481
      %v2515 = vpop.f32.mrf.mxu0
      %v2516 = vadd.f32 %v1341, %v2515
      %v2517 = vpop.f32.mrf.mxu0
      %v2518 = vadd.f32 %v1342, %v2517
      %2519 = vmatmul.bf16.gmra.mxu0 %v2484
      %v2520 = vpop.f32.mrf.mxu0
      %v2521 = vadd.f32 %v1343, %v2520
      %v2522 = vpop.f32.mrf.mxu0
      %v2523 = vadd.f32 %v1344, %v2522
      %2524 = vmatmul.bf16.gmra.mxu0 %v2487
      %v2525 = vpop.f32.mrf.mxu0
      %v2526 = vadd.f32 %v1345, %v2525
      %v2527 = vpop.f32.mrf.mxu0
      %v2528 = vadd.f32 %v1346, %v2527
      %2529 = vdwg.mxu0
      %2530 = vrot.lane.b32.xlu0 %v1525, 120
      %v2531 = vpop.permute.xlu0 %2530
      %2532 = vrot.lane.b32.xlu0 %v1526, 120
      %v2533 = vpop.permute.xlu0 %2532
      %2534 = vrot.lane.b32.xlu0 %v1527, 120
      %v2535 = vpop.permute.xlu0 %2534
      %2536 = vrot.lane.b32.xlu0 %v1528, 120
      %v2537 = vpop.permute.xlu0 %2536
      %2538 = vrot.lane.b32.xlu0 %v1525, 88
      %v2539 = vpop.permute.xlu0 %2538
      %2540 = vrot.lane.b32.xlu0 %v1526, 88
      %v2541 = vpop.permute.xlu0 %2540
      %2542 = vrot.lane.b32.xlu0 %v1527, 88
      %v2543 = vpop.permute.xlu0 %2542
      %2544 = vrot.lane.b32.xlu0 %v1528, 88
      %v2545 = vpop.permute.xlu0 %2544
      %v2547 = vsel %vm1455, %v2531, 0
      %v2550 = vsel %vm1455, %v2533, 0
      %v2553 = vsel %vm1455, %v2535, 0
      %v2556 = vsel %vm1455, %v2537, 0
      %v2559 = vsel %vm1455, %v2539, 0
      %v2562 = vsel %vm1455, %v2541, 0
      %v2565 = vsel %vm1455, %v2543, 0
      %v2568 = vsel %vm1455, %v2545, 0
      %2570 = vmatpush.bf16.xpose.msra.mxu0 0
      %2571 = vmatpush.bf16.xpose.msra.mxu0 0
      %2572 = vmatpush.bf16.xpose.msra.mxu0 0
      %2573 = vmatpush.bf16.xpose.msra.mxu0 0
      %2574 = vmatpush.bf16.xpose.msra.mxu0 %v2568
      %2575 = vmatpush.bf16.xpose.msra.mxu0 %v2565
      %2576 = vmatpush.bf16.xpose.msra.mxu0 %v2562
      %2577 = vmatpush.bf16.xpose.msra.mxu0 %v2559
      %2578 = vmatmul.bf16.gmra.mxu0 %v2547
      %v2579 = vpop.f32.mrf.mxu0
      %v2580 = vadd.f32 %v1339, %v2579
      %v2581 = vpop.f32.mrf.mxu0
      %v2582 = vadd.f32 %v1340, %v2581
      %2583 = vmatmul.bf16.gmra.mxu0 %v2550
      %v2584 = vpop.f32.mrf.mxu0
      %v2585 = vadd.f32 %v1341, %v2584
      %v2586 = vpop.f32.mrf.mxu0
      %v2587 = vadd.f32 %v1342, %v2586
      %2588 = vmatmul.bf16.gmra.mxu0 %v2553
      %v2589 = vpop.f32.mrf.mxu0
      %v2590 = vadd.f32 %v1343, %v2589
      %v2591 = vpop.f32.mrf.mxu0
      %v2592 = vadd.f32 %v1344, %v2591
      %2593 = vmatmul.bf16.gmra.mxu0 %v2556
      %v2594 = vpop.f32.mrf.mxu0
      %v2595 = vadd.f32 %v1345, %v2594
      %v2596 = vpop.f32.mrf.mxu0
      %v2597 = vadd.f32 %v1346, %v2596
      %2598 = vdwg.mxu0
      %2599 = vrot.lane.b32.xlu0 %v1606, 120
      %v2600 = vpop.permute.xlu0 %2599
      %2601 = vrot.lane.b32.xlu0 %v1607, 120
      %v2602 = vpop.permute.xlu0 %2601
      %2603 = vrot.lane.b32.xlu0 %v1608, 120
      %v2604 = vpop.permute.xlu0 %2603
      %2605 = vrot.lane.b32.xlu0 %v1609, 120
      %v2606 = vpop.permute.xlu0 %2605
      %2607 = vrot.lane.b32.xlu0 %v1606, 88
      %v2608 = vpop.permute.xlu0 %2607
      %2609 = vrot.lane.b32.xlu0 %v1607, 88
      %v2610 = vpop.permute.xlu0 %2609
      %2611 = vrot.lane.b32.xlu0 %v1608, 88
      %v2612 = vpop.permute.xlu0 %2611
      %2613 = vrot.lane.b32.xlu0 %v1609, 88
      %v2614 = vpop.permute.xlu0 %2613
      %v2616 = vsel %vm1455, %v2600, 0
      %v2619 = vsel %vm1455, %v2602, 0
      %v2622 = vsel %vm1455, %v2604, 0
      %v2625 = vsel %vm1455, %v2606, 0
      %v2628 = vsel %vm1455, %v2608, 0
      %v2631 = vsel %vm1455, %v2610, 0
      %v2634 = vsel %vm1455, %v2612, 0
      %v2637 = vsel %vm1455, %v2614, 0
      %2639 = vmatpush.bf16.xpose.msra.mxu0 0
      %2640 = vmatpush.bf16.xpose.msra.mxu0 0
      %2641 = vmatpush.bf16.xpose.msra.mxu0 0
      %2642 = vmatpush.bf16.xpose.msra.mxu0 0
      %2643 = vmatpush.bf16.xpose.msra.mxu0 %v2637
      %2644 = vmatpush.bf16.xpose.msra.mxu0 %v2634
      %2645 = vmatpush.bf16.xpose.msra.mxu0 %v2631
      %2646 = vmatpush.bf16.xpose.msra.mxu0 %v2628
      %2647 = vmatmul.bf16.gmra.mxu0 %v2616
      %v2648 = vpop.f32.mrf.mxu0
      %v2649 = vadd.f32 %v1339, %v2648
      %v2650 = vpop.f32.mrf.mxu0
      %v2651 = vadd.f32 %v1340, %v2650
      %2652 = vmatmul.bf16.gmra.mxu0 %v2619
      %v2653 = vpop.f32.mrf.mxu0
      %v2654 = vadd.f32 %v1341, %v2653
      %v2655 = vpop.f32.mrf.mxu0
      %v2656 = vadd.f32 %v1342, %v2655
      %2657 = vmatmul.bf16.gmra.mxu0 %v2622
      %v2658 = vpop.f32.mrf.mxu0
      %v2659 = vadd.f32 %v1343, %v2658
      %v2660 = vpop.f32.mrf.mxu0
      %v2661 = vadd.f32 %v1344, %v2660
      %2662 = vmatmul.bf16.gmra.mxu0 %v2625
      %v2663 = vpop.f32.mrf.mxu0
      %v2664 = vadd.f32 %v1345, %v2663
      %v2665 = vpop.f32.mrf.mxu0
      %v2666 = vadd.f32 %v1346, %v2665
      %2667 = vdwg.mxu0
      %2668 = vrot.lane.b32.xlu0 %v1687, 120
      %v2669 = vpop.permute.xlu0 %2668
      %2670 = vrot.lane.b32.xlu0 %v1688, 120
      %v2671 = vpop.permute.xlu0 %2670
      %2672 = vrot.lane.b32.xlu0 %v1689, 120
      %v2673 = vpop.permute.xlu0 %2672
      %2674 = vrot.lane.b32.xlu0 %v1690, 120
      %v2675 = vpop.permute.xlu0 %2674
      %2676 = vrot.lane.b32.xlu0 %v1687, 88
      %v2677 = vpop.permute.xlu0 %2676
      %2678 = vrot.lane.b32.xlu0 %v1688, 88
      %v2679 = vpop.permute.xlu0 %2678
      %2680 = vrot.lane.b32.xlu0 %v1689, 88
      %v2681 = vpop.permute.xlu0 %2680
      %2682 = vrot.lane.b32.xlu0 %v1690, 88
      %v2683 = vpop.permute.xlu0 %2682
      %v2685 = vsel %vm1455, %v2669, 0
      %v2688 = vsel %vm1455, %v2671, 0
      %v2691 = vsel %vm1455, %v2673, 0
      %v2694 = vsel %vm1455, %v2675, 0
      %v2697 = vsel %vm1455, %v2677, 0
      %v2700 = vsel %vm1455, %v2679, 0
      %v2703 = vsel %vm1455, %v2681, 0
      %v2706 = vsel %vm1455, %v2683, 0
      %2708 = vmatpush.bf16.xpose.msra.mxu0 0
      %2709 = vmatpush.bf16.xpose.msra.mxu0 0
      %2710 = vmatpush.bf16.xpose.msra.mxu0 0
      %2711 = vmatpush.bf16.xpose.msra.mxu0 0
      %2712 = vmatpush.bf16.xpose.msra.mxu0 %v2706
      %2713 = vmatpush.bf16.xpose.msra.mxu0 %v2703
      %2714 = vmatpush.bf16.xpose.msra.mxu0 %v2700
      %2715 = vmatpush.bf16.xpose.msra.mxu0 %v2697
      %2716 = vmatmul.bf16.gmra.mxu0 %v2685
      %v2717 = vpop.f32.mrf.mxu0
      %v2718 = vadd.f32 %v1339, %v2717
      %v2719 = vpop.f32.mrf.mxu0
      %v2720 = vadd.f32 %v1340, %v2719
      %2721 = vmatmul.bf16.gmra.mxu0 %v2688
      %v2722 = vpop.f32.mrf.mxu0
      %v2723 = vadd.f32 %v1341, %v2722
      %v2724 = vpop.f32.mrf.mxu0
      %v2725 = vadd.f32 %v1342, %v2724
      %2726 = vmatmul.bf16.gmra.mxu0 %v2691
      %v2727 = vpop.f32.mrf.mxu0
      %v2728 = vadd.f32 %v1343, %v2727
      %v2729 = vpop.f32.mrf.mxu0
      %v2730 = vadd.f32 %v1344, %v2729
      %2731 = vmatmul.bf16.gmra.mxu0 %v2694
      %v2732 = vpop.f32.mrf.mxu0
      %v2733 = vadd.f32 %v1345, %v2732
      %v2734 = vpop.f32.mrf.mxu0
      %v2735 = vadd.f32 %v1346, %v2734
      %2736 = vdwg.mxu0
      %v2737 = vadd.f32 %v2511, %v1363
      %v2738 = vadd.f32 %v2513, %v1364
      %v2739 = vadd.f32 %v2516, %v1365
      %v2740 = vadd.f32 %v2518, %v1366
      %v2741 = vadd.f32 %v2521, %v1367
      %v2742 = vadd.f32 %v2523, %v1368
      %v2743 = vadd.f32 %v2526, %v1369
      %v2744 = vadd.f32 %v2528, %v1370
      %v2745 = vadd.f32 %v2580, %v1371
      %v2746 = vadd.f32 %v2582, %v1372
      %v2747 = vadd.f32 %v2585, %v1373
      %v2748 = vadd.f32 %v2587, %v1374
      %v2749 = vadd.f32 %v2590, %v1375
      %v2750 = vadd.f32 %v2592, %v1376
      %v2751 = vadd.f32 %v2595, %v1377
      %v2752 = vadd.f32 %v2597, %v1378
      %v2753 = vadd.f32 %v2649, %v1379
      %v2754 = vadd.f32 %v2651, %v1380
      %v2755 = vadd.f32 %v2654, %v1381
      %v2756 = vadd.f32 %v2656, %v1382
      %v2757 = vadd.f32 %v2659, %v1383
      %v2758 = vadd.f32 %v2661, %v1384
      %v2759 = vadd.f32 %v2664, %v1385
      %v2760 = vadd.f32 %v2666, %v1386
      %v2761 = vadd.f32 %v2718, %v1387
      %v2762 = vadd.f32 %v2720, %v1388
      %v2763 = vadd.f32 %v2723, %v1389
      %v2764 = vadd.f32 %v2725, %v1390
      %v2765 = vadd.f32 %v2728, %v1391
      %v2766 = vadd.f32 %v2730, %v1392
      %v2767 = vadd.f32 %v2733, %v1393
      %v2768 = vadd.f32 %v2735, %v1394
      %v2769 = vsel %vm1784, %v2737, -inf
      %2770 = vmax.xlane.f32.xlu0 %v2769
      %v2771 = vpop.xlane.xlu0 %2770
      %v2772 = vsel %vm1784, %v2738, -inf
      %2773 = vmax.xlane.f32.xlu0 %v2772
      %v2774 = vpop.xlane.xlu0 %2773
      %v2775 = vsel %vm1784, %v2739, -inf
      %2776 = vmax.xlane.f32.xlu0 %v2775
      %v2777 = vpop.xlane.xlu0 %2776
      %v2778 = vsel %vm1784, %v2740, -inf
      %2779 = vmax.xlane.f32.xlu0 %v2778
      %v2780 = vpop.xlane.xlu0 %2779
      %v2781 = vsel %vm1784, %v2741, -inf
      %2782 = vmax.xlane.f32.xlu0 %v2781
      %v2783 = vpop.xlane.xlu0 %2782
      %v2784 = vsel %vm1784, %v2742, -inf
      %2785 = vmax.xlane.f32.xlu0 %v2784
      %v2786 = vpop.xlane.xlu0 %2785
      %v2787 = vsel %vm1784, %v2743, -inf
      %2788 = vmax.xlane.f32.xlu0 %v2787
      %v2789 = vpop.xlane.xlu0 %2788
      %v2790 = vsel %vm1784, %v2744, -inf
      %2791 = vmax.xlane.f32.xlu0 %v2790
      %v2792 = vpop.xlane.xlu0 %2791
      %v2793 = vsel %vm1784, %v2745, -inf
      %2794 = vmax.xlane.f32.xlu0 %v2793
      %v2795 = vpop.xlane.xlu0 %2794
      %v2796 = vsel %vm1784, %v2746, -inf
      %2797 = vmax.xlane.f32.xlu0 %v2796
      %v2798 = vpop.xlane.xlu0 %2797
      %v2799 = vsel %vm1784, %v2747, -inf
      %2800 = vmax.xlane.f32.xlu0 %v2799
      %v2801 = vpop.xlane.xlu0 %2800
      %v2802 = vsel %vm1784, %v2748, -inf
      %2803 = vmax.xlane.f32.xlu0 %v2802
      %v2804 = vpop.xlane.xlu0 %2803
      %v2805 = vsel %vm1784, %v2749, -inf
      %2806 = vmax.xlane.f32.xlu0 %v2805
      %v2807 = vpop.xlane.xlu0 %2806
      %v2808 = vsel %vm1784, %v2750, -inf
      %2809 = vmax.xlane.f32.xlu0 %v2808
      %v2810 = vpop.xlane.xlu0 %2809
      %v2811 = vsel %vm1784, %v2751, -inf
      %2812 = vmax.xlane.f32.xlu0 %v2811
      %v2813 = vpop.xlane.xlu0 %2812
      %v2814 = vsel %vm1784, %v2752, -inf
      %2815 = vmax.xlane.f32.xlu0 %v2814
      %v2816 = vpop.xlane.xlu0 %2815
      %v2817 = vsel %vm1784, %v2753, -inf
      %2818 = vmax.xlane.f32.xlu0 %v2817
      %v2819 = vpop.xlane.xlu0 %2818
      %v2820 = vsel %vm1784, %v2754, -inf
      %2821 = vmax.xlane.f32.xlu0 %v2820
      %v2822 = vpop.xlane.xlu0 %2821
      %v2823 = vsel %vm1784, %v2755, -inf
      %2824 = vmax.xlane.f32.xlu0 %v2823
      %v2825 = vpop.xlane.xlu0 %2824
      %v2826 = vsel %vm1784, %v2756, -inf
      %2827 = vmax.xlane.f32.xlu0 %v2826
      %v2828 = vpop.xlane.xlu0 %2827
      %v2829 = vsel %vm1784, %v2757, -inf
      %2830 = vmax.xlane.f32.xlu0 %v2829
      %v2831 = vpop.xlane.xlu0 %2830
      %v2832 = vsel %vm1784, %v2758, -inf
      %2833 = vmax.xlane.f32.xlu0 %v2832
      %v2834 = vpop.xlane.xlu0 %2833
      %v2835 = vsel %vm1784, %v2759, -inf
      %2836 = vmax.xlane.f32.xlu0 %v2835
      %v2837 = vpop.xlane.xlu0 %2836
      %v2838 = vsel %vm1784, %v2760, -inf
      %2839 = vmax.xlane.f32.xlu0 %v2838
      %v2840 = vpop.xlane.xlu0 %2839
      %v2841 = vsel %vm1784, %v2761, -inf
      %2842 = vmax.xlane.f32.xlu0 %v2841
      %v2843 = vpop.xlane.xlu0 %2842
      %v2844 = vsel %vm1784, %v2762, -inf
      %2845 = vmax.xlane.f32.xlu0 %v2844
      %v2846 = vpop.xlane.xlu0 %2845
      %v2847 = vsel %vm1784, %v2763, -inf
      %2848 = vmax.xlane.f32.xlu0 %v2847
      %v2849 = vpop.xlane.xlu0 %2848
      %v2850 = vsel %vm1784, %v2764, -inf
      %2851 = vmax.xlane.f32.xlu0 %v2850
      %v2852 = vpop.xlane.xlu0 %2851
      %v2853 = vsel %vm1784, %v2765, -inf
      %2854 = vmax.xlane.f32.xlu0 %v2853
      %v2855 = vpop.xlane.xlu0 %2854
      %v2856 = vsel %vm1784, %v2766, -inf
      %2857 = vmax.xlane.f32.xlu0 %v2856
      %v2858 = vpop.xlane.xlu0 %2857
      %v2859 = vsel %vm1784, %v2767, -inf
      %2860 = vmax.xlane.f32.xlu0 %v2859
      %v2861 = vpop.xlane.xlu0 %2860
      %v2862 = vsel %vm1784, %v2768, -inf
      %2863 = vmax.xlane.f32.xlu0 %v2862
      %v2864 = vpop.xlane.xlu0 %2863
      %v2865 = vsub.f32 %v2737, %v2771
      %v2866 = vsub.f32 %v2738, %v2774
      %v2867 = vsub.f32 %v2739, %v2777
      %v2868 = vsub.f32 %v2740, %v2780
      %v2869 = vsub.f32 %v2741, %v2783
      %v2870 = vsub.f32 %v2742, %v2786
      %v2871 = vsub.f32 %v2743, %v2789
      %v2872 = vsub.f32 %v2744, %v2792
      %v2873 = vsub.f32 %v2745, %v2795
      %v2874 = vsub.f32 %v2746, %v2798
      %v2875 = vsub.f32 %v2747, %v2801
      %v2876 = vsub.f32 %v2748, %v2804
      %v2877 = vsub.f32 %v2749, %v2807
      %v2878 = vsub.f32 %v2750, %v2810
      %v2879 = vsub.f32 %v2751, %v2813
      %v2880 = vsub.f32 %v2752, %v2816
      %v2881 = vsub.f32 %v2753, %v2819
      %v2882 = vsub.f32 %v2754, %v2822
      %v2883 = vsub.f32 %v2755, %v2825
      %v2884 = vsub.f32 %v2756, %v2828
      %v2885 = vsub.f32 %v2757, %v2831
      %v2886 = vsub.f32 %v2758, %v2834
      %v2887 = vsub.f32 %v2759, %v2837
      %v2888 = vsub.f32 %v2760, %v2840
      %v2889 = vsub.f32 %v2761, %v2843
      %v2890 = vsub.f32 %v2762, %v2846
      %v2891 = vsub.f32 %v2763, %v2849
      %v2892 = vsub.f32 %v2764, %v2852
      %v2893 = vsub.f32 %v2765, %v2855
      %v2894 = vsub.f32 %v2766, %v2858
      %v2895 = vsub.f32 %v2767, %v2861
      %v2896 = vsub.f32 %v2768, %v2864
      %v2897 = vmul.f32 %v2865, 1.442695
      %v2898 = vpow.pop %v2897
      %v2899 = vmul.f32 %v2866, 1.442695
      %v2900 = vpow.pop %v2899
      %v2901 = vmul.f32 %v2867, 1.442695
      %v2902 = vpow.pop %v2901
      %v2903 = vmul.f32 %v2868, 1.442695
      %v2904 = vpow.pop %v2903
      %v2905 = vmul.f32 %v2869, 1.442695
      %v2906 = vpow.pop %v2905
      %v2907 = vmul.f32 %v2870, 1.442695
      %v2908 = vpow.pop %v2907
      %v2909 = vmul.f32 %v2871, 1.442695
      %v2910 = vpow.pop %v2909
      %v2911 = vmul.f32 %v2872, 1.442695
      %v2912 = vpow.pop %v2911
      %v2913 = vmul.f32 %v2873, 1.442695
      %v2914 = vpow.pop %v2913
      %v2915 = vmul.f32 %v2874, 1.442695
      %v2916 = vpow.pop %v2915
      %v2917 = vmul.f32 %v2875, 1.442695
      %v2918 = vpow.pop %v2917
      %v2919 = vmul.f32 %v2876, 1.442695
      %v2920 = vpow.pop %v2919
      %v2921 = vmul.f32 %v2877, 1.442695
      %v2922 = vpow.pop %v2921
      %v2923 = vmul.f32 %v2878, 1.442695
      %v2924 = vpow.pop %v2923
      %v2925 = vmul.f32 %v2879, 1.442695
      %v2926 = vpow.pop %v2925
      %v2927 = vmul.f32 %v2880, 1.442695
      %v2928 = vpow.pop %v2927
      %v2929 = vmul.f32 %v2881, 1.442695
      %v2930 = vpow.pop %v2929
      %v2931 = vmul.f32 %v2882, 1.442695
      %v2932 = vpow.pop %v2931
      %v2933 = vmul.f32 %v2883, 1.442695
      %v2934 = vpow.pop %v2933
      %v2935 = vmul.f32 %v2884, 1.442695
      %v2936 = vpow.pop %v2935
      %v2937 = vmul.f32 %v2885, 1.442695
      %v2938 = vpow.pop %v2937
      %v2939 = vmul.f32 %v2886, 1.442695
      %v2940 = vpow.pop %v2939
      %v2941 = vmul.f32 %v2887, 1.442695
      %v2942 = vpow.pop %v2941
      %v2943 = vmul.f32 %v2888, 1.442695
      %v2944 = vpow.pop %v2943
      %v2945 = vmul.f32 %v2889, 1.442695
      %v2946 = vpow.pop %v2945
      %v2947 = vmul.f32 %v2890, 1.442695
      %v2948 = vpow.pop %v2947
      %v2949 = vmul.f32 %v2891, 1.442695
      %v2950 = vpow.pop %v2949
      %v2951 = vmul.f32 %v2892, 1.442695
      %v2952 = vpow.pop %v2951
      %v2953 = vmul.f32 %v2893, 1.442695
      %v2954 = vpow.pop %v2953
      %v2955 = vmul.f32 %v2894, 1.442695
      %v2956 = vpow.pop %v2955
      %v2957 = vmul.f32 %v2895, 1.442695
      %v2958 = vpow.pop %v2957
      %v2959 = vmul.f32 %v2896, 1.442695
      %v2960 = vpow.pop %v2959
      %v2961 = vsel %vm1784, %v2898, 0.0
      %2962 = vadd.xlane.f32.xlu0 %v2961
      %v2963 = vpop.xlane.xlu0 %2962
      %v2964 = vsel %vm1784, %v2900, 0.0
      %2965 = vadd.xlane.f32.xlu0 %v2964
      %v2966 = vpop.xlane.xlu0 %2965
      %v2967 = vsel %vm1784, %v2902, 0.0
      %2968 = vadd.xlane.f32.xlu0 %v2967
      %v2969 = vpop.xlane.xlu0 %2968
      %v2970 = vsel %vm1784, %v2904, 0.0
      %2971 = vadd.xlane.f32.xlu0 %v2970
      %v2972 = vpop.xlane.xlu0 %2971
      %v2973 = vsel %vm1784, %v2906, 0.0
      %2974 = vadd.xlane.f32.xlu0 %v2973
      %v2975 = vpop.xlane.xlu0 %2974
      %v2976 = vsel %vm1784, %v2908, 0.0
      %2977 = vadd.xlane.f32.xlu0 %v2976
      %v2978 = vpop.xlane.xlu0 %2977
      %v2979 = vsel %vm1784, %v2910, 0.0
      %2980 = vadd.xlane.f32.xlu0 %v2979
      %v2981 = vpop.xlane.xlu0 %2980
      %v2982 = vsel %vm1784, %v2912, 0.0
      %2983 = vadd.xlane.f32.xlu0 %v2982
      %v2984 = vpop.xlane.xlu0 %2983
      %v2985 = vsel %vm1784, %v2914, 0.0
      %2986 = vadd.xlane.f32.xlu0 %v2985
      %v2987 = vpop.xlane.xlu0 %2986
      %v2988 = vsel %vm1784, %v2916, 0.0
      %2989 = vadd.xlane.f32.xlu0 %v2988
      %v2990 = vpop.xlane.xlu0 %2989
      %v2991 = vsel %vm1784, %v2918, 0.0
      %2992 = vadd.xlane.f32.xlu0 %v2991
      %v2993 = vpop.xlane.xlu0 %2992
      %v2994 = vsel %vm1784, %v2920, 0.0
      %2995 = vadd.xlane.f32.xlu0 %v2994
      %v2996 = vpop.xlane.xlu0 %2995
      %v2997 = vsel %vm1784, %v2922, 0.0
      %2998 = vadd.xlane.f32.xlu0 %v2997
      %v2999 = vpop.xlane.xlu0 %2998
      %v3000 = vsel %vm1784, %v2924, 0.0
      %3001 = vadd.xlane.f32.xlu0 %v3000
      %v3002 = vpop.xlane.xlu0 %3001
      %v3003 = vsel %vm1784, %v2926, 0.0
      %3004 = vadd.xlane.f32.xlu0 %v3003
      %v3005 = vpop.xlane.xlu0 %3004
      %v3006 = vsel %vm1784, %v2928, 0.0
      %3007 = vadd.xlane.f32.xlu0 %v3006
      %v3008 = vpop.xlane.xlu0 %3007
      %v3009 = vsel %vm1784, %v2930, 0.0
      %3010 = vadd.xlane.f32.xlu0 %v3009
      %v3011 = vpop.xlane.xlu0 %3010
      %v3012 = vsel %vm1784, %v2932, 0.0
      %3013 = vadd.xlane.f32.xlu0 %v3012
      %v3014 = vpop.xlane.xlu0 %3013
      %v3015 = vsel %vm1784, %v2934, 0.0
      %3016 = vadd.xlane.f32.xlu0 %v3015
      %v3017 = vpop.xlane.xlu0 %3016
      %v3018 = vsel %vm1784, %v2936, 0.0
      %3019 = vadd.xlane.f32.xlu0 %v3018
      %v3020 = vpop.xlane.xlu0 %3019
      %v3021 = vsel %vm1784, %v2938, 0.0
      %3022 = vadd.xlane.f32.xlu0 %v3021
      %v3023 = vpop.xlane.xlu0 %3022
      %v3024 = vsel %vm1784, %v2940, 0.0
      %3025 = vadd.xlane.f32.xlu0 %v3024
      %v3026 = vpop.xlane.xlu0 %3025
      %v3027 = vsel %vm1784, %v2942, 0.0
      %3028 = vadd.xlane.f32.xlu0 %v3027
      %v3029 = vpop.xlane.xlu0 %3028
      %v3030 = vsel %vm1784, %v2944, 0.0
      %3031 = vadd.xlane.f32.xlu0 %v3030
      %v3032 = vpop.xlane.xlu0 %3031
      %v3033 = vsel %vm1784, %v2946, 0.0
      %3034 = vadd.xlane.f32.xlu0 %v3033
      %v3035 = vpop.xlane.xlu0 %3034
      %v3036 = vsel %vm1784, %v2948, 0.0
      %3037 = vadd.xlane.f32.xlu0 %v3036
      %v3038 = vpop.xlane.xlu0 %3037
      %v3039 = vsel %vm1784, %v2950, 0.0
      %3040 = vadd.xlane.f32.xlu0 %v3039
      %v3041 = vpop.xlane.xlu0 %3040
      %v3042 = vsel %vm1784, %v2952, 0.0
      %3043 = vadd.xlane.f32.xlu0 %v3042
      %v3044 = vpop.xlane.xlu0 %3043
      %v3045 = vsel %vm1784, %v2954, 0.0
      %3046 = vadd.xlane.f32.xlu0 %v3045
      %v3047 = vpop.xlane.xlu0 %3046
      %v3048 = vsel %vm1784, %v2956, 0.0
      %3049 = vadd.xlane.f32.xlu0 %v3048
      %v3050 = vpop.xlane.xlu0 %3049
      %v3051 = vsel %vm1784, %v2958, 0.0
      %3052 = vadd.xlane.f32.xlu0 %v3051
      %v3053 = vpop.xlane.xlu0 %3052
      %v3054 = vsel %vm1784, %v2960, 0.0
      %3055 = vadd.xlane.f32.xlu0 %v3054
      %v3056 = vpop.xlane.xlu0 %3055
      %v3057 = vrcp.pop %v2963
      %v3058 = vrcp.pop %v2966
      %v3059 = vrcp.pop %v2969
      %v3060 = vrcp.pop %v2972
      %v3061 = vrcp.pop %v2975
      %v3062 = vrcp.pop %v2978
      %v3063 = vrcp.pop %v2981
      %v3064 = vrcp.pop %v2984
      %v3065 = vrcp.pop %v2987
      %v3066 = vrcp.pop %v2990
      %v3067 = vrcp.pop %v2993
      %v3068 = vrcp.pop %v2996
      %v3069 = vrcp.pop %v2999
      %v3070 = vrcp.pop %v3002
      %v3071 = vrcp.pop %v3005
      %v3072 = vrcp.pop %v3008
      %v3073 = vrcp.pop %v3011
      %v3074 = vrcp.pop %v3014
      %v3075 = vrcp.pop %v3017
      %v3076 = vrcp.pop %v3020
      %v3077 = vrcp.pop %v3023
      %v3078 = vrcp.pop %v3026
      %v3079 = vrcp.pop %v3029
      %v3080 = vrcp.pop %v3032
      %v3081 = vrcp.pop %v3035
      %v3082 = vrcp.pop %v3038
      %v3083 = vrcp.pop %v3041
      %v3084 = vrcp.pop %v3044
      %v3085 = vrcp.pop %v3047
      %v3086 = vrcp.pop %v3050
      %v3087 = vrcp.pop %v3053
      %v3088 = vrcp.pop %v3056
      %v3089 = vmul.f32 %v2898, %v3057
      %v3090 = vmul.f32 %v2900, %v3058
      %v3091 = vmul.f32 %v2902, %v3059
      %v3092 = vmul.f32 %v2904, %v3060
      %v3093 = vmul.f32 %v2906, %v3061
      %v3094 = vmul.f32 %v2908, %v3062
      %v3095 = vmul.f32 %v2910, %v3063
      %v3096 = vmul.f32 %v2912, %v3064
      %v3097 = vmul.f32 %v2914, %v3065
      %v3098 = vmul.f32 %v2916, %v3066
      %v3099 = vmul.f32 %v2918, %v3067
      %v3100 = vmul.f32 %v2920, %v3068
      %v3101 = vmul.f32 %v2922, %v3069
      %v3102 = vmul.f32 %v2924, %v3070
      %v3103 = vmul.f32 %v2926, %v3071
      %v3104 = vmul.f32 %v2928, %v3072
      %v3105 = vmul.f32 %v2930, %v3073
      %v3106 = vmul.f32 %v2932, %v3074
      %v3107 = vmul.f32 %v2934, %v3075
      %v3108 = vmul.f32 %v2936, %v3076
      %v3109 = vmul.f32 %v2938, %v3077
      %v3110 = vmul.f32 %v2940, %v3078
      %v3111 = vmul.f32 %v2942, %v3079
      %v3112 = vmul.f32 %v2944, %v3080
      %v3113 = vmul.f32 %v2946, %v3081
      %v3114 = vmul.f32 %v2948, %v3082
      %v3115 = vmul.f32 %v2950, %v3083
      %v3116 = vmul.f32 %v2952, %v3084
      %v3117 = vmul.f32 %v2954, %v3085
      %v3118 = vmul.f32 %v2956, %v3086
      %v3119 = vmul.f32 %v2958, %v3087
      %v3120 = vmul.f32 %v2960, %v3088
      %v3121 = vpack.c.bf16 %v3089, %v3089
      %v3122 = vpack.c.bf16 %v3090, %v3090
      %v3123 = vpack.c.bf16 %v3091, %v3091
      %v3124 = vpack.c.bf16 %v3092, %v3092
      %v3125 = vpack.c.bf16 %v3093, %v3093
      %v3126 = vpack.c.bf16 %v3094, %v3094
      %v3127 = vpack.c.bf16 %v3095, %v3095
      %v3128 = vpack.c.bf16 %v3096, %v3096
      %v3129 = vpack.c.bf16 %v3097, %v3097
      %v3130 = vpack.c.bf16 %v3098, %v3098
      %v3131 = vpack.c.bf16 %v3099, %v3099
      %v3132 = vpack.c.bf16 %v3100, %v3100
      %v3133 = vpack.c.bf16 %v3101, %v3101
      %v3134 = vpack.c.bf16 %v3102, %v3102
      %v3135 = vpack.c.bf16 %v3103, %v3103
      %v3136 = vpack.c.bf16 %v3104, %v3104
      %v3137 = vpack.c.bf16 %v3105, %v3105
      %v3138 = vpack.c.bf16 %v3106, %v3106
      %v3139 = vpack.c.bf16 %v3107, %v3107
      %v3140 = vpack.c.bf16 %v3108, %v3108
      %v3141 = vpack.c.bf16 %v3109, %v3109
      %v3142 = vpack.c.bf16 %v3110, %v3110
      %v3143 = vpack.c.bf16 %v3111, %v3111
      %v3144 = vpack.c.bf16 %v3112, %v3112
      %v3145 = vpack.c.bf16 %v3113, %v3113
      %v3146 = vpack.c.bf16 %v3114, %v3114
      %v3147 = vpack.c.bf16 %v3115, %v3115
      %v3148 = vpack.c.bf16 %v3116, %v3116
      %v3149 = vpack.c.bf16 %v3117, %v3117
      %v3150 = vpack.c.bf16 %v3118, %v3118
      %v3151 = vpack.c.bf16 %v3119, %v3119
      %v3152 = vpack.c.bf16 %v3120, %v3120
      %v3161 = vunpack.c.l.b16 %v3121
      %v3162 = vunpack.c.l.b16 %v3122
      %v3163 = vunpack.c.l.b16 %v3123
      %v3164 = vunpack.c.l.b16 %v3124
      %v3165 = vunpack.c.l.b16 %v3125
      %v3166 = vunpack.c.l.b16 %v3126
      %v3167 = vunpack.c.l.b16 %v3127
      %v3168 = vunpack.c.l.b16 %v3128
      %v3169 = vpack.c.b16 %v3162, %v3161
      %v3170 = vpack.c.b16 %v3164, %v3163
      %v3171 = vpack.c.b16 %v3166, %v3165
      %v3172 = vpack.c.b16 %v3168, %v3167
      %3173 = vrot.lane.b32.xlu0 %v1443, 56
      %v3174 = vpop.permute.xlu0 %3173
      %3175 = vrot.lane.b32.xlu0 %v1444, 56
      %v3176 = vpop.permute.xlu0 %3175
      %3177 = vrot.lane.b32.xlu0 %v1445, 56
      %v3178 = vpop.permute.xlu0 %3177
      %3179 = vrot.lane.b32.xlu0 %v1446, 56
      %v3180 = vpop.permute.xlu0 %3179
      %v3186 = vsel %vm1784, %v3169, 0
      %v3189 = vsel %vm1784, %v3170, 0
      %v3192 = vsel %vm1784, %v3171, 0
      %v3195 = vsel %vm1784, %v3172, 0
      %3197 = vmatpush.bf16.msra.mxu0 0
      %3198 = vmatpush.bf16.msra.mxu0 0
      %3199 = vmatpush.bf16.msra.mxu0 0
      %3200 = vmatpush.bf16.msra.mxu0 0
      %3201 = vmatpush.bf16.msra.mxu0 %v3180
      %3202 = vmatpush.bf16.msra.mxu0 %v3178
      %3203 = vmatpush.bf16.msra.mxu0 %v3176
      %3204 = vmatpush.bf16.msra.mxu0 %v3174
      %3205 = vmatmul.bf16.gmra.mxu0 %v3186
      %v3206 = vpop.f32.mrf.mxu0
      %v3207 = vadd.f32 0.0, %v3206
      %v3208 = vpop.f32.mrf.mxu0
      %v3209 = vadd.f32 0.0, %v3208
      %3210 = vmatmul.bf16.gmra.mxu0 %v3189
      %v3211 = vpop.f32.mrf.mxu0
      %v3212 = vadd.f32 0.0, %v3211
      %v3213 = vpop.f32.mrf.mxu0
      %v3214 = vadd.f32 0.0, %v3213
      %3215 = vmatmul.bf16.gmra.mxu0 %v3192
      %v3216 = vpop.f32.mrf.mxu0
      %v3217 = vadd.f32 0.0, %v3216
      %v3218 = vpop.f32.mrf.mxu0
      %v3219 = vadd.f32 0.0, %v3218
      %3220 = vmatmul.bf16.gmra.mxu0 %v3195
      %v3221 = vpop.f32.mrf.mxu0
      %v3222 = vadd.f32 0.0, %v3221
      %v3223 = vpop.f32.mrf.mxu0
      %v3224 = vadd.f32 0.0, %v3223
      %3225 = vdwg.mxu0
      %v3234 = vunpack.c.l.b16 %v3129
      %v3235 = vunpack.c.l.b16 %v3130
      %v3236 = vunpack.c.l.b16 %v3131
      %v3237 = vunpack.c.l.b16 %v3132
      %v3238 = vunpack.c.l.b16 %v3133
      %v3239 = vunpack.c.l.b16 %v3134
      %v3240 = vunpack.c.l.b16 %v3135
      %v3241 = vunpack.c.l.b16 %v3136
      %v3242 = vpack.c.b16 %v3235, %v3234
      %v3243 = vpack.c.b16 %v3237, %v3236
      %v3244 = vpack.c.b16 %v3239, %v3238
      %v3245 = vpack.c.b16 %v3241, %v3240
      %3246 = vrot.lane.b32.xlu0 %v1525, 56
      %v3247 = vpop.permute.xlu0 %3246
      %3248 = vrot.lane.b32.xlu0 %v1526, 56
      %v3249 = vpop.permute.xlu0 %3248
      %3250 = vrot.lane.b32.xlu0 %v1527, 56
      %v3251 = vpop.permute.xlu0 %3250
      %3252 = vrot.lane.b32.xlu0 %v1528, 56
      %v3253 = vpop.permute.xlu0 %3252
      %v3259 = vsel %vm1784, %v3242, 0
      %v3262 = vsel %vm1784, %v3243, 0
      %v3265 = vsel %vm1784, %v3244, 0
      %v3268 = vsel %vm1784, %v3245, 0
      %3270 = vmatpush.bf16.msra.mxu0 0
      %3271 = vmatpush.bf16.msra.mxu0 0
      %3272 = vmatpush.bf16.msra.mxu0 0
      %3273 = vmatpush.bf16.msra.mxu0 0
      %3274 = vmatpush.bf16.msra.mxu0 %v3253
      %3275 = vmatpush.bf16.msra.mxu0 %v3251
      %3276 = vmatpush.bf16.msra.mxu0 %v3249
      %3277 = vmatpush.bf16.msra.mxu0 %v3247
      %3278 = vmatmul.bf16.gmra.mxu0 %v3259
      %v3279 = vpop.f32.mrf.mxu0
      %v3280 = vadd.f32 0.0, %v3279
      %v3281 = vpop.f32.mrf.mxu0
      %v3282 = vadd.f32 0.0, %v3281
      %3283 = vmatmul.bf16.gmra.mxu0 %v3262
      %v3284 = vpop.f32.mrf.mxu0
      %v3285 = vadd.f32 0.0, %v3284
      %v3286 = vpop.f32.mrf.mxu0
      %v3287 = vadd.f32 0.0, %v3286
      %3288 = vmatmul.bf16.gmra.mxu0 %v3265
      %v3289 = vpop.f32.mrf.mxu0
      %v3290 = vadd.f32 0.0, %v3289
      %v3291 = vpop.f32.mrf.mxu0
      %v3292 = vadd.f32 0.0, %v3291
      %3293 = vmatmul.bf16.gmra.mxu0 %v3268
      %v3294 = vpop.f32.mrf.mxu0
      %v3295 = vadd.f32 0.0, %v3294
      %v3296 = vpop.f32.mrf.mxu0
      %v3297 = vadd.f32 0.0, %v3296
      %3298 = vdwg.mxu0
      %v3307 = vunpack.c.l.b16 %v3137
      %v3308 = vunpack.c.l.b16 %v3138
      %v3309 = vunpack.c.l.b16 %v3139
      %v3310 = vunpack.c.l.b16 %v3140
      %v3311 = vunpack.c.l.b16 %v3141
      %v3312 = vunpack.c.l.b16 %v3142
      %v3313 = vunpack.c.l.b16 %v3143
      %v3314 = vunpack.c.l.b16 %v3144
      %v3315 = vpack.c.b16 %v3308, %v3307
      %v3316 = vpack.c.b16 %v3310, %v3309
      %v3317 = vpack.c.b16 %v3312, %v3311
      %v3318 = vpack.c.b16 %v3314, %v3313
      %3319 = vrot.lane.b32.xlu0 %v1606, 56
      %v3320 = vpop.permute.xlu0 %3319
      %3321 = vrot.lane.b32.xlu0 %v1607, 56
      %v3322 = vpop.permute.xlu0 %3321
      %3323 = vrot.lane.b32.xlu0 %v1608, 56
      %v3324 = vpop.permute.xlu0 %3323
      %3325 = vrot.lane.b32.xlu0 %v1609, 56
      %v3326 = vpop.permute.xlu0 %3325
      %v3332 = vsel %vm1784, %v3315, 0
      %v3335 = vsel %vm1784, %v3316, 0
      %v3338 = vsel %vm1784, %v3317, 0
      %v3341 = vsel %vm1784, %v3318, 0
      %3343 = vmatpush.bf16.msra.mxu0 0
      %3344 = vmatpush.bf16.msra.mxu0 0
      %3345 = vmatpush.bf16.msra.mxu0 0
      %3346 = vmatpush.bf16.msra.mxu0 0
      %3347 = vmatpush.bf16.msra.mxu0 %v3326
      %3348 = vmatpush.bf16.msra.mxu0 %v3324
      %3349 = vmatpush.bf16.msra.mxu0 %v3322
      %3350 = vmatpush.bf16.msra.mxu0 %v3320
      %3351 = vmatmul.bf16.gmra.mxu0 %v3332
      %v3352 = vpop.f32.mrf.mxu0
      %v3353 = vadd.f32 0.0, %v3352
      %v3354 = vpop.f32.mrf.mxu0
      %v3355 = vadd.f32 0.0, %v3354
      %3356 = vmatmul.bf16.gmra.mxu0 %v3335
      %v3357 = vpop.f32.mrf.mxu0
      %v3358 = vadd.f32 0.0, %v3357
      %v3359 = vpop.f32.mrf.mxu0
      %v3360 = vadd.f32 0.0, %v3359
      %3361 = vmatmul.bf16.gmra.mxu0 %v3338
      %v3362 = vpop.f32.mrf.mxu0
      %v3363 = vadd.f32 0.0, %v3362
      %v3364 = vpop.f32.mrf.mxu0
      %v3365 = vadd.f32 0.0, %v3364
      %3366 = vmatmul.bf16.gmra.mxu0 %v3341
      %v3367 = vpop.f32.mrf.mxu0
      %v3368 = vadd.f32 0.0, %v3367
      %v3369 = vpop.f32.mrf.mxu0
      %v3370 = vadd.f32 0.0, %v3369
      %3371 = vdwg.mxu0
      %v3380 = vunpack.c.l.b16 %v3145
      %v3381 = vunpack.c.l.b16 %v3146
      %v3382 = vunpack.c.l.b16 %v3147
      %v3383 = vunpack.c.l.b16 %v3148
      %v3384 = vunpack.c.l.b16 %v3149
      %v3385 = vunpack.c.l.b16 %v3150
      %v3386 = vunpack.c.l.b16 %v3151
      %v3387 = vunpack.c.l.b16 %v3152
      %v3388 = vpack.c.b16 %v3381, %v3380
      %v3389 = vpack.c.b16 %v3383, %v3382
      %v3390 = vpack.c.b16 %v3385, %v3384
      %v3391 = vpack.c.b16 %v3387, %v3386
      %3392 = vrot.lane.b32.xlu0 %v1687, 56
      %v3393 = vpop.permute.xlu0 %3392
      %3394 = vrot.lane.b32.xlu0 %v1688, 56
      %v3395 = vpop.permute.xlu0 %3394
      %3396 = vrot.lane.b32.xlu0 %v1689, 56
      %v3397 = vpop.permute.xlu0 %3396
      %3398 = vrot.lane.b32.xlu0 %v1690, 56
      %v3399 = vpop.permute.xlu0 %3398
      %v3405 = vsel %vm1784, %v3388, 0
      %v3408 = vsel %vm1784, %v3389, 0
      %v3411 = vsel %vm1784, %v3390, 0
      %v3414 = vsel %vm1784, %v3391, 0
      %3416 = vmatpush.bf16.msra.mxu0 0
      %3417 = vmatpush.bf16.msra.mxu0 0
      %3418 = vmatpush.bf16.msra.mxu0 0
      %3419 = vmatpush.bf16.msra.mxu0 0
      %3420 = vmatpush.bf16.msra.mxu0 %v3399
      %3421 = vmatpush.bf16.msra.mxu0 %v3397
      %3422 = vmatpush.bf16.msra.mxu0 %v3395
      %3423 = vmatpush.bf16.msra.mxu0 %v3393
      %3424 = vmatmul.bf16.gmra.mxu0 %v3405
      %v3425 = vpop.f32.mrf.mxu0
      %v3426 = vadd.f32 0.0, %v3425
      %v3427 = vpop.f32.mrf.mxu0
      %v3428 = vadd.f32 0.0, %v3427
      %3429 = vmatmul.bf16.gmra.mxu0 %v3408
      %v3430 = vpop.f32.mrf.mxu0
      %v3431 = vadd.f32 0.0, %v3430
      %v3432 = vpop.f32.mrf.mxu0
      %v3433 = vadd.f32 0.0, %v3432
      %3434 = vmatmul.bf16.gmra.mxu0 %v3411
      %v3435 = vpop.f32.mrf.mxu0
      %v3436 = vadd.f32 0.0, %v3435
      %v3437 = vpop.f32.mrf.mxu0
      %v3438 = vadd.f32 0.0, %v3437
      %3439 = vmatmul.bf16.gmra.mxu0 %v3414
      %v3440 = vpop.f32.mrf.mxu0
      %v3441 = vadd.f32 0.0, %v3440
      %v3442 = vpop.f32.mrf.mxu0
      %v3443 = vadd.f32 0.0, %v3442
      %3444 = vdwg.mxu0
      %3445 = vrot.lane.b32.xlu0 %v1443, 112
      %v3446 = vpop.permute.xlu0 %3445
      %3447 = vrot.lane.b32.xlu0 %v1444, 112
      %v3448 = vpop.permute.xlu0 %3447
      %3449 = vrot.lane.b32.xlu0 %v1445, 112
      %v3450 = vpop.permute.xlu0 %3449
      %3451 = vrot.lane.b32.xlu0 %v1446, 112
      %v3452 = vpop.permute.xlu0 %3451
      %3453 = vrot.lane.b32.xlu0 %v1443, 80
      %v3454 = vpop.permute.xlu0 %3453
      %3455 = vrot.lane.b32.xlu0 %v1444, 80
      %v3456 = vpop.permute.xlu0 %3455
      %3457 = vrot.lane.b32.xlu0 %v1445, 80
      %v3458 = vpop.permute.xlu0 %3457
      %3459 = vrot.lane.b32.xlu0 %v1446, 80
      %v3460 = vpop.permute.xlu0 %3459
      %v3462 = vsel %vm1455, %v3446, 0
      %v3465 = vsel %vm1455, %v3448, 0
      %v3468 = vsel %vm1455, %v3450, 0
      %v3471 = vsel %vm1455, %v3452, 0
      %v3474 = vsel %vm1455, %v3454, 0
      %v3477 = vsel %vm1455, %v3456, 0
      %v3480 = vsel %vm1455, %v3458, 0
      %v3483 = vsel %vm1455, %v3460, 0
      %3485 = vmatpush.bf16.xpose.msra.mxu0 0
      %3486 = vmatpush.bf16.xpose.msra.mxu0 0
      %3487 = vmatpush.bf16.xpose.msra.mxu0 0
      %3488 = vmatpush.bf16.xpose.msra.mxu0 0
      %3489 = vmatpush.bf16.xpose.msra.mxu0 %v3483
      %3490 = vmatpush.bf16.xpose.msra.mxu0 %v3480
      %3491 = vmatpush.bf16.xpose.msra.mxu0 %v3477
      %3492 = vmatpush.bf16.xpose.msra.mxu0 %v3474
      %3493 = vmatmul.bf16.gmra.mxu0 %v3462
      %v3494 = vpop.f32.mrf.mxu0
      %v3495 = vadd.f32 %v1347, %v3494
      %v3496 = vpop.f32.mrf.mxu0
      %v3497 = vadd.f32 %v1348, %v3496
      %3498 = vmatmul.bf16.gmra.mxu0 %v3465
      %v3499 = vpop.f32.mrf.mxu0
      %v3500 = vadd.f32 %v1349, %v3499
      %v3501 = vpop.f32.mrf.mxu0
      %v3502 = vadd.f32 %v1350, %v3501
      %3503 = vmatmul.bf16.gmra.mxu0 %v3468
      %v3504 = vpop.f32.mrf.mxu0
      %v3505 = vadd.f32 %v1351, %v3504
      %v3506 = vpop.f32.mrf.mxu0
      %v3507 = vadd.f32 %v1352, %v3506
      %3508 = vmatmul.bf16.gmra.mxu0 %v3471
      %v3509 = vpop.f32.mrf.mxu0
      %v3510 = vadd.f32 %v1353, %v3509
      %v3511 = vpop.f32.mrf.mxu0
      %v3512 = vadd.f32 %v1354, %v3511
      %3513 = vdwg.mxu0
      %3514 = vrot.lane.b32.xlu0 %v1525, 112
      %v3515 = vpop.permute.xlu0 %3514
      %3516 = vrot.lane.b32.xlu0 %v1526, 112
      %v3517 = vpop.permute.xlu0 %3516
      %3518 = vrot.lane.b32.xlu0 %v1527, 112
      %v3519 = vpop.permute.xlu0 %3518
      %3520 = vrot.lane.b32.xlu0 %v1528, 112
      %v3521 = vpop.permute.xlu0 %3520
      %3522 = vrot.lane.b32.xlu0 %v1525, 80
      %v3523 = vpop.permute.xlu0 %3522
      %3524 = vrot.lane.b32.xlu0 %v1526, 80
      %v3525 = vpop.permute.xlu0 %3524
      %3526 = vrot.lane.b32.xlu0 %v1527, 80
      %v3527 = vpop.permute.xlu0 %3526
      %3528 = vrot.lane.b32.xlu0 %v1528, 80
      %v3529 = vpop.permute.xlu0 %3528
      %v3531 = vsel %vm1455, %v3515, 0
      %v3534 = vsel %vm1455, %v3517, 0
      %v3537 = vsel %vm1455, %v3519, 0
      %v3540 = vsel %vm1455, %v3521, 0
      %v3543 = vsel %vm1455, %v3523, 0
      %v3546 = vsel %vm1455, %v3525, 0
      %v3549 = vsel %vm1455, %v3527, 0
      %v3552 = vsel %vm1455, %v3529, 0
      %3554 = vmatpush.bf16.xpose.msra.mxu0 0
      %3555 = vmatpush.bf16.xpose.msra.mxu0 0
      %3556 = vmatpush.bf16.xpose.msra.mxu0 0
      %3557 = vmatpush.bf16.xpose.msra.mxu0 0
      %3558 = vmatpush.bf16.xpose.msra.mxu0 %v3552
      %3559 = vmatpush.bf16.xpose.msra.mxu0 %v3549
      %3560 = vmatpush.bf16.xpose.msra.mxu0 %v3546
      %3561 = vmatpush.bf16.xpose.msra.mxu0 %v3543
      %3562 = vmatmul.bf16.gmra.mxu0 %v3531
      %v3563 = vpop.f32.mrf.mxu0
      %v3564 = vadd.f32 %v1347, %v3563
      %v3565 = vpop.f32.mrf.mxu0
      %v3566 = vadd.f32 %v1348, %v3565
      %3567 = vmatmul.bf16.gmra.mxu0 %v3534
      %v3568 = vpop.f32.mrf.mxu0
      %v3569 = vadd.f32 %v1349, %v3568
      %v3570 = vpop.f32.mrf.mxu0
      %v3571 = vadd.f32 %v1350, %v3570
      %3572 = vmatmul.bf16.gmra.mxu0 %v3537
      %v3573 = vpop.f32.mrf.mxu0
      %v3574 = vadd.f32 %v1351, %v3573
      %v3575 = vpop.f32.mrf.mxu0
      %v3576 = vadd.f32 %v1352, %v3575
      %3577 = vmatmul.bf16.gmra.mxu0 %v3540
      %v3578 = vpop.f32.mrf.mxu0
      %v3579 = vadd.f32 %v1353, %v3578
      %v3580 = vpop.f32.mrf.mxu0
      %v3581 = vadd.f32 %v1354, %v3580
      %3582 = vdwg.mxu0
      %3583 = vrot.lane.b32.xlu0 %v1606, 112
      %v3584 = vpop.permute.xlu0 %3583
      %3585 = vrot.lane.b32.xlu0 %v1607, 112
      %v3586 = vpop.permute.xlu0 %3585
      %3587 = vrot.lane.b32.xlu0 %v1608, 112
      %v3588 = vpop.permute.xlu0 %3587
      %3589 = vrot.lane.b32.xlu0 %v1609, 112
      %v3590 = vpop.permute.xlu0 %3589
      %3591 = vrot.lane.b32.xlu0 %v1606, 80
      %v3592 = vpop.permute.xlu0 %3591
      %3593 = vrot.lane.b32.xlu0 %v1607, 80
      %v3594 = vpop.permute.xlu0 %3593
      %3595 = vrot.lane.b32.xlu0 %v1608, 80
      %v3596 = vpop.permute.xlu0 %3595
      %3597 = vrot.lane.b32.xlu0 %v1609, 80
      %v3598 = vpop.permute.xlu0 %3597
      %v3600 = vsel %vm1455, %v3584, 0
      %v3603 = vsel %vm1455, %v3586, 0
      %v3606 = vsel %vm1455, %v3588, 0
      %v3609 = vsel %vm1455, %v3590, 0
      %v3612 = vsel %vm1455, %v3592, 0
      %v3615 = vsel %vm1455, %v3594, 0
      %v3618 = vsel %vm1455, %v3596, 0
      %v3621 = vsel %vm1455, %v3598, 0
      %3623 = vmatpush.bf16.xpose.msra.mxu0 0
      %3624 = vmatpush.bf16.xpose.msra.mxu0 0
      %3625 = vmatpush.bf16.xpose.msra.mxu0 0
      %3626 = vmatpush.bf16.xpose.msra.mxu0 0
      %3627 = vmatpush.bf16.xpose.msra.mxu0 %v3621
      %3628 = vmatpush.bf16.xpose.msra.mxu0 %v3618
      %3629 = vmatpush.bf16.xpose.msra.mxu0 %v3615
      %3630 = vmatpush.bf16.xpose.msra.mxu0 %v3612
      %3631 = vmatmul.bf16.gmra.mxu0 %v3600
      %v3632 = vpop.f32.mrf.mxu0
      %v3633 = vadd.f32 %v1347, %v3632
      %v3634 = vpop.f32.mrf.mxu0
      %v3635 = vadd.f32 %v1348, %v3634
      %3636 = vmatmul.bf16.gmra.mxu0 %v3603
      %v3637 = vpop.f32.mrf.mxu0
      %v3638 = vadd.f32 %v1349, %v3637
      %v3639 = vpop.f32.mrf.mxu0
      %v3640 = vadd.f32 %v1350, %v3639
      %3641 = vmatmul.bf16.gmra.mxu0 %v3606
      %v3642 = vpop.f32.mrf.mxu0
      %v3643 = vadd.f32 %v1351, %v3642
      %v3644 = vpop.f32.mrf.mxu0
      %v3645 = vadd.f32 %v1352, %v3644
      %3646 = vmatmul.bf16.gmra.mxu0 %v3609
      %v3647 = vpop.f32.mrf.mxu0
      %v3648 = vadd.f32 %v1353, %v3647
      %v3649 = vpop.f32.mrf.mxu0
      %v3650 = vadd.f32 %v1354, %v3649
      %3651 = vdwg.mxu0
      %3652 = vrot.lane.b32.xlu0 %v1687, 112
      %v3653 = vpop.permute.xlu0 %3652
      %3654 = vrot.lane.b32.xlu0 %v1688, 112
      %v3655 = vpop.permute.xlu0 %3654
      %3656 = vrot.lane.b32.xlu0 %v1689, 112
      %v3657 = vpop.permute.xlu0 %3656
      %3658 = vrot.lane.b32.xlu0 %v1690, 112
      %v3659 = vpop.permute.xlu0 %3658
      %3660 = vrot.lane.b32.xlu0 %v1687, 80
      %v3661 = vpop.permute.xlu0 %3660
      %3662 = vrot.lane.b32.xlu0 %v1688, 80
      %v3663 = vpop.permute.xlu0 %3662
      %3664 = vrot.lane.b32.xlu0 %v1689, 80
      %v3665 = vpop.permute.xlu0 %3664
      %3666 = vrot.lane.b32.xlu0 %v1690, 80
      %v3667 = vpop.permute.xlu0 %3666
      %v3669 = vsel %vm1455, %v3653, 0
      %v3672 = vsel %vm1455, %v3655, 0
      %v3675 = vsel %vm1455, %v3657, 0
      %v3678 = vsel %vm1455, %v3659, 0
      %v3681 = vsel %vm1455, %v3661, 0
      %v3684 = vsel %vm1455, %v3663, 0
      %v3687 = vsel %vm1455, %v3665, 0
      %v3690 = vsel %vm1455, %v3667, 0
      %3692 = vmatpush.bf16.xpose.msra.mxu0 0
      %3693 = vmatpush.bf16.xpose.msra.mxu0 0
      %3694 = vmatpush.bf16.xpose.msra.mxu0 0
      %3695 = vmatpush.bf16.xpose.msra.mxu0 0
      %3696 = vmatpush.bf16.xpose.msra.mxu0 %v3690
      %3697 = vmatpush.bf16.xpose.msra.mxu0 %v3687
      %3698 = vmatpush.bf16.xpose.msra.mxu0 %v3684
      %3699 = vmatpush.bf16.xpose.msra.mxu0 %v3681
      %3700 = vmatmul.bf16.gmra.mxu0 %v3669
      %v3701 = vpop.f32.mrf.mxu0
      %v3702 = vadd.f32 %v1347, %v3701
      %v3703 = vpop.f32.mrf.mxu0
      %v3704 = vadd.f32 %v1348, %v3703
      %3705 = vmatmul.bf16.gmra.mxu0 %v3672
      %v3706 = vpop.f32.mrf.mxu0
      %v3707 = vadd.f32 %v1349, %v3706
      %v3708 = vpop.f32.mrf.mxu0
      %v3709 = vadd.f32 %v1350, %v3708
      %3710 = vmatmul.bf16.gmra.mxu0 %v3675
      %v3711 = vpop.f32.mrf.mxu0
      %v3712 = vadd.f32 %v1351, %v3711
      %v3713 = vpop.f32.mrf.mxu0
      %v3714 = vadd.f32 %v1352, %v3713
      %3715 = vmatmul.bf16.gmra.mxu0 %v3678
      %v3716 = vpop.f32.mrf.mxu0
      %v3717 = vadd.f32 %v1353, %v3716
      %v3718 = vpop.f32.mrf.mxu0
      %v3719 = vadd.f32 %v1354, %v3718
      %3720 = vdwg.mxu0
      %v3721 = vadd.f32 %v3495, %v1363
      %v3722 = vadd.f32 %v3497, %v1364
      %v3723 = vadd.f32 %v3500, %v1365
      %v3724 = vadd.f32 %v3502, %v1366
      %v3725 = vadd.f32 %v3505, %v1367
      %v3726 = vadd.f32 %v3507, %v1368
      %v3727 = vadd.f32 %v3510, %v1369
      %v3728 = vadd.f32 %v3512, %v1370
      %v3729 = vadd.f32 %v3564, %v1371
      %v3730 = vadd.f32 %v3566, %v1372
      %v3731 = vadd.f32 %v3569, %v1373
      %v3732 = vadd.f32 %v3571, %v1374
      %v3733 = vadd.f32 %v3574, %v1375
      %v3734 = vadd.f32 %v3576, %v1376
      %v3735 = vadd.f32 %v3579, %v1377
      %v3736 = vadd.f32 %v3581, %v1378
      %v3737 = vadd.f32 %v3633, %v1379
      %v3738 = vadd.f32 %v3635, %v1380
      %v3739 = vadd.f32 %v3638, %v1381
      %v3740 = vadd.f32 %v3640, %v1382
      %v3741 = vadd.f32 %v3643, %v1383
      %v3742 = vadd.f32 %v3645, %v1384
      %v3743 = vadd.f32 %v3648, %v1385
      %v3744 = vadd.f32 %v3650, %v1386
      %v3745 = vadd.f32 %v3702, %v1387
      %v3746 = vadd.f32 %v3704, %v1388
      %v3747 = vadd.f32 %v3707, %v1389
      %v3748 = vadd.f32 %v3709, %v1390
      %v3749 = vadd.f32 %v3712, %v1391
      %v3750 = vadd.f32 %v3714, %v1392
      %v3751 = vadd.f32 %v3717, %v1393
      %v3752 = vadd.f32 %v3719, %v1394
      %v3753 = vsel %vm1784, %v3721, -inf
      %3754 = vmax.xlane.f32.xlu0 %v3753
      %v3755 = vpop.xlane.xlu0 %3754
      %v3756 = vsel %vm1784, %v3722, -inf
      %3757 = vmax.xlane.f32.xlu0 %v3756
      %v3758 = vpop.xlane.xlu0 %3757
      %v3759 = vsel %vm1784, %v3723, -inf
      %3760 = vmax.xlane.f32.xlu0 %v3759
      %v3761 = vpop.xlane.xlu0 %3760
      %v3762 = vsel %vm1784, %v3724, -inf
      %3763 = vmax.xlane.f32.xlu0 %v3762
      %v3764 = vpop.xlane.xlu0 %3763
      %v3765 = vsel %vm1784, %v3725, -inf
      %3766 = vmax.xlane.f32.xlu0 %v3765
      %v3767 = vpop.xlane.xlu0 %3766
      %v3768 = vsel %vm1784, %v3726, -inf
      %3769 = vmax.xlane.f32.xlu0 %v3768
      %v3770 = vpop.xlane.xlu0 %3769
      %v3771 = vsel %vm1784, %v3727, -inf
      %3772 = vmax.xlane.f32.xlu0 %v3771
      %v3773 = vpop.xlane.xlu0 %3772
      %v3774 = vsel %vm1784, %v3728, -inf
      %3775 = vmax.xlane.f32.xlu0 %v3774
      %v3776 = vpop.xlane.xlu0 %3775
      %v3777 = vsel %vm1784, %v3729, -inf
      %3778 = vmax.xlane.f32.xlu0 %v3777
      %v3779 = vpop.xlane.xlu0 %3778
      %v3780 = vsel %vm1784, %v3730, -inf
      %3781 = vmax.xlane.f32.xlu0 %v3780
      %v3782 = vpop.xlane.xlu0 %3781
      %v3783 = vsel %vm1784, %v3731, -inf
      %3784 = vmax.xlane.f32.xlu0 %v3783
      %v3785 = vpop.xlane.xlu0 %3784
      %v3786 = vsel %vm1784, %v3732, -inf
      %3787 = vmax.xlane.f32.xlu0 %v3786
      %v3788 = vpop.xlane.xlu0 %3787
      %v3789 = vsel %vm1784, %v3733, -inf
      %3790 = vmax.xlane.f32.xlu0 %v3789
      %v3791 = vpop.xlane.xlu0 %3790
      %v3792 = vsel %vm1784, %v3734, -inf
      %3793 = vmax.xlane.f32.xlu0 %v3792
      %v3794 = vpop.xlane.xlu0 %3793
      %v3795 = vsel %vm1784, %v3735, -inf
      %3796 = vmax.xlane.f32.xlu0 %v3795
      %v3797 = vpop.xlane.xlu0 %3796
      %v3798 = vsel %vm1784, %v3736, -inf
      %3799 = vmax.xlane.f32.xlu0 %v3798
      %v3800 = vpop.xlane.xlu0 %3799
      %v3801 = vsel %vm1784, %v3737, -inf
      %3802 = vmax.xlane.f32.xlu0 %v3801
      %v3803 = vpop.xlane.xlu0 %3802
      %v3804 = vsel %vm1784, %v3738, -inf
      %3805 = vmax.xlane.f32.xlu0 %v3804
      %v3806 = vpop.xlane.xlu0 %3805
      %v3807 = vsel %vm1784, %v3739, -inf
      %3808 = vmax.xlane.f32.xlu0 %v3807
      %v3809 = vpop.xlane.xlu0 %3808
      %v3810 = vsel %vm1784, %v3740, -inf
      %3811 = vmax.xlane.f32.xlu0 %v3810
      %v3812 = vpop.xlane.xlu0 %3811
      %v3813 = vsel %vm1784, %v3741, -inf
      %3814 = vmax.xlane.f32.xlu0 %v3813
      %v3815 = vpop.xlane.xlu0 %3814
      %v3816 = vsel %vm1784, %v3742, -inf
      %3817 = vmax.xlane.f32.xlu0 %v3816
      %v3818 = vpop.xlane.xlu0 %3817
      %v3819 = vsel %vm1784, %v3743, -inf
      %3820 = vmax.xlane.f32.xlu0 %v3819
      %v3821 = vpop.xlane.xlu0 %3820
      %v3822 = vsel %vm1784, %v3744, -inf
      %3823 = vmax.xlane.f32.xlu0 %v3822
      %v3824 = vpop.xlane.xlu0 %3823
      %v3825 = vsel %vm1784, %v3745, -inf
      %3826 = vmax.xlane.f32.xlu0 %v3825
      %v3827 = vpop.xlane.xlu0 %3826
      %v3828 = vsel %vm1784, %v3746, -inf
      %3829 = vmax.xlane.f32.xlu0 %v3828
      %v3830 = vpop.xlane.xlu0 %3829
      %v3831 = vsel %vm1784, %v3747, -inf
      %3832 = vmax.xlane.f32.xlu0 %v3831
      %v3833 = vpop.xlane.xlu0 %3832
      %v3834 = vsel %vm1784, %v3748, -inf
      %3835 = vmax.xlane.f32.xlu0 %v3834
      %v3836 = vpop.xlane.xlu0 %3835
      %v3837 = vsel %vm1784, %v3749, -inf
      %3838 = vmax.xlane.f32.xlu0 %v3837
      %v3839 = vpop.xlane.xlu0 %3838
      %v3840 = vsel %vm1784, %v3750, -inf
      %3841 = vmax.xlane.f32.xlu0 %v3840
      %v3842 = vpop.xlane.xlu0 %3841
      %v3843 = vsel %vm1784, %v3751, -inf
      %3844 = vmax.xlane.f32.xlu0 %v3843
      %v3845 = vpop.xlane.xlu0 %3844
      %v3846 = vsel %vm1784, %v3752, -inf
      %3847 = vmax.xlane.f32.xlu0 %v3846
      %v3848 = vpop.xlane.xlu0 %3847
      %v3849 = vsub.f32 %v3721, %v3755
      %v3850 = vsub.f32 %v3722, %v3758
      %v3851 = vsub.f32 %v3723, %v3761
      %v3852 = vsub.f32 %v3724, %v3764
      %v3853 = vsub.f32 %v3725, %v3767
      %v3854 = vsub.f32 %v3726, %v3770
      %v3855 = vsub.f32 %v3727, %v3773
      %v3856 = vsub.f32 %v3728, %v3776
      %v3857 = vsub.f32 %v3729, %v3779
      %v3858 = vsub.f32 %v3730, %v3782
      %v3859 = vsub.f32 %v3731, %v3785
      %v3860 = vsub.f32 %v3732, %v3788
      %v3861 = vsub.f32 %v3733, %v3791
      %v3862 = vsub.f32 %v3734, %v3794
      %v3863 = vsub.f32 %v3735, %v3797
      %v3864 = vsub.f32 %v3736, %v3800
      %v3865 = vsub.f32 %v3737, %v3803
      %v3866 = vsub.f32 %v3738, %v3806
      %v3867 = vsub.f32 %v3739, %v3809
      %v3868 = vsub.f32 %v3740, %v3812
      %v3869 = vsub.f32 %v3741, %v3815
      %v3870 = vsub.f32 %v3742, %v3818
      %v3871 = vsub.f32 %v3743, %v3821
      %v3872 = vsub.f32 %v3744, %v3824
      %v3873 = vsub.f32 %v3745, %v3827
      %v3874 = vsub.f32 %v3746, %v3830
      %v3875 = vsub.f32 %v3747, %v3833
      %v3876 = vsub.f32 %v3748, %v3836
      %v3877 = vsub.f32 %v3749, %v3839
      %v3878 = vsub.f32 %v3750, %v3842
      %v3879 = vsub.f32 %v3751, %v3845
      %v3880 = vsub.f32 %v3752, %v3848
      %v3881 = vmul.f32 %v3849, 1.442695
      %v3882 = vpow.pop %v3881
      %v3883 = vmul.f32 %v3850, 1.442695
      %v3884 = vpow.pop %v3883
      %v3885 = vmul.f32 %v3851, 1.442695
      %v3886 = vpow.pop %v3885
      %v3887 = vmul.f32 %v3852, 1.442695
      %v3888 = vpow.pop %v3887
      %v3889 = vmul.f32 %v3853, 1.442695
      %v3890 = vpow.pop %v3889
      %v3891 = vmul.f32 %v3854, 1.442695
      %v3892 = vpow.pop %v3891
      %v3893 = vmul.f32 %v3855, 1.442695
      %v3894 = vpow.pop %v3893
      %v3895 = vmul.f32 %v3856, 1.442695
      %v3896 = vpow.pop %v3895
      %v3897 = vmul.f32 %v3857, 1.442695
      %v3898 = vpow.pop %v3897
      %v3899 = vmul.f32 %v3858, 1.442695
      %v3900 = vpow.pop %v3899
      %v3901 = vmul.f32 %v3859, 1.442695
      %v3902 = vpow.pop %v3901
      %v3903 = vmul.f32 %v3860, 1.442695
      %v3904 = vpow.pop %v3903
      %v3905 = vmul.f32 %v3861, 1.442695
      %v3906 = vpow.pop %v3905
      %v3907 = vmul.f32 %v3862, 1.442695
      %v3908 = vpow.pop %v3907
      %v3909 = vmul.f32 %v3863, 1.442695
      %v3910 = vpow.pop %v3909
      %v3911 = vmul.f32 %v3864, 1.442695
      %v3912 = vpow.pop %v3911
      %v3913 = vmul.f32 %v3865, 1.442695
      %v3914 = vpow.pop %v3913
      %v3915 = vmul.f32 %v3866, 1.442695
      %v3916 = vpow.pop %v3915
      %v3917 = vmul.f32 %v3867, 1.442695
      %v3918 = vpow.pop %v3917
      %v3919 = vmul.f32 %v3868, 1.442695
      %v3920 = vpow.pop %v3919
      %v3921 = vmul.f32 %v3869, 1.442695
      %v3922 = vpow.pop %v3921
      %v3923 = vmul.f32 %v3870, 1.442695
      %v3924 = vpow.pop %v3923
      %v3925 = vmul.f32 %v3871, 1.442695
      %v3926 = vpow.pop %v3925
      %v3927 = vmul.f32 %v3872, 1.442695
      %v3928 = vpow.pop %v3927
      %v3929 = vmul.f32 %v3873, 1.442695
      %v3930 = vpow.pop %v3929
      %v3931 = vmul.f32 %v3874, 1.442695
      %v3932 = vpow.pop %v3931
      %v3933 = vmul.f32 %v3875, 1.442695
      %v3934 = vpow.pop %v3933
      %v3935 = vmul.f32 %v3876, 1.442695
      %v3936 = vpow.pop %v3935
      %v3937 = vmul.f32 %v3877, 1.442695
      %v3938 = vpow.pop %v3937
      %v3939 = vmul.f32 %v3878, 1.442695
      %v3940 = vpow.pop %v3939
      %v3941 = vmul.f32 %v3879, 1.442695
      %v3942 = vpow.pop %v3941
      %v3943 = vmul.f32 %v3880, 1.442695
      %v3944 = vpow.pop %v3943
      %v3945 = vsel %vm1784, %v3882, 0.0
      %3946 = vadd.xlane.f32.xlu0 %v3945
      %v3947 = vpop.xlane.xlu0 %3946
      %v3948 = vsel %vm1784, %v3884, 0.0
      %3949 = vadd.xlane.f32.xlu0 %v3948
      %v3950 = vpop.xlane.xlu0 %3949
      %v3951 = vsel %vm1784, %v3886, 0.0
      %3952 = vadd.xlane.f32.xlu0 %v3951
      %v3953 = vpop.xlane.xlu0 %3952
      %v3954 = vsel %vm1784, %v3888, 0.0
      %3955 = vadd.xlane.f32.xlu0 %v3954
      %v3956 = vpop.xlane.xlu0 %3955
      %v3957 = vsel %vm1784, %v3890, 0.0
      %3958 = vadd.xlane.f32.xlu0 %v3957
      %v3959 = vpop.xlane.xlu0 %3958
      %v3960 = vsel %vm1784, %v3892, 0.0
      %3961 = vadd.xlane.f32.xlu0 %v3960
      %v3962 = vpop.xlane.xlu0 %3961
      %v3963 = vsel %vm1784, %v3894, 0.0
      %3964 = vadd.xlane.f32.xlu0 %v3963
      %v3965 = vpop.xlane.xlu0 %3964
      %v3966 = vsel %vm1784, %v3896, 0.0
      %3967 = vadd.xlane.f32.xlu0 %v3966
      %v3968 = vpop.xlane.xlu0 %3967
      %v3969 = vsel %vm1784, %v3898, 0.0
      %3970 = vadd.xlane.f32.xlu0 %v3969
      %v3971 = vpop.xlane.xlu0 %3970
      %v3972 = vsel %vm1784, %v3900, 0.0
      %3973 = vadd.xlane.f32.xlu0 %v3972
      %v3974 = vpop.xlane.xlu0 %3973
      %v3975 = vsel %vm1784, %v3902, 0.0
      %3976 = vadd.xlane.f32.xlu0 %v3975
      %v3977 = vpop.xlane.xlu0 %3976
      %v3978 = vsel %vm1784, %v3904, 0.0
      %3979 = vadd.xlane.f32.xlu0 %v3978
      %v3980 = vpop.xlane.xlu0 %3979
      %v3981 = vsel %vm1784, %v3906, 0.0
      %3982 = vadd.xlane.f32.xlu0 %v3981
      %v3983 = vpop.xlane.xlu0 %3982
      %v3984 = vsel %vm1784, %v3908, 0.0
      %3985 = vadd.xlane.f32.xlu0 %v3984
      %v3986 = vpop.xlane.xlu0 %3985
      %v3987 = vsel %vm1784, %v3910, 0.0
      %3988 = vadd.xlane.f32.xlu0 %v3987
      %v3989 = vpop.xlane.xlu0 %3988
      %v3990 = vsel %vm1784, %v3912, 0.0
      %3991 = vadd.xlane.f32.xlu0 %v3990
      %v3992 = vpop.xlane.xlu0 %3991
      %v3993 = vsel %vm1784, %v3914, 0.0
      %3994 = vadd.xlane.f32.xlu0 %v3993
      %v3995 = vpop.xlane.xlu0 %3994
      %v3996 = vsel %vm1784, %v3916, 0.0
      %3997 = vadd.xlane.f32.xlu0 %v3996
      %v3998 = vpop.xlane.xlu0 %3997
      %v3999 = vsel %vm1784, %v3918, 0.0
      %4000 = vadd.xlane.f32.xlu0 %v3999
      %v4001 = vpop.xlane.xlu0 %4000
      %v4002 = vsel %vm1784, %v3920, 0.0
      %4003 = vadd.xlane.f32.xlu0 %v4002
      %v4004 = vpop.xlane.xlu0 %4003
      %v4005 = vsel %vm1784, %v3922, 0.0
      %4006 = vadd.xlane.f32.xlu0 %v4005
      %v4007 = vpop.xlane.xlu0 %4006
      %v4008 = vsel %vm1784, %v3924, 0.0
      %4009 = vadd.xlane.f32.xlu0 %v4008
      %v4010 = vpop.xlane.xlu0 %4009
      %v4011 = vsel %vm1784, %v3926, 0.0
      %4012 = vadd.xlane.f32.xlu0 %v4011
      %v4013 = vpop.xlane.xlu0 %4012
      %v4014 = vsel %vm1784, %v3928, 0.0
      %4015 = vadd.xlane.f32.xlu0 %v4014
      %v4016 = vpop.xlane.xlu0 %4015
      %v4017 = vsel %vm1784, %v3930, 0.0
      %4018 = vadd.xlane.f32.xlu0 %v4017
      %v4019 = vpop.xlane.xlu0 %4018
      %v4020 = vsel %vm1784, %v3932, 0.0
      %4021 = vadd.xlane.f32.xlu0 %v4020
      %v4022 = vpop.xlane.xlu0 %4021
      %v4023 = vsel %vm1784, %v3934, 0.0
      %4024 = vadd.xlane.f32.xlu0 %v4023
      %v4025 = vpop.xlane.xlu0 %4024
      %v4026 = vsel %vm1784, %v3936, 0.0
      %4027 = vadd.xlane.f32.xlu0 %v4026
      %v4028 = vpop.xlane.xlu0 %4027
      %v4029 = vsel %vm1784, %v3938, 0.0
      %4030 = vadd.xlane.f32.xlu0 %v4029
      %v4031 = vpop.xlane.xlu0 %4030
      %v4032 = vsel %vm1784, %v3940, 0.0
      %4033 = vadd.xlane.f32.xlu0 %v4032
      %v4034 = vpop.xlane.xlu0 %4033
      %v4035 = vsel %vm1784, %v3942, 0.0
      %4036 = vadd.xlane.f32.xlu0 %v4035
      %v4037 = vpop.xlane.xlu0 %4036
      %v4038 = vsel %vm1784, %v3944, 0.0
      %4039 = vadd.xlane.f32.xlu0 %v4038
      %v4040 = vpop.xlane.xlu0 %4039
      %v4041 = vrcp.pop %v3947
      %v4042 = vrcp.pop %v3950
      %v4043 = vrcp.pop %v3953
      %v4044 = vrcp.pop %v3956
      %v4045 = vrcp.pop %v3959
      %v4046 = vrcp.pop %v3962
      %v4047 = vrcp.pop %v3965
      %v4048 = vrcp.pop %v3968
      %v4049 = vrcp.pop %v3971
      %v4050 = vrcp.pop %v3974
      %v4051 = vrcp.pop %v3977
      %v4052 = vrcp.pop %v3980
      %v4053 = vrcp.pop %v3983
      %v4054 = vrcp.pop %v3986
      %v4055 = vrcp.pop %v3989
      %v4056 = vrcp.pop %v3992
      %v4057 = vrcp.pop %v3995
      %v4058 = vrcp.pop %v3998
      %v4059 = vrcp.pop %v4001
      %v4060 = vrcp.pop %v4004
      %v4061 = vrcp.pop %v4007
      %v4062 = vrcp.pop %v4010
      %v4063 = vrcp.pop %v4013
      %v4064 = vrcp.pop %v4016
      %v4065 = vrcp.pop %v4019
      %v4066 = vrcp.pop %v4022
      %v4067 = vrcp.pop %v4025
      %v4068 = vrcp.pop %v4028
      %v4069 = vrcp.pop %v4031
      %v4070 = vrcp.pop %v4034
      %v4071 = vrcp.pop %v4037
      %v4072 = vrcp.pop %v4040
      %v4073 = vmul.f32 %v3882, %v4041
      %v4074 = vmul.f32 %v3884, %v4042
      %v4075 = vmul.f32 %v3886, %v4043
      %v4076 = vmul.f32 %v3888, %v4044
      %v4077 = vmul.f32 %v3890, %v4045
      %v4078 = vmul.f32 %v3892, %v4046
      %v4079 = vmul.f32 %v3894, %v4047
      %v4080 = vmul.f32 %v3896, %v4048
      %v4081 = vmul.f32 %v3898, %v4049
      %v4082 = vmul.f32 %v3900, %v4050
      %v4083 = vmul.f32 %v3902, %v4051
      %v4084 = vmul.f32 %v3904, %v4052
      %v4085 = vmul.f32 %v3906, %v4053
      %v4086 = vmul.f32 %v3908, %v4054
      %v4087 = vmul.f32 %v3910, %v4055
      %v4088 = vmul.f32 %v3912, %v4056
      %v4089 = vmul.f32 %v3914, %v4057
      %v4090 = vmul.f32 %v3916, %v4058
      %v4091 = vmul.f32 %v3918, %v4059
      %v4092 = vmul.f32 %v3920, %v4060
      %v4093 = vmul.f32 %v3922, %v4061
      %v4094 = vmul.f32 %v3924, %v4062
      %v4095 = vmul.f32 %v3926, %v4063
      %v4096 = vmul.f32 %v3928, %v4064
      %v4097 = vmul.f32 %v3930, %v4065
      %v4098 = vmul.f32 %v3932, %v4066
      %v4099 = vmul.f32 %v3934, %v4067
      %v4100 = vmul.f32 %v3936, %v4068
      %v4101 = vmul.f32 %v3938, %v4069
      %v4102 = vmul.f32 %v3940, %v4070
      %v4103 = vmul.f32 %v3942, %v4071
      %v4104 = vmul.f32 %v3944, %v4072
      %v4105 = vpack.c.bf16 %v4073, %v4073
      %v4106 = vpack.c.bf16 %v4074, %v4074
      %v4107 = vpack.c.bf16 %v4075, %v4075
      %v4108 = vpack.c.bf16 %v4076, %v4076
      %v4109 = vpack.c.bf16 %v4077, %v4077
      %v4110 = vpack.c.bf16 %v4078, %v4078
      %v4111 = vpack.c.bf16 %v4079, %v4079
      %v4112 = vpack.c.bf16 %v4080, %v4080
      %v4113 = vpack.c.bf16 %v4081, %v4081
      %v4114 = vpack.c.bf16 %v4082, %v4082
      %v4115 = vpack.c.bf16 %v4083, %v4083
      %v4116 = vpack.c.bf16 %v4084, %v4084
      %v4117 = vpack.c.bf16 %v4085, %v4085
      %v4118 = vpack.c.bf16 %v4086, %v4086
      %v4119 = vpack.c.bf16 %v4087, %v4087
      %v4120 = vpack.c.bf16 %v4088, %v4088
      %v4121 = vpack.c.bf16 %v4089, %v4089
      %v4122 = vpack.c.bf16 %v4090, %v4090
      %v4123 = vpack.c.bf16 %v4091, %v4091
      %v4124 = vpack.c.bf16 %v4092, %v4092
      %v4125 = vpack.c.bf16 %v4093, %v4093
      %v4126 = vpack.c.bf16 %v4094, %v4094
      %v4127 = vpack.c.bf16 %v4095, %v4095
      %v4128 = vpack.c.bf16 %v4096, %v4096
      %v4129 = vpack.c.bf16 %v4097, %v4097
      %v4130 = vpack.c.bf16 %v4098, %v4098
      %v4131 = vpack.c.bf16 %v4099, %v4099
      %v4132 = vpack.c.bf16 %v4100, %v4100
      %v4133 = vpack.c.bf16 %v4101, %v4101
      %v4134 = vpack.c.bf16 %v4102, %v4102
      %v4135 = vpack.c.bf16 %v4103, %v4103
      %v4136 = vpack.c.bf16 %v4104, %v4104
      %v4145 = vunpack.c.l.b16 %v4105
      %v4146 = vunpack.c.l.b16 %v4106
      %v4147 = vunpack.c.l.b16 %v4107
      %v4148 = vunpack.c.l.b16 %v4108
      %v4149 = vunpack.c.l.b16 %v4109
      %v4150 = vunpack.c.l.b16 %v4110
      %v4151 = vunpack.c.l.b16 %v4111
      %v4152 = vunpack.c.l.b16 %v4112
      %v4153 = vpack.c.b16 %v4146, %v4145
      %v4154 = vpack.c.b16 %v4148, %v4147
      %v4155 = vpack.c.b16 %v4150, %v4149
      %v4156 = vpack.c.b16 %v4152, %v4151
      %4157 = vrot.lane.b32.xlu0 %v1443, 48
      %v4158 = vpop.permute.xlu0 %4157
      %4159 = vrot.lane.b32.xlu0 %v1444, 48
      %v4160 = vpop.permute.xlu0 %4159
      %4161 = vrot.lane.b32.xlu0 %v1445, 48
      %v4162 = vpop.permute.xlu0 %4161
      %4163 = vrot.lane.b32.xlu0 %v1446, 48
      %v4164 = vpop.permute.xlu0 %4163
      %v4170 = vsel %vm1784, %v4153, 0
      %v4173 = vsel %vm1784, %v4154, 0
      %v4176 = vsel %vm1784, %v4155, 0
      %v4179 = vsel %vm1784, %v4156, 0
      %4181 = vmatpush.bf16.msra.mxu0 0
      %4182 = vmatpush.bf16.msra.mxu0 0
      %4183 = vmatpush.bf16.msra.mxu0 0
      %4184 = vmatpush.bf16.msra.mxu0 0
      %4185 = vmatpush.bf16.msra.mxu0 %v4164
      %4186 = vmatpush.bf16.msra.mxu0 %v4162
      %4187 = vmatpush.bf16.msra.mxu0 %v4160
      %4188 = vmatpush.bf16.msra.mxu0 %v4158
      %4189 = vmatmul.bf16.gmra.mxu0 %v4170
      %v4190 = vpop.f32.mrf.mxu0
      %v4191 = vadd.f32 0.0, %v4190
      %v4192 = vpop.f32.mrf.mxu0
      %v4193 = vadd.f32 0.0, %v4192
      %4194 = vmatmul.bf16.gmra.mxu0 %v4173
      %v4195 = vpop.f32.mrf.mxu0
      %v4196 = vadd.f32 0.0, %v4195
      %v4197 = vpop.f32.mrf.mxu0
      %v4198 = vadd.f32 0.0, %v4197
      %4199 = vmatmul.bf16.gmra.mxu0 %v4176
      %v4200 = vpop.f32.mrf.mxu0
      %v4201 = vadd.f32 0.0, %v4200
      %v4202 = vpop.f32.mrf.mxu0
      %v4203 = vadd.f32 0.0, %v4202
      %4204 = vmatmul.bf16.gmra.mxu0 %v4179
      %v4205 = vpop.f32.mrf.mxu0
      %v4206 = vadd.f32 0.0, %v4205
      %v4207 = vpop.f32.mrf.mxu0
      %v4208 = vadd.f32 0.0, %v4207
      %4209 = vdwg.mxu0
      %v4218 = vunpack.c.l.b16 %v4113
      %v4219 = vunpack.c.l.b16 %v4114
      %v4220 = vunpack.c.l.b16 %v4115
      %v4221 = vunpack.c.l.b16 %v4116
      %v4222 = vunpack.c.l.b16 %v4117
      %v4223 = vunpack.c.l.b16 %v4118
      %v4224 = vunpack.c.l.b16 %v4119
      %v4225 = vunpack.c.l.b16 %v4120
      %v4226 = vpack.c.b16 %v4219, %v4218
      %v4227 = vpack.c.b16 %v4221, %v4220
      %v4228 = vpack.c.b16 %v4223, %v4222
      %v4229 = vpack.c.b16 %v4225, %v4224
      %4230 = vrot.lane.b32.xlu0 %v1525, 48
      %v4231 = vpop.permute.xlu0 %4230
      %4232 = vrot.lane.b32.xlu0 %v1526, 48
      %v4233 = vpop.permute.xlu0 %4232
      %4234 = vrot.lane.b32.xlu0 %v1527, 48
      %v4235 = vpop.permute.xlu0 %4234
      %4236 = vrot.lane.b32.xlu0 %v1528, 48
      %v4237 = vpop.permute.xlu0 %4236
      %v4243 = vsel %vm1784, %v4226, 0
      %v4246 = vsel %vm1784, %v4227, 0
      %v4249 = vsel %vm1784, %v4228, 0
      %v4252 = vsel %vm1784, %v4229, 0
      %4254 = vmatpush.bf16.msra.mxu0 0
      %4255 = vmatpush.bf16.msra.mxu0 0
      %4256 = vmatpush.bf16.msra.mxu0 0
      %4257 = vmatpush.bf16.msra.mxu0 0
      %4258 = vmatpush.bf16.msra.mxu0 %v4237
      %4259 = vmatpush.bf16.msra.mxu0 %v4235
      %4260 = vmatpush.bf16.msra.mxu0 %v4233
      %4261 = vmatpush.bf16.msra.mxu0 %v4231
      %4262 = vmatmul.bf16.gmra.mxu0 %v4243
      %v4263 = vpop.f32.mrf.mxu0
      %v4264 = vadd.f32 0.0, %v4263
      %v4265 = vpop.f32.mrf.mxu0
      %v4266 = vadd.f32 0.0, %v4265
      %4267 = vmatmul.bf16.gmra.mxu0 %v4246
      %v4268 = vpop.f32.mrf.mxu0
      %v4269 = vadd.f32 0.0, %v4268
      %v4270 = vpop.f32.mrf.mxu0
      %v4271 = vadd.f32 0.0, %v4270
      %4272 = vmatmul.bf16.gmra.mxu0 %v4249
      %v4273 = vpop.f32.mrf.mxu0
      %v4274 = vadd.f32 0.0, %v4273
      %v4275 = vpop.f32.mrf.mxu0
      %v4276 = vadd.f32 0.0, %v4275
      %4277 = vmatmul.bf16.gmra.mxu0 %v4252
      %v4278 = vpop.f32.mrf.mxu0
      %v4279 = vadd.f32 0.0, %v4278
      %v4280 = vpop.f32.mrf.mxu0
      %v4281 = vadd.f32 0.0, %v4280
      %4282 = vdwg.mxu0
      %v4291 = vunpack.c.l.b16 %v4121
      %v4292 = vunpack.c.l.b16 %v4122
      %v4293 = vunpack.c.l.b16 %v4123
      %v4294 = vunpack.c.l.b16 %v4124
      %v4295 = vunpack.c.l.b16 %v4125
      %v4296 = vunpack.c.l.b16 %v4126
      %v4297 = vunpack.c.l.b16 %v4127
      %v4298 = vunpack.c.l.b16 %v4128
      %v4299 = vpack.c.b16 %v4292, %v4291
      %v4300 = vpack.c.b16 %v4294, %v4293
      %v4301 = vpack.c.b16 %v4296, %v4295
      %v4302 = vpack.c.b16 %v4298, %v4297
      %4303 = vrot.lane.b32.xlu0 %v1606, 48
      %v4304 = vpop.permute.xlu0 %4303
      %4305 = vrot.lane.b32.xlu0 %v1607, 48
      %v4306 = vpop.permute.xlu0 %4305
      %4307 = vrot.lane.b32.xlu0 %v1608, 48
      %v4308 = vpop.permute.xlu0 %4307
      %4309 = vrot.lane.b32.xlu0 %v1609, 48
      %v4310 = vpop.permute.xlu0 %4309
      %v4316 = vsel %vm1784, %v4299, 0
      %v4319 = vsel %vm1784, %v4300, 0
      %v4322 = vsel %vm1784, %v4301, 0
      %v4325 = vsel %vm1784, %v4302, 0
      %4327 = vmatpush.bf16.msra.mxu0 0
      %4328 = vmatpush.bf16.msra.mxu0 0
      %4329 = vmatpush.bf16.msra.mxu0 0
      %4330 = vmatpush.bf16.msra.mxu0 0
      %4331 = vmatpush.bf16.msra.mxu0 %v4310
      %4332 = vmatpush.bf16.msra.mxu0 %v4308
      %4333 = vmatpush.bf16.msra.mxu0 %v4306
      %4334 = vmatpush.bf16.msra.mxu0 %v4304
      %4335 = vmatmul.bf16.gmra.mxu0 %v4316
      %v4336 = vpop.f32.mrf.mxu0
      %v4337 = vadd.f32 0.0, %v4336
      %v4338 = vpop.f32.mrf.mxu0
      %v4339 = vadd.f32 0.0, %v4338
      %4340 = vmatmul.bf16.gmra.mxu0 %v4319
      %v4341 = vpop.f32.mrf.mxu0
      %v4342 = vadd.f32 0.0, %v4341
      %v4343 = vpop.f32.mrf.mxu0
      %v4344 = vadd.f32 0.0, %v4343
      %4345 = vmatmul.bf16.gmra.mxu0 %v4322
      %v4346 = vpop.f32.mrf.mxu0
      %v4347 = vadd.f32 0.0, %v4346
      %v4348 = vpop.f32.mrf.mxu0
      %v4349 = vadd.f32 0.0, %v4348
      %4350 = vmatmul.bf16.gmra.mxu0 %v4325
      %v4351 = vpop.f32.mrf.mxu0
      %v4352 = vadd.f32 0.0, %v4351
      %v4353 = vpop.f32.mrf.mxu0
      %v4354 = vadd.f32 0.0, %v4353
      %4355 = vdwg.mxu0
      %v4364 = vunpack.c.l.b16 %v4129
      %v4365 = vunpack.c.l.b16 %v4130
      %v4366 = vunpack.c.l.b16 %v4131
      %v4367 = vunpack.c.l.b16 %v4132
      %v4368 = vunpack.c.l.b16 %v4133
      %v4369 = vunpack.c.l.b16 %v4134
      %v4370 = vunpack.c.l.b16 %v4135
      %v4371 = vunpack.c.l.b16 %v4136
      %v4372 = vpack.c.b16 %v4365, %v4364
      %v4373 = vpack.c.b16 %v4367, %v4366
      %v4374 = vpack.c.b16 %v4369, %v4368
      %v4375 = vpack.c.b16 %v4371, %v4370
      %4376 = vrot.lane.b32.xlu0 %v1687, 48
      %v4377 = vpop.permute.xlu0 %4376
      %4378 = vrot.lane.b32.xlu0 %v1688, 48
      %v4379 = vpop.permute.xlu0 %4378
      %4380 = vrot.lane.b32.xlu0 %v1689, 48
      %v4381 = vpop.permute.xlu0 %4380
      %4382 = vrot.lane.b32.xlu0 %v1690, 48
      %v4383 = vpop.permute.xlu0 %4382
      %v4389 = vsel %vm1784, %v4372, 0
      %v4392 = vsel %vm1784, %v4373, 0
      %v4395 = vsel %vm1784, %v4374, 0
      %v4398 = vsel %vm1784, %v4375, 0
      %4400 = vmatpush.bf16.msra.mxu0 0
      %4401 = vmatpush.bf16.msra.mxu0 0
      %4402 = vmatpush.bf16.msra.mxu0 0
      %4403 = vmatpush.bf16.msra.mxu0 0
      %4404 = vmatpush.bf16.msra.mxu0 %v4383
      %4405 = vmatpush.bf16.msra.mxu0 %v4381
      %4406 = vmatpush.bf16.msra.mxu0 %v4379
      %4407 = vmatpush.bf16.msra.mxu0 %v4377
      %4408 = vmatmul.bf16.gmra.mxu0 %v4389
      %v4409 = vpop.f32.mrf.mxu0
      %v4410 = vadd.f32 0.0, %v4409
      %v4411 = vpop.f32.mrf.mxu0
      %v4412 = vadd.f32 0.0, %v4411
      %4413 = vmatmul.bf16.gmra.mxu0 %v4392
      %v4414 = vpop.f32.mrf.mxu0
      %v4415 = vadd.f32 0.0, %v4414
      %v4416 = vpop.f32.mrf.mxu0
      %v4417 = vadd.f32 0.0, %v4416
      %4418 = vmatmul.bf16.gmra.mxu0 %v4395
      %v4419 = vpop.f32.mrf.mxu0
      %v4420 = vadd.f32 0.0, %v4419
      %v4421 = vpop.f32.mrf.mxu0
      %v4422 = vadd.f32 0.0, %v4421
      %4423 = vmatmul.bf16.gmra.mxu0 %v4398
      %v4424 = vpop.f32.mrf.mxu0
      %v4425 = vadd.f32 0.0, %v4424
      %v4426 = vpop.f32.mrf.mxu0
      %v4427 = vadd.f32 0.0, %v4426
      %4428 = vdwg.mxu0
      %4429 = vrot.lane.b32.xlu0 %v1443, 104
      %v4430 = vpop.permute.xlu0 %4429
      %4431 = vrot.lane.b32.xlu0 %v1444, 104
      %v4432 = vpop.permute.xlu0 %4431
      %4433 = vrot.lane.b32.xlu0 %v1445, 104
      %v4434 = vpop.permute.xlu0 %4433
      %4435 = vrot.lane.b32.xlu0 %v1446, 104
      %v4436 = vpop.permute.xlu0 %4435
      %4437 = vrot.lane.b32.xlu0 %v1443, 72
      %v4438 = vpop.permute.xlu0 %4437
      %4439 = vrot.lane.b32.xlu0 %v1444, 72
      %v4440 = vpop.permute.xlu0 %4439
      %4441 = vrot.lane.b32.xlu0 %v1445, 72
      %v4442 = vpop.permute.xlu0 %4441
      %4443 = vrot.lane.b32.xlu0 %v1446, 72
      %v4444 = vpop.permute.xlu0 %4443
      %v4446 = vsel %vm1455, %v4430, 0
      %v4449 = vsel %vm1455, %v4432, 0
      %v4452 = vsel %vm1455, %v4434, 0
      %v4455 = vsel %vm1455, %v4436, 0
      %v4458 = vsel %vm1455, %v4438, 0
      %v4461 = vsel %vm1455, %v4440, 0
      %v4464 = vsel %vm1455, %v4442, 0
      %v4467 = vsel %vm1455, %v4444, 0
      %4469 = vmatpush.bf16.xpose.msra.mxu0 0
      %4470 = vmatpush.bf16.xpose.msra.mxu0 0
      %4471 = vmatpush.bf16.xpose.msra.mxu0 0
      %4472 = vmatpush.bf16.xpose.msra.mxu0 0
      %4473 = vmatpush.bf16.xpose.msra.mxu0 %v4467
      %4474 = vmatpush.bf16.xpose.msra.mxu0 %v4464
      %4475 = vmatpush.bf16.xpose.msra.mxu0 %v4461
      %4476 = vmatpush.bf16.xpose.msra.mxu0 %v4458
      %4477 = vmatmul.bf16.gmra.mxu0 %v4446
      %v4478 = vpop.f32.mrf.mxu0
      %v4479 = vadd.f32 %v1355, %v4478
      %v4480 = vpop.f32.mrf.mxu0
      %v4481 = vadd.f32 %v1356, %v4480
      %4482 = vmatmul.bf16.gmra.mxu0 %v4449
      %v4483 = vpop.f32.mrf.mxu0
      %v4484 = vadd.f32 %v1357, %v4483
      %v4485 = vpop.f32.mrf.mxu0
      %v4486 = vadd.f32 %v1358, %v4485
      %4487 = vmatmul.bf16.gmra.mxu0 %v4452
      %v4488 = vpop.f32.mrf.mxu0
      %v4489 = vadd.f32 %v1359, %v4488
      %v4490 = vpop.f32.mrf.mxu0
      %v4491 = vadd.f32 %v1360, %v4490
      %4492 = vmatmul.bf16.gmra.mxu0 %v4455
      %v4493 = vpop.f32.mrf.mxu0
      %v4494 = vadd.f32 %v1361, %v4493
      %v4495 = vpop.f32.mrf.mxu0
      %v4496 = vadd.f32 %v1362, %v4495
      %4497 = vdwg.mxu0
      %4498 = vrot.lane.b32.xlu0 %v1525, 104
      %v4499 = vpop.permute.xlu0 %4498
      %4500 = vrot.lane.b32.xlu0 %v1526, 104
      %v4501 = vpop.permute.xlu0 %4500
      %4502 = vrot.lane.b32.xlu0 %v1527, 104
      %v4503 = vpop.permute.xlu0 %4502
      %4504 = vrot.lane.b32.xlu0 %v1528, 104
      %v4505 = vpop.permute.xlu0 %4504
      %4506 = vrot.lane.b32.xlu0 %v1525, 72
      %v4507 = vpop.permute.xlu0 %4506
      %4508 = vrot.lane.b32.xlu0 %v1526, 72
      %v4509 = vpop.permute.xlu0 %4508
      %4510 = vrot.lane.b32.xlu0 %v1527, 72
      %v4511 = vpop.permute.xlu0 %4510
      %4512 = vrot.lane.b32.xlu0 %v1528, 72
      %v4513 = vpop.permute.xlu0 %4512
      %v4515 = vsel %vm1455, %v4499, 0
      %v4518 = vsel %vm1455, %v4501, 0
      %v4521 = vsel %vm1455, %v4503, 0
      %v4524 = vsel %vm1455, %v4505, 0
      %v4527 = vsel %vm1455, %v4507, 0
      %v4530 = vsel %vm1455, %v4509, 0
      %v4533 = vsel %vm1455, %v4511, 0
      %v4536 = vsel %vm1455, %v4513, 0
      %4538 = vmatpush.bf16.xpose.msra.mxu0 0
      %4539 = vmatpush.bf16.xpose.msra.mxu0 0
      %4540 = vmatpush.bf16.xpose.msra.mxu0 0
      %4541 = vmatpush.bf16.xpose.msra.mxu0 0
      %4542 = vmatpush.bf16.xpose.msra.mxu0 %v4536
      %4543 = vmatpush.bf16.xpose.msra.mxu0 %v4533
      %4544 = vmatpush.bf16.xpose.msra.mxu0 %v4530
      %4545 = vmatpush.bf16.xpose.msra.mxu0 %v4527
      %4546 = vmatmul.bf16.gmra.mxu0 %v4515
      %v4547 = vpop.f32.mrf.mxu0
      %v4548 = vadd.f32 %v1355, %v4547
      %v4549 = vpop.f32.mrf.mxu0
      %v4550 = vadd.f32 %v1356, %v4549
      %4551 = vmatmul.bf16.gmra.mxu0 %v4518
      %v4552 = vpop.f32.mrf.mxu0
      %v4553 = vadd.f32 %v1357, %v4552
      %v4554 = vpop.f32.mrf.mxu0
      %v4555 = vadd.f32 %v1358, %v4554
      %4556 = vmatmul.bf16.gmra.mxu0 %v4521
      %v4557 = vpop.f32.mrf.mxu0
      %v4558 = vadd.f32 %v1359, %v4557
      %v4559 = vpop.f32.mrf.mxu0
      %v4560 = vadd.f32 %v1360, %v4559
      %4561 = vmatmul.bf16.gmra.mxu0 %v4524
      %v4562 = vpop.f32.mrf.mxu0
      %v4563 = vadd.f32 %v1361, %v4562
      %v4564 = vpop.f32.mrf.mxu0
      %v4565 = vadd.f32 %v1362, %v4564
      %4566 = vdwg.mxu0
      %4567 = vrot.lane.b32.xlu0 %v1606, 104
      %v4568 = vpop.permute.xlu0 %4567
      %4569 = vrot.lane.b32.xlu0 %v1607, 104
      %v4570 = vpop.permute.xlu0 %4569
      %4571 = vrot.lane.b32.xlu0 %v1608, 104
      %v4572 = vpop.permute.xlu0 %4571
      %4573 = vrot.lane.b32.xlu0 %v1609, 104
      %v4574 = vpop.permute.xlu0 %4573
      %4575 = vrot.lane.b32.xlu0 %v1606, 72
      %v4576 = vpop.permute.xlu0 %4575
      %4577 = vrot.lane.b32.xlu0 %v1607, 72
      %v4578 = vpop.permute.xlu0 %4577
      %4579 = vrot.lane.b32.xlu0 %v1608, 72
      %v4580 = vpop.permute.xlu0 %4579
      %4581 = vrot.lane.b32.xlu0 %v1609, 72
      %v4582 = vpop.permute.xlu0 %4581
      %v4584 = vsel %vm1455, %v4568, 0
      %v4587 = vsel %vm1455, %v4570, 0
      %v4590 = vsel %vm1455, %v4572, 0
      %v4593 = vsel %vm1455, %v4574, 0
      %v4596 = vsel %vm1455, %v4576, 0
      %v4599 = vsel %vm1455, %v4578, 0
      %v4602 = vsel %vm1455, %v4580, 0
      %v4605 = vsel %vm1455, %v4582, 0
      %4607 = vmatpush.bf16.xpose.msra.mxu0 0
      %4608 = vmatpush.bf16.xpose.msra.mxu0 0
      %4609 = vmatpush.bf16.xpose.msra.mxu0 0
      %4610 = vmatpush.bf16.xpose.msra.mxu0 0
      %4611 = vmatpush.bf16.xpose.msra.mxu0 %v4605
      %4612 = vmatpush.bf16.xpose.msra.mxu0 %v4602
      %4613 = vmatpush.bf16.xpose.msra.mxu0 %v4599
      %4614 = vmatpush.bf16.xpose.msra.mxu0 %v4596
      %4615 = vmatmul.bf16.gmra.mxu0 %v4584
      %v4616 = vpop.f32.mrf.mxu0
      %v4617 = vadd.f32 %v1355, %v4616
      %v4618 = vpop.f32.mrf.mxu0
      %v4619 = vadd.f32 %v1356, %v4618
      %4620 = vmatmul.bf16.gmra.mxu0 %v4587
      %v4621 = vpop.f32.mrf.mxu0
      %v4622 = vadd.f32 %v1357, %v4621
      %v4623 = vpop.f32.mrf.mxu0
      %v4624 = vadd.f32 %v1358, %v4623
      %4625 = vmatmul.bf16.gmra.mxu0 %v4590
      %v4626 = vpop.f32.mrf.mxu0
      %v4627 = vadd.f32 %v1359, %v4626
      %v4628 = vpop.f32.mrf.mxu0
      %v4629 = vadd.f32 %v1360, %v4628
      %4630 = vmatmul.bf16.gmra.mxu0 %v4593
      %v4631 = vpop.f32.mrf.mxu0
      %v4632 = vadd.f32 %v1361, %v4631
      %v4633 = vpop.f32.mrf.mxu0
      %v4634 = vadd.f32 %v1362, %v4633
      %4635 = vdwg.mxu0
      %4636 = vrot.lane.b32.xlu0 %v1687, 104
      %v4637 = vpop.permute.xlu0 %4636
      %4638 = vrot.lane.b32.xlu0 %v1688, 104
      %v4639 = vpop.permute.xlu0 %4638
      %4640 = vrot.lane.b32.xlu0 %v1689, 104
      %v4641 = vpop.permute.xlu0 %4640
      %4642 = vrot.lane.b32.xlu0 %v1690, 104
      %v4643 = vpop.permute.xlu0 %4642
      %4644 = vrot.lane.b32.xlu0 %v1687, 72
      %v4645 = vpop.permute.xlu0 %4644
      %4646 = vrot.lane.b32.xlu0 %v1688, 72
      %v4647 = vpop.permute.xlu0 %4646
      %4648 = vrot.lane.b32.xlu0 %v1689, 72
      %v4649 = vpop.permute.xlu0 %4648
      %4650 = vrot.lane.b32.xlu0 %v1690, 72
      %v4651 = vpop.permute.xlu0 %4650
      %v4653 = vsel %vm1455, %v4637, 0
      %v4656 = vsel %vm1455, %v4639, 0
      %v4659 = vsel %vm1455, %v4641, 0
      %v4662 = vsel %vm1455, %v4643, 0
      %v4665 = vsel %vm1455, %v4645, 0
      %v4668 = vsel %vm1455, %v4647, 0
      %v4671 = vsel %vm1455, %v4649, 0
      %v4674 = vsel %vm1455, %v4651, 0
      %4676 = vmatpush.bf16.xpose.msra.mxu0 0
      %4677 = vmatpush.bf16.xpose.msra.mxu0 0
      %4678 = vmatpush.bf16.xpose.msra.mxu0 0
      %4679 = vmatpush.bf16.xpose.msra.mxu0 0
      %4680 = vmatpush.bf16.xpose.msra.mxu0 %v4674
      %4681 = vmatpush.bf16.xpose.msra.mxu0 %v4671
      %4682 = vmatpush.bf16.xpose.msra.mxu0 %v4668
      %4683 = vmatpush.bf16.xpose.msra.mxu0 %v4665
      %4684 = vmatmul.bf16.gmra.mxu0 %v4653
      %v4685 = vpop.f32.mrf.mxu0
      %v4686 = vadd.f32 %v1355, %v4685
      %v4687 = vpop.f32.mrf.mxu0
      %v4688 = vadd.f32 %v1356, %v4687
      %4689 = vmatmul.bf16.gmra.mxu0 %v4656
      %v4690 = vpop.f32.mrf.mxu0
      %v4691 = vadd.f32 %v1357, %v4690
      %v4692 = vpop.f32.mrf.mxu0
      %v4693 = vadd.f32 %v1358, %v4692
      %4694 = vmatmul.bf16.gmra.mxu0 %v4659
      %v4695 = vpop.f32.mrf.mxu0
      %v4696 = vadd.f32 %v1359, %v4695
      %v4697 = vpop.f32.mrf.mxu0
      %v4698 = vadd.f32 %v1360, %v4697
      %4699 = vmatmul.bf16.gmra.mxu0 %v4662
      %v4700 = vpop.f32.mrf.mxu0
      %v4701 = vadd.f32 %v1361, %v4700
      %v4702 = vpop.f32.mrf.mxu0
      %v4703 = vadd.f32 %v1362, %v4702
      %4704 = vdwg.mxu0
      %v4705 = vadd.f32 %v4479, %v1363
      %v4706 = vadd.f32 %v4481, %v1364
      %v4707 = vadd.f32 %v4484, %v1365
      %v4708 = vadd.f32 %v4486, %v1366
      %v4709 = vadd.f32 %v4489, %v1367
      %v4710 = vadd.f32 %v4491, %v1368
      %v4711 = vadd.f32 %v4494, %v1369
      %v4712 = vadd.f32 %v4496, %v1370
      %v4713 = vadd.f32 %v4548, %v1371
      %v4714 = vadd.f32 %v4550, %v1372
      %v4715 = vadd.f32 %v4553, %v1373
      %v4716 = vadd.f32 %v4555, %v1374
      %v4717 = vadd.f32 %v4558, %v1375
      %v4718 = vadd.f32 %v4560, %v1376
      %v4719 = vadd.f32 %v4563, %v1377
      %v4720 = vadd.f32 %v4565, %v1378
      %v4721 = vadd.f32 %v4617, %v1379
      %v4722 = vadd.f32 %v4619, %v1380
      %v4723 = vadd.f32 %v4622, %v1381
      %v4724 = vadd.f32 %v4624, %v1382
      %v4725 = vadd.f32 %v4627, %v1383
      %v4726 = vadd.f32 %v4629, %v1384
      %v4727 = vadd.f32 %v4632, %v1385
      %v4728 = vadd.f32 %v4634, %v1386
      %v4729 = vadd.f32 %v4686, %v1387
      %v4730 = vadd.f32 %v4688, %v1388
      %v4731 = vadd.f32 %v4691, %v1389
      %v4732 = vadd.f32 %v4693, %v1390
      %v4733 = vadd.f32 %v4696, %v1391
      %v4734 = vadd.f32 %v4698, %v1392
      %v4735 = vadd.f32 %v4701, %v1393
      %v4736 = vadd.f32 %v4703, %v1394
      %v4737 = vsel %vm1784, %v4705, -inf
      %4738 = vmax.xlane.f32.xlu0 %v4737
      %v4739 = vpop.xlane.xlu0 %4738
      %v4740 = vsel %vm1784, %v4706, -inf
      %4741 = vmax.xlane.f32.xlu0 %v4740
      %v4742 = vpop.xlane.xlu0 %4741
      %v4743 = vsel %vm1784, %v4707, -inf
      %4744 = vmax.xlane.f32.xlu0 %v4743
      %v4745 = vpop.xlane.xlu0 %4744
      %v4746 = vsel %vm1784, %v4708, -inf
      %4747 = vmax.xlane.f32.xlu0 %v4746
      %v4748 = vpop.xlane.xlu0 %4747
      %v4749 = vsel %vm1784, %v4709, -inf
      %4750 = vmax.xlane.f32.xlu0 %v4749
      %v4751 = vpop.xlane.xlu0 %4750
      %v4752 = vsel %vm1784, %v4710, -inf
      %4753 = vmax.xlane.f32.xlu0 %v4752
      %v4754 = vpop.xlane.xlu0 %4753
      %v4755 = vsel %vm1784, %v4711, -inf
      %4756 = vmax.xlane.f32.xlu0 %v4755
      %v4757 = vpop.xlane.xlu0 %4756
      %v4758 = vsel %vm1784, %v4712, -inf
      %4759 = vmax.xlane.f32.xlu0 %v4758
      %v4760 = vpop.xlane.xlu0 %4759
      %v4761 = vsel %vm1784, %v4713, -inf
      %4762 = vmax.xlane.f32.xlu0 %v4761
      %v4763 = vpop.xlane.xlu0 %4762
      %v4764 = vsel %vm1784, %v4714, -inf
      %4765 = vmax.xlane.f32.xlu0 %v4764
      %v4766 = vpop.xlane.xlu0 %4765
      %v4767 = vsel %vm1784, %v4715, -inf
      %4768 = vmax.xlane.f32.xlu0 %v4767
      %v4769 = vpop.xlane.xlu0 %4768
      %v4770 = vsel %vm1784, %v4716, -inf
      %4771 = vmax.xlane.f32.xlu0 %v4770
      %v4772 = vpop.xlane.xlu0 %4771
      %v4773 = vsel %vm1784, %v4717, -inf
      %4774 = vmax.xlane.f32.xlu0 %v4773
      %v4775 = vpop.xlane.xlu0 %4774
      %v4776 = vsel %vm1784, %v4718, -inf
      %4777 = vmax.xlane.f32.xlu0 %v4776
      %v4778 = vpop.xlane.xlu0 %4777
      %v4779 = vsel %vm1784, %v4719, -inf
      %4780 = vmax.xlane.f32.xlu0 %v4779
      %v4781 = vpop.xlane.xlu0 %4780
      %v4782 = vsel %vm1784, %v4720, -inf
      %4783 = vmax.xlane.f32.xlu0 %v4782
      %v4784 = vpop.xlane.xlu0 %4783
      %v4785 = vsel %vm1784, %v4721, -inf
      %4786 = vmax.xlane.f32.xlu0 %v4785
      %v4787 = vpop.xlane.xlu0 %4786
      %v4788 = vsel %vm1784, %v4722, -inf
      %4789 = vmax.xlane.f32.xlu0 %v4788
      %v4790 = vpop.xlane.xlu0 %4789
      %v4791 = vsel %vm1784, %v4723, -inf
      %4792 = vmax.xlane.f32.xlu0 %v4791
      %v4793 = vpop.xlane.xlu0 %4792
      %v4794 = vsel %vm1784, %v4724, -inf
      %4795 = vmax.xlane.f32.xlu0 %v4794
      %v4796 = vpop.xlane.xlu0 %4795
      %v4797 = vsel %vm1784, %v4725, -inf
      %4798 = vmax.xlane.f32.xlu0 %v4797
      %v4799 = vpop.xlane.xlu0 %4798
      %v4800 = vsel %vm1784, %v4726, -inf
      %4801 = vmax.xlane.f32.xlu0 %v4800
      %v4802 = vpop.xlane.xlu0 %4801
      %v4803 = vsel %vm1784, %v4727, -inf
      %4804 = vmax.xlane.f32.xlu0 %v4803
      %v4805 = vpop.xlane.xlu0 %4804
      %v4806 = vsel %vm1784, %v4728, -inf
      %4807 = vmax.xlane.f32.xlu0 %v4806
      %v4808 = vpop.xlane.xlu0 %4807
      %v4809 = vsel %vm1784, %v4729, -inf
      %4810 = vmax.xlane.f32.xlu0 %v4809
      %v4811 = vpop.xlane.xlu0 %4810
      %v4812 = vsel %vm1784, %v4730, -inf
      %4813 = vmax.xlane.f32.xlu0 %v4812
      %v4814 = vpop.xlane.xlu0 %4813
      %v4815 = vsel %vm1784, %v4731, -inf
      %4816 = vmax.xlane.f32.xlu0 %v4815
      %v4817 = vpop.xlane.xlu0 %4816
      %v4818 = vsel %vm1784, %v4732, -inf
      %4819 = vmax.xlane.f32.xlu0 %v4818
      %v4820 = vpop.xlane.xlu0 %4819
      %v4821 = vsel %vm1784, %v4733, -inf
      %4822 = vmax.xlane.f32.xlu0 %v4821
      %v4823 = vpop.xlane.xlu0 %4822
      %v4824 = vsel %vm1784, %v4734, -inf
      %4825 = vmax.xlane.f32.xlu0 %v4824
      %v4826 = vpop.xlane.xlu0 %4825
      %v4827 = vsel %vm1784, %v4735, -inf
      %4828 = vmax.xlane.f32.xlu0 %v4827
      %v4829 = vpop.xlane.xlu0 %4828
      %v4830 = vsel %vm1784, %v4736, -inf
      %4831 = vmax.xlane.f32.xlu0 %v4830
      %v4832 = vpop.xlane.xlu0 %4831
      %v4833 = vsub.f32 %v4705, %v4739
      %v4834 = vsub.f32 %v4706, %v4742
      %v4835 = vsub.f32 %v4707, %v4745
      %v4836 = vsub.f32 %v4708, %v4748
      %v4837 = vsub.f32 %v4709, %v4751
      %v4838 = vsub.f32 %v4710, %v4754
      %v4839 = vsub.f32 %v4711, %v4757
      %v4840 = vsub.f32 %v4712, %v4760
      %v4841 = vsub.f32 %v4713, %v4763
      %v4842 = vsub.f32 %v4714, %v4766
      %v4843 = vsub.f32 %v4715, %v4769
      %v4844 = vsub.f32 %v4716, %v4772
      %v4845 = vsub.f32 %v4717, %v4775
      %v4846 = vsub.f32 %v4718, %v4778
      %v4847 = vsub.f32 %v4719, %v4781
      %v4848 = vsub.f32 %v4720, %v4784
      %v4849 = vsub.f32 %v4721, %v4787
      %v4850 = vsub.f32 %v4722, %v4790
      %v4851 = vsub.f32 %v4723, %v4793
      %v4852 = vsub.f32 %v4724, %v4796
      %v4853 = vsub.f32 %v4725, %v4799
      %v4854 = vsub.f32 %v4726, %v4802
      %v4855 = vsub.f32 %v4727, %v4805
      %v4856 = vsub.f32 %v4728, %v4808
      %v4857 = vsub.f32 %v4729, %v4811
      %v4858 = vsub.f32 %v4730, %v4814
      %v4859 = vsub.f32 %v4731, %v4817
      %v4860 = vsub.f32 %v4732, %v4820
      %v4861 = vsub.f32 %v4733, %v4823
      %v4862 = vsub.f32 %v4734, %v4826
      %v4863 = vsub.f32 %v4735, %v4829
      %v4864 = vsub.f32 %v4736, %v4832
      %v4865 = vmul.f32 %v4833, 1.442695
      %v4866 = vpow.pop %v4865
      %v4867 = vmul.f32 %v4834, 1.442695
      %v4868 = vpow.pop %v4867
      %v4869 = vmul.f32 %v4835, 1.442695
      %v4870 = vpow.pop %v4869
      %v4871 = vmul.f32 %v4836, 1.442695
      %v4872 = vpow.pop %v4871
      %v4873 = vmul.f32 %v4837, 1.442695
      %v4874 = vpow.pop %v4873
      %v4875 = vmul.f32 %v4838, 1.442695
      %v4876 = vpow.pop %v4875
      %v4877 = vmul.f32 %v4839, 1.442695
      %v4878 = vpow.pop %v4877
      %v4879 = vmul.f32 %v4840, 1.442695
      %v4880 = vpow.pop %v4879
      %v4881 = vmul.f32 %v4841, 1.442695
      %v4882 = vpow.pop %v4881
      %v4883 = vmul.f32 %v4842, 1.442695
      %v4884 = vpow.pop %v4883
      %v4885 = vmul.f32 %v4843, 1.442695
      %v4886 = vpow.pop %v4885
      %v4887 = vmul.f32 %v4844, 1.442695
      %v4888 = vpow.pop %v4887
      %v4889 = vmul.f32 %v4845, 1.442695
      %v4890 = vpow.pop %v4889
      %v4891 = vmul.f32 %v4846, 1.442695
      %v4892 = vpow.pop %v4891
      %v4893 = vmul.f32 %v4847, 1.442695
      %v4894 = vpow.pop %v4893
      %v4895 = vmul.f32 %v4848, 1.442695
      %v4896 = vpow.pop %v4895
      %v4897 = vmul.f32 %v4849, 1.442695
      %v4898 = vpow.pop %v4897
      %v4899 = vmul.f32 %v4850, 1.442695
      %v4900 = vpow.pop %v4899
      %v4901 = vmul.f32 %v4851, 1.442695
      %v4902 = vpow.pop %v4901
      %v4903 = vmul.f32 %v4852, 1.442695
      %v4904 = vpow.pop %v4903
      %v4905 = vmul.f32 %v4853, 1.442695
      %v4906 = vpow.pop %v4905
      %v4907 = vmul.f32 %v4854, 1.442695
      %v4908 = vpow.pop %v4907
      %v4909 = vmul.f32 %v4855, 1.442695
      %v4910 = vpow.pop %v4909
      %v4911 = vmul.f32 %v4856, 1.442695
      %v4912 = vpow.pop %v4911
      %v4913 = vmul.f32 %v4857, 1.442695
      %v4914 = vpow.pop %v4913
      %v4915 = vmul.f32 %v4858, 1.442695
      %v4916 = vpow.pop %v4915
      %v4917 = vmul.f32 %v4859, 1.442695
      %v4918 = vpow.pop %v4917
      %v4919 = vmul.f32 %v4860, 1.442695
      %v4920 = vpow.pop %v4919
      %v4921 = vmul.f32 %v4861, 1.442695
      %v4922 = vpow.pop %v4921
      %v4923 = vmul.f32 %v4862, 1.442695
      %v4924 = vpow.pop %v4923
      %v4925 = vmul.f32 %v4863, 1.442695
      %v4926 = vpow.pop %v4925
      %v4927 = vmul.f32 %v4864, 1.442695
      %v4928 = vpow.pop %v4927
      %v4929 = vsel %vm1784, %v4866, 0.0
      %4930 = vadd.xlane.f32.xlu0 %v4929
      %v4931 = vpop.xlane.xlu0 %4930
      %v4932 = vsel %vm1784, %v4868, 0.0
      %4933 = vadd.xlane.f32.xlu0 %v4932
      %v4934 = vpop.xlane.xlu0 %4933
      %v4935 = vsel %vm1784, %v4870, 0.0
      %4936 = vadd.xlane.f32.xlu0 %v4935
      %v4937 = vpop.xlane.xlu0 %4936
      %v4938 = vsel %vm1784, %v4872, 0.0
      %4939 = vadd.xlane.f32.xlu0 %v4938
      %v4940 = vpop.xlane.xlu0 %4939
      %v4941 = vsel %vm1784, %v4874, 0.0
      %4942 = vadd.xlane.f32.xlu0 %v4941
      %v4943 = vpop.xlane.xlu0 %4942
      %v4944 = vsel %vm1784, %v4876, 0.0
      %4945 = vadd.xlane.f32.xlu0 %v4944
      %v4946 = vpop.xlane.xlu0 %4945
      %v4947 = vsel %vm1784, %v4878, 0.0
      %4948 = vadd.xlane.f32.xlu0 %v4947
      %v4949 = vpop.xlane.xlu0 %4948
      %v4950 = vsel %vm1784, %v4880, 0.0
      %4951 = vadd.xlane.f32.xlu0 %v4950
      %v4952 = vpop.xlane.xlu0 %4951
      %v4953 = vsel %vm1784, %v4882, 0.0
      %4954 = vadd.xlane.f32.xlu0 %v4953
      %v4955 = vpop.xlane.xlu0 %4954
      %v4956 = vsel %vm1784, %v4884, 0.0
      %4957 = vadd.xlane.f32.xlu0 %v4956
      %v4958 = vpop.xlane.xlu0 %4957
      %v4959 = vsel %vm1784, %v4886, 0.0
      %4960 = vadd.xlane.f32.xlu0 %v4959
      %v4961 = vpop.xlane.xlu0 %4960
      %v4962 = vsel %vm1784, %v4888, 0.0
      %4963 = vadd.xlane.f32.xlu0 %v4962
      %v4964 = vpop.xlane.xlu0 %4963
      %v4965 = vsel %vm1784, %v4890, 0.0
      %4966 = vadd.xlane.f32.xlu0 %v4965
      %v4967 = vpop.xlane.xlu0 %4966
      %v4968 = vsel %vm1784, %v4892, 0.0
      %4969 = vadd.xlane.f32.xlu0 %v4968
      %v4970 = vpop.xlane.xlu0 %4969
      %v4971 = vsel %vm1784, %v4894, 0.0
      %4972 = vadd.xlane.f32.xlu0 %v4971
      %v4973 = vpop.xlane.xlu0 %4972
      %v4974 = vsel %vm1784, %v4896, 0.0
      %4975 = vadd.xlane.f32.xlu0 %v4974
      %v4976 = vpop.xlane.xlu0 %4975
      %v4977 = vsel %vm1784, %v4898, 0.0
      %4978 = vadd.xlane.f32.xlu0 %v4977
      %v4979 = vpop.xlane.xlu0 %4978
      %v4980 = vsel %vm1784, %v4900, 0.0
      %4981 = vadd.xlane.f32.xlu0 %v4980
      %v4982 = vpop.xlane.xlu0 %4981
      %v4983 = vsel %vm1784, %v4902, 0.0
      %4984 = vadd.xlane.f32.xlu0 %v4983
      %v4985 = vpop.xlane.xlu0 %4984
      %v4986 = vsel %vm1784, %v4904, 0.0
      %4987 = vadd.xlane.f32.xlu0 %v4986
      %v4988 = vpop.xlane.xlu0 %4987
      %v4989 = vsel %vm1784, %v4906, 0.0
      %4990 = vadd.xlane.f32.xlu0 %v4989
      %v4991 = vpop.xlane.xlu0 %4990
      %v4992 = vsel %vm1784, %v4908, 0.0
      %4993 = vadd.xlane.f32.xlu0 %v4992
      %v4994 = vpop.xlane.xlu0 %4993
      %v4995 = vsel %vm1784, %v4910, 0.0
      %4996 = vadd.xlane.f32.xlu0 %v4995
      %v4997 = vpop.xlane.xlu0 %4996
      %v4998 = vsel %vm1784, %v4912, 0.0
      %4999 = vadd.xlane.f32.xlu0 %v4998
      %v5000 = vpop.xlane.xlu0 %4999
      %v5001 = vsel %vm1784, %v4914, 0.0
      %5002 = vadd.xlane.f32.xlu0 %v5001
      %v5003 = vpop.xlane.xlu0 %5002
      %v5004 = vsel %vm1784, %v4916, 0.0
      %5005 = vadd.xlane.f32.xlu0 %v5004
      %v5006 = vpop.xlane.xlu0 %5005
      %v5007 = vsel %vm1784, %v4918, 0.0
      %5008 = vadd.xlane.f32.xlu0 %v5007
      %v5009 = vpop.xlane.xlu0 %5008
      %v5010 = vsel %vm1784, %v4920, 0.0
      %5011 = vadd.xlane.f32.xlu0 %v5010
      %v5012 = vpop.xlane.xlu0 %5011
      %v5013 = vsel %vm1784, %v4922, 0.0
      %5014 = vadd.xlane.f32.xlu0 %v5013
      %v5015 = vpop.xlane.xlu0 %5014
      %v5016 = vsel %vm1784, %v4924, 0.0
      %5017 = vadd.xlane.f32.xlu0 %v5016
      %v5018 = vpop.xlane.xlu0 %5017
      %v5019 = vsel %vm1784, %v4926, 0.0
      %5020 = vadd.xlane.f32.xlu0 %v5019
      %v5021 = vpop.xlane.xlu0 %5020
      %v5022 = vsel %vm1784, %v4928, 0.0
      %5023 = vadd.xlane.f32.xlu0 %v5022
      %v5024 = vpop.xlane.xlu0 %5023
      %v5025 = vrcp.pop %v4931
      %v5026 = vrcp.pop %v4934
      %v5027 = vrcp.pop %v4937
      %v5028 = vrcp.pop %v4940
      %v5029 = vrcp.pop %v4943
      %v5030 = vrcp.pop %v4946
      %v5031 = vrcp.pop %v4949
      %v5032 = vrcp.pop %v4952
      %v5033 = vrcp.pop %v4955
      %v5034 = vrcp.pop %v4958
      %v5035 = vrcp.pop %v4961
      %v5036 = vrcp.pop %v4964
      %v5037 = vrcp.pop %v4967
      %v5038 = vrcp.pop %v4970
      %v5039 = vrcp.pop %v4973
      %v5040 = vrcp.pop %v4976
      %v5041 = vrcp.pop %v4979
      %v5042 = vrcp.pop %v4982
      %v5043 = vrcp.pop %v4985
      %v5044 = vrcp.pop %v4988
      %v5045 = vrcp.pop %v4991
      %v5046 = vrcp.pop %v4994
      %v5047 = vrcp.pop %v4997
      %v5048 = vrcp.pop %v5000
      %v5049 = vrcp.pop %v5003
      %v5050 = vrcp.pop %v5006
      %v5051 = vrcp.pop %v5009
      %v5052 = vrcp.pop %v5012
      %v5053 = vrcp.pop %v5015
      %v5054 = vrcp.pop %v5018
      %v5055 = vrcp.pop %v5021
      %v5056 = vrcp.pop %v5024
      %v5057 = vmul.f32 %v4866, %v5025
      %v5058 = vmul.f32 %v4868, %v5026
      %v5059 = vmul.f32 %v4870, %v5027
      %v5060 = vmul.f32 %v4872, %v5028
      %v5061 = vmul.f32 %v4874, %v5029
      %v5062 = vmul.f32 %v4876, %v5030
      %v5063 = vmul.f32 %v4878, %v5031
      %v5064 = vmul.f32 %v4880, %v5032
      %v5065 = vmul.f32 %v4882, %v5033
      %v5066 = vmul.f32 %v4884, %v5034
      %v5067 = vmul.f32 %v4886, %v5035
      %v5068 = vmul.f32 %v4888, %v5036
      %v5069 = vmul.f32 %v4890, %v5037
      %v5070 = vmul.f32 %v4892, %v5038
      %v5071 = vmul.f32 %v4894, %v5039
      %v5072 = vmul.f32 %v4896, %v5040
      %v5073 = vmul.f32 %v4898, %v5041
      %v5074 = vmul.f32 %v4900, %v5042
      %v5075 = vmul.f32 %v4902, %v5043
      %v5076 = vmul.f32 %v4904, %v5044
      %v5077 = vmul.f32 %v4906, %v5045
      %v5078 = vmul.f32 %v4908, %v5046
      %v5079 = vmul.f32 %v4910, %v5047
      %v5080 = vmul.f32 %v4912, %v5048
      %v5081 = vmul.f32 %v4914, %v5049
      %v5082 = vmul.f32 %v4916, %v5050
      %v5083 = vmul.f32 %v4918, %v5051
      %v5084 = vmul.f32 %v4920, %v5052
      %v5085 = vmul.f32 %v4922, %v5053
      %v5086 = vmul.f32 %v4924, %v5054
      %v5087 = vmul.f32 %v4926, %v5055
      %v5088 = vmul.f32 %v4928, %v5056
      %v5089 = vpack.c.bf16 %v5057, %v5057
      %v5090 = vpack.c.bf16 %v5058, %v5058
      %v5091 = vpack.c.bf16 %v5059, %v5059
      %v5092 = vpack.c.bf16 %v5060, %v5060
      %v5093 = vpack.c.bf16 %v5061, %v5061
      %v5094 = vpack.c.bf16 %v5062, %v5062
      %v5095 = vpack.c.bf16 %v5063, %v5063
      %v5096 = vpack.c.bf16 %v5064, %v5064
      %v5097 = vpack.c.bf16 %v5065, %v5065
      %v5098 = vpack.c.bf16 %v5066, %v5066
      %v5099 = vpack.c.bf16 %v5067, %v5067
      %v5100 = vpack.c.bf16 %v5068, %v5068
      %v5101 = vpack.c.bf16 %v5069, %v5069
      %v5102 = vpack.c.bf16 %v5070, %v5070
      %v5103 = vpack.c.bf16 %v5071, %v5071
      %v5104 = vpack.c.bf16 %v5072, %v5072
      %v5105 = vpack.c.bf16 %v5073, %v5073
      %v5106 = vpack.c.bf16 %v5074, %v5074
      %v5107 = vpack.c.bf16 %v5075, %v5075
      %v5108 = vpack.c.bf16 %v5076, %v5076
      %v5109 = vpack.c.bf16 %v5077, %v5077
      %v5110 = vpack.c.bf16 %v5078, %v5078
      %v5111 = vpack.c.bf16 %v5079, %v5079
      %v5112 = vpack.c.bf16 %v5080, %v5080
      %v5113 = vpack.c.bf16 %v5081, %v5081
      %v5114 = vpack.c.bf16 %v5082, %v5082
      %v5115 = vpack.c.bf16 %v5083, %v5083
      %v5116 = vpack.c.bf16 %v5084, %v5084
      %v5117 = vpack.c.bf16 %v5085, %v5085
      %v5118 = vpack.c.bf16 %v5086, %v5086
      %v5119 = vpack.c.bf16 %v5087, %v5087
      %v5120 = vpack.c.bf16 %v5088, %v5088
      %v5129 = vunpack.c.l.b16 %v5089
      %v5130 = vunpack.c.l.b16 %v5090
      %v5131 = vunpack.c.l.b16 %v5091
      %v5132 = vunpack.c.l.b16 %v5092
      %v5133 = vunpack.c.l.b16 %v5093
      %v5134 = vunpack.c.l.b16 %v5094
      %v5135 = vunpack.c.l.b16 %v5095
      %v5136 = vunpack.c.l.b16 %v5096
      %v5137 = vpack.c.b16 %v5130, %v5129
      %v5138 = vpack.c.b16 %v5132, %v5131
      %v5139 = vpack.c.b16 %v5134, %v5133
      %v5140 = vpack.c.b16 %v5136, %v5135
      %5141 = vrot.lane.b32.xlu0 %v1443, 40
      %v5142 = vpop.permute.xlu0 %5141
      %5143 = vrot.lane.b32.xlu0 %v1444, 40
      %v5144 = vpop.permute.xlu0 %5143
      %5145 = vrot.lane.b32.xlu0 %v1445, 40
      %v5146 = vpop.permute.xlu0 %5145
      %5147 = vrot.lane.b32.xlu0 %v1446, 40
      %v5148 = vpop.permute.xlu0 %5147
      %v5154 = vsel %vm1784, %v5137, 0
      %v5157 = vsel %vm1784, %v5138, 0
      %v5160 = vsel %vm1784, %v5139, 0
      %v5163 = vsel %vm1784, %v5140, 0
      %5165 = vmatpush.bf16.msra.mxu0 0
      %5166 = vmatpush.bf16.msra.mxu0 0
      %5167 = vmatpush.bf16.msra.mxu0 0
      %5168 = vmatpush.bf16.msra.mxu0 0
      %5169 = vmatpush.bf16.msra.mxu0 %v5148
      %5170 = vmatpush.bf16.msra.mxu0 %v5146
      %5171 = vmatpush.bf16.msra.mxu0 %v5144
      %5172 = vmatpush.bf16.msra.mxu0 %v5142
      %5173 = vmatmul.bf16.gmra.mxu0 %v5154
      %v5174 = vpop.f32.mrf.mxu0
      %v5175 = vadd.f32 0.0, %v5174
      %v5176 = vpop.f32.mrf.mxu0
      %v5177 = vadd.f32 0.0, %v5176
      %5178 = vmatmul.bf16.gmra.mxu0 %v5157
      %v5179 = vpop.f32.mrf.mxu0
      %v5180 = vadd.f32 0.0, %v5179
      %v5181 = vpop.f32.mrf.mxu0
      %v5182 = vadd.f32 0.0, %v5181
      %5183 = vmatmul.bf16.gmra.mxu0 %v5160
      %v5184 = vpop.f32.mrf.mxu0
      %v5185 = vadd.f32 0.0, %v5184
      %v5186 = vpop.f32.mrf.mxu0
      %v5187 = vadd.f32 0.0, %v5186
      %5188 = vmatmul.bf16.gmra.mxu0 %v5163
      %v5189 = vpop.f32.mrf.mxu0
      %v5190 = vadd.f32 0.0, %v5189
      %v5191 = vpop.f32.mrf.mxu0
      %v5192 = vadd.f32 0.0, %v5191
      %5193 = vdwg.mxu0
      %v5202 = vunpack.c.l.b16 %v5097
      %v5203 = vunpack.c.l.b16 %v5098
      %v5204 = vunpack.c.l.b16 %v5099
      %v5205 = vunpack.c.l.b16 %v5100
      %v5206 = vunpack.c.l.b16 %v5101
      %v5207 = vunpack.c.l.b16 %v5102
      %v5208 = vunpack.c.l.b16 %v5103
      %v5209 = vunpack.c.l.b16 %v5104
      %v5210 = vpack.c.b16 %v5203, %v5202
      %v5211 = vpack.c.b16 %v5205, %v5204
      %v5212 = vpack.c.b16 %v5207, %v5206
      %v5213 = vpack.c.b16 %v5209, %v5208
      %5214 = vrot.lane.b32.xlu0 %v1525, 40
      %v5215 = vpop.permute.xlu0 %5214
      %5216 = vrot.lane.b32.xlu0 %v1526, 40
      %v5217 = vpop.permute.xlu0 %5216
      %5218 = vrot.lane.b32.xlu0 %v1527, 40
      %v5219 = vpop.permute.xlu0 %5218
      %5220 = vrot.lane.b32.xlu0 %v1528, 40
      %v5221 = vpop.permute.xlu0 %5220
      %v5227 = vsel %vm1784, %v5210, 0
      %v5230 = vsel %vm1784, %v5211, 0
      %v5233 = vsel %vm1784, %v5212, 0
      %v5236 = vsel %vm1784, %v5213, 0
      %5238 = vmatpush.bf16.msra.mxu0 0
      %5239 = vmatpush.bf16.msra.mxu0 0
      %5240 = vmatpush.bf16.msra.mxu0 0
      %5241 = vmatpush.bf16.msra.mxu0 0
      %5242 = vmatpush.bf16.msra.mxu0 %v5221
      %5243 = vmatpush.bf16.msra.mxu0 %v5219
      %5244 = vmatpush.bf16.msra.mxu0 %v5217
      %5245 = vmatpush.bf16.msra.mxu0 %v5215
      %5246 = vmatmul.bf16.gmra.mxu0 %v5227
      %v5247 = vpop.f32.mrf.mxu0
      %v5248 = vadd.f32 0.0, %v5247
      %v5249 = vpop.f32.mrf.mxu0
      %v5250 = vadd.f32 0.0, %v5249
      %5251 = vmatmul.bf16.gmra.mxu0 %v5230
      %v5252 = vpop.f32.mrf.mxu0
      %v5253 = vadd.f32 0.0, %v5252
      %v5254 = vpop.f32.mrf.mxu0
      %v5255 = vadd.f32 0.0, %v5254
      %5256 = vmatmul.bf16.gmra.mxu0 %v5233
      %v5257 = vpop.f32.mrf.mxu0
      %v5258 = vadd.f32 0.0, %v5257
      %v5259 = vpop.f32.mrf.mxu0
      %v5260 = vadd.f32 0.0, %v5259
      %5261 = vmatmul.bf16.gmra.mxu0 %v5236
      %v5262 = vpop.f32.mrf.mxu0
      %v5263 = vadd.f32 0.0, %v5262
      %v5264 = vpop.f32.mrf.mxu0
      %v5265 = vadd.f32 0.0, %v5264
      %5266 = vdwg.mxu0
      %v5275 = vunpack.c.l.b16 %v5105
      %v5276 = vunpack.c.l.b16 %v5106
      %v5277 = vunpack.c.l.b16 %v5107
      %v5278 = vunpack.c.l.b16 %v5108
      %v5279 = vunpack.c.l.b16 %v5109
      %v5280 = vunpack.c.l.b16 %v5110
      %v5281 = vunpack.c.l.b16 %v5111
      %v5282 = vunpack.c.l.b16 %v5112
      %v5283 = vpack.c.b16 %v5276, %v5275
      %v5284 = vpack.c.b16 %v5278, %v5277
      %v5285 = vpack.c.b16 %v5280, %v5279
      %v5286 = vpack.c.b16 %v5282, %v5281
      %5287 = vrot.lane.b32.xlu0 %v1606, 40
      %v5288 = vpop.permute.xlu0 %5287
      %5289 = vrot.lane.b32.xlu0 %v1607, 40
      %v5290 = vpop.permute.xlu0 %5289
      %5291 = vrot.lane.b32.xlu0 %v1608, 40
      %v5292 = vpop.permute.xlu0 %5291
      %5293 = vrot.lane.b32.xlu0 %v1609, 40
      %v5294 = vpop.permute.xlu0 %5293
      %v5300 = vsel %vm1784, %v5283, 0
      %v5303 = vsel %vm1784, %v5284, 0
      %v5306 = vsel %vm1784, %v5285, 0
      %v5309 = vsel %vm1784, %v5286, 0
      %5311 = vmatpush.bf16.msra.mxu0 0
      %5312 = vmatpush.bf16.msra.mxu0 0
      %5313 = vmatpush.bf16.msra.mxu0 0
      %5314 = vmatpush.bf16.msra.mxu0 0
      %5315 = vmatpush.bf16.msra.mxu0 %v5294
      %5316 = vmatpush.bf16.msra.mxu0 %v5292
      %5317 = vmatpush.bf16.msra.mxu0 %v5290
      %5318 = vmatpush.bf16.msra.mxu0 %v5288
      %5319 = vmatmul.bf16.gmra.mxu0 %v5300
      %v5320 = vpop.f32.mrf.mxu0
      %v5321 = vadd.f32 0.0, %v5320
      %v5322 = vpop.f32.mrf.mxu0
      %v5323 = vadd.f32 0.0, %v5322
      %5324 = vmatmul.bf16.gmra.mxu0 %v5303
      %v5325 = vpop.f32.mrf.mxu0
      %v5326 = vadd.f32 0.0, %v5325
      %v5327 = vpop.f32.mrf.mxu0
      %v5328 = vadd.f32 0.0, %v5327
      %5329 = vmatmul.bf16.gmra.mxu0 %v5306
      %v5330 = vpop.f32.mrf.mxu0
      %v5331 = vadd.f32 0.0, %v5330
      %v5332 = vpop.f32.mrf.mxu0
      %v5333 = vadd.f32 0.0, %v5332
      %5334 = vmatmul.bf16.gmra.mxu0 %v5309
      %v5335 = vpop.f32.mrf.mxu0
      %v5336 = vadd.f32 0.0, %v5335
      %v5337 = vpop.f32.mrf.mxu0
      %v5338 = vadd.f32 0.0, %v5337
      %5339 = vdwg.mxu0
      %v5348 = vunpack.c.l.b16 %v5113
      %v5349 = vunpack.c.l.b16 %v5114
      %v5350 = vunpack.c.l.b16 %v5115
      %v5351 = vunpack.c.l.b16 %v5116
      %v5352 = vunpack.c.l.b16 %v5117
      %v5353 = vunpack.c.l.b16 %v5118
      %v5354 = vunpack.c.l.b16 %v5119
      %v5355 = vunpack.c.l.b16 %v5120
      %v5356 = vpack.c.b16 %v5349, %v5348
      %v5357 = vpack.c.b16 %v5351, %v5350
      %v5358 = vpack.c.b16 %v5353, %v5352
      %v5359 = vpack.c.b16 %v5355, %v5354
      %5360 = vrot.lane.b32.xlu0 %v1687, 40
      %v5361 = vpop.permute.xlu0 %5360
      %5362 = vrot.lane.b32.xlu0 %v1688, 40
      %v5363 = vpop.permute.xlu0 %5362
      %5364 = vrot.lane.b32.xlu0 %v1689, 40
      %v5365 = vpop.permute.xlu0 %5364
      %5366 = vrot.lane.b32.xlu0 %v1690, 40
      %v5367 = vpop.permute.xlu0 %5366
      %v5373 = vsel %vm1784, %v5356, 0
      %v5376 = vsel %vm1784, %v5357, 0
      %v5379 = vsel %vm1784, %v5358, 0
      %v5382 = vsel %vm1784, %v5359, 0
      %5384 = vmatpush.bf16.msra.mxu0 0
      %5385 = vmatpush.bf16.msra.mxu0 0
      %5386 = vmatpush.bf16.msra.mxu0 0
      %5387 = vmatpush.bf16.msra.mxu0 0
      %5388 = vmatpush.bf16.msra.mxu0 %v5367
      %5389 = vmatpush.bf16.msra.mxu0 %v5365
      %5390 = vmatpush.bf16.msra.mxu0 %v5363
      %5391 = vmatpush.bf16.msra.mxu0 %v5361
      %5392 = vmatmul.bf16.gmra.mxu0 %v5373
      %v5393 = vpop.f32.mrf.mxu0
      %v5394 = vadd.f32 0.0, %v5393
      %v5395 = vpop.f32.mrf.mxu0
      %v5396 = vadd.f32 0.0, %v5395
      %5397 = vmatmul.bf16.gmra.mxu0 %v5376
      %v5398 = vpop.f32.mrf.mxu0
      %v5399 = vadd.f32 0.0, %v5398
      %v5400 = vpop.f32.mrf.mxu0
      %v5401 = vadd.f32 0.0, %v5400
      %5402 = vmatmul.bf16.gmra.mxu0 %v5379
      %v5403 = vpop.f32.mrf.mxu0
      %v5404 = vadd.f32 0.0, %v5403
      %v5405 = vpop.f32.mrf.mxu0
      %v5406 = vadd.f32 0.0, %v5405
      %5407 = vmatmul.bf16.gmra.mxu0 %v5382
      %v5408 = vpop.f32.mrf.mxu0
      %v5409 = vadd.f32 0.0, %v5408
      %v5410 = vpop.f32.mrf.mxu0
      %v5411 = vadd.f32 0.0, %v5410
      %5412 = vdwg.mxu0
      %5445 = vrot.lane.b32.xlu0 %v3207, 8
      %v5446 = vpop.permute.xlu0 %5445
      %5447 = vrot.lane.b32.xlu0 %v3209, 8
      %v5448 = vpop.permute.xlu0 %5447
      %5449 = vrot.lane.b32.xlu0 %v3212, 8
      %v5450 = vpop.permute.xlu0 %5449
      %5451 = vrot.lane.b32.xlu0 %v3214, 8
      %v5452 = vpop.permute.xlu0 %5451
      %5453 = vrot.lane.b32.xlu0 %v3217, 8
      %v5454 = vpop.permute.xlu0 %5453
      %5455 = vrot.lane.b32.xlu0 %v3219, 8
      %v5456 = vpop.permute.xlu0 %5455
      %5457 = vrot.lane.b32.xlu0 %v3222, 8
      %v5458 = vpop.permute.xlu0 %5457
      %5459 = vrot.lane.b32.xlu0 %v3224, 8
      %v5460 = vpop.permute.xlu0 %5459
      %5461 = vrot.lane.b32.xlu0 %v3280, 8
      %v5462 = vpop.permute.xlu0 %5461
      %5463 = vrot.lane.b32.xlu0 %v3282, 8
      %v5464 = vpop.permute.xlu0 %5463
      %5465 = vrot.lane.b32.xlu0 %v3285, 8
      %v5466 = vpop.permute.xlu0 %5465
      %5467 = vrot.lane.b32.xlu0 %v3287, 8
      %v5468 = vpop.permute.xlu0 %5467
      %5469 = vrot.lane.b32.xlu0 %v3290, 8
      %v5470 = vpop.permute.xlu0 %5469
      %5471 = vrot.lane.b32.xlu0 %v3292, 8
      %v5472 = vpop.permute.xlu0 %5471
      %5473 = vrot.lane.b32.xlu0 %v3295, 8
      %v5474 = vpop.permute.xlu0 %5473
      %5475 = vrot.lane.b32.xlu0 %v3297, 8
      %v5476 = vpop.permute.xlu0 %5475
      %5477 = vrot.lane.b32.xlu0 %v3353, 8
      %v5478 = vpop.permute.xlu0 %5477
      %5479 = vrot.lane.b32.xlu0 %v3355, 8
      %v5480 = vpop.permute.xlu0 %5479
      %5481 = vrot.lane.b32.xlu0 %v3358, 8
      %v5482 = vpop.permute.xlu0 %5481
      %5483 = vrot.lane.b32.xlu0 %v3360, 8
      %v5484 = vpop.permute.xlu0 %5483
      %5485 = vrot.lane.b32.xlu0 %v3363, 8
      %v5486 = vpop.permute.xlu0 %5485
      %5487 = vrot.lane.b32.xlu0 %v3365, 8
      %v5488 = vpop.permute.xlu0 %5487
      %5489 = vrot.lane.b32.xlu0 %v3368, 8
      %v5490 = vpop.permute.xlu0 %5489
      %5491 = vrot.lane.b32.xlu0 %v3370, 8
      %v5492 = vpop.permute.xlu0 %5491
      %5493 = vrot.lane.b32.xlu0 %v3426, 8
      %v5494 = vpop.permute.xlu0 %5493
      %5495 = vrot.lane.b32.xlu0 %v3428, 8
      %v5496 = vpop.permute.xlu0 %5495
      %5497 = vrot.lane.b32.xlu0 %v3431, 8
      %v5498 = vpop.permute.xlu0 %5497
      %5499 = vrot.lane.b32.xlu0 %v3433, 8
      %v5500 = vpop.permute.xlu0 %5499
      %5501 = vrot.lane.b32.xlu0 %v3436, 8
      %v5502 = vpop.permute.xlu0 %5501
      %5503 = vrot.lane.b32.xlu0 %v3438, 8
      %v5504 = vpop.permute.xlu0 %5503
      %5505 = vrot.lane.b32.xlu0 %v3441, 8
      %v5506 = vpop.permute.xlu0 %5505
      %5507 = vrot.lane.b32.xlu0 %v3443, 8
      %v5508 = vpop.permute.xlu0 %5507
      %5573 = vrot.lane.b32.xlu0 %v4191, 16
      %v5574 = vpop.permute.xlu0 %5573
      %5575 = vrot.lane.b32.xlu0 %v4193, 16
      %v5576 = vpop.permute.xlu0 %5575
      %5577 = vrot.lane.b32.xlu0 %v4196, 16
      %v5578 = vpop.permute.xlu0 %5577
      %5579 = vrot.lane.b32.xlu0 %v4198, 16
      %v5580 = vpop.permute.xlu0 %5579
      %5581 = vrot.lane.b32.xlu0 %v4201, 16
      %v5582 = vpop.permute.xlu0 %5581
      %5583 = vrot.lane.b32.xlu0 %v4203, 16
      %v5584 = vpop.permute.xlu0 %5583
      %5585 = vrot.lane.b32.xlu0 %v4206, 16
      %v5586 = vpop.permute.xlu0 %5585
      %5587 = vrot.lane.b32.xlu0 %v4208, 16
      %v5588 = vpop.permute.xlu0 %5587
      %5589 = vrot.lane.b32.xlu0 %v4264, 16
      %v5590 = vpop.permute.xlu0 %5589
      %5591 = vrot.lane.b32.xlu0 %v4266, 16
      %v5592 = vpop.permute.xlu0 %5591
      %5593 = vrot.lane.b32.xlu0 %v4269, 16
      %v5594 = vpop.permute.xlu0 %5593
      %5595 = vrot.lane.b32.xlu0 %v4271, 16
      %v5596 = vpop.permute.xlu0 %5595
      %5597 = vrot.lane.b32.xlu0 %v4274, 16
      %v5598 = vpop.permute.xlu0 %5597
      %5599 = vrot.lane.b32.xlu0 %v4276, 16
      %v5600 = vpop.permute.xlu0 %5599
      %5601 = vrot.lane.b32.xlu0 %v4279, 16
      %v5602 = vpop.permute.xlu0 %5601
      %5603 = vrot.lane.b32.xlu0 %v4281, 16
      %v5604 = vpop.permute.xlu0 %5603
      %5605 = vrot.lane.b32.xlu0 %v4337, 16
      %v5606 = vpop.permute.xlu0 %5605
      %5607 = vrot.lane.b32.xlu0 %v4339, 16
      %v5608 = vpop.permute.xlu0 %5607
      %5609 = vrot.lane.b32.xlu0 %v4342, 16
      %v5610 = vpop.permute.xlu0 %5609
      %5611 = vrot.lane.b32.xlu0 %v4344, 16
      %v5612 = vpop.permute.xlu0 %5611
      %5613 = vrot.lane.b32.xlu0 %v4347, 16
      %v5614 = vpop.permute.xlu0 %5613
      %5615 = vrot.lane.b32.xlu0 %v4349, 16
      %v5616 = vpop.permute.xlu0 %5615
      %5617 = vrot.lane.b32.xlu0 %v4352, 16
      %v5618 = vpop.permute.xlu0 %5617
      %5619 = vrot.lane.b32.xlu0 %v4354, 16
      %v5620 = vpop.permute.xlu0 %5619
      %5621 = vrot.lane.b32.xlu0 %v4410, 16
      %v5622 = vpop.permute.xlu0 %5621
      %5623 = vrot.lane.b32.xlu0 %v4412, 16
      %v5624 = vpop.permute.xlu0 %5623
      %5625 = vrot.lane.b32.xlu0 %v4415, 16
      %v5626 = vpop.permute.xlu0 %5625
      %5627 = vrot.lane.b32.xlu0 %v4417, 16
      %v5628 = vpop.permute.xlu0 %5627
      %5629 = vrot.lane.b32.xlu0 %v4420, 16
      %v5630 = vpop.permute.xlu0 %5629
      %5631 = vrot.lane.b32.xlu0 %v4422, 16
      %v5632 = vpop.permute.xlu0 %5631
      %5633 = vrot.lane.b32.xlu0 %v4425, 16
      %v5634 = vpop.permute.xlu0 %5633
      %5635 = vrot.lane.b32.xlu0 %v4427, 16
      %v5636 = vpop.permute.xlu0 %5635
      %5701 = vrot.lane.b32.xlu0 %v5175, 24
      %v5702 = vpop.permute.xlu0 %5701
      %5703 = vrot.lane.b32.xlu0 %v5177, 24
      %v5704 = vpop.permute.xlu0 %5703
      %5705 = vrot.lane.b32.xlu0 %v5180, 24
      %v5706 = vpop.permute.xlu0 %5705
      %5707 = vrot.lane.b32.xlu0 %v5182, 24
      %v5708 = vpop.permute.xlu0 %5707
      %5709 = vrot.lane.b32.xlu0 %v5185, 24
      %v5710 = vpop.permute.xlu0 %5709
      %5711 = vrot.lane.b32.xlu0 %v5187, 24
      %v5712 = vpop.permute.xlu0 %5711
      %5713 = vrot.lane.b32.xlu0 %v5190, 24
      %v5714 = vpop.permute.xlu0 %5713
      %5715 = vrot.lane.b32.xlu0 %v5192, 24
      %v5716 = vpop.permute.xlu0 %5715
      %5717 = vrot.lane.b32.xlu0 %v5248, 24
      %v5718 = vpop.permute.xlu0 %5717
      %5719 = vrot.lane.b32.xlu0 %v5250, 24
      %v5720 = vpop.permute.xlu0 %5719
      %5721 = vrot.lane.b32.xlu0 %v5253, 24
      %v5722 = vpop.permute.xlu0 %5721
      %5723 = vrot.lane.b32.xlu0 %v5255, 24
      %v5724 = vpop.permute.xlu0 %5723
      %5725 = vrot.lane.b32.xlu0 %v5258, 24
      %v5726 = vpop.permute.xlu0 %5725
      %5727 = vrot.lane.b32.xlu0 %v5260, 24
      %v5728 = vpop.permute.xlu0 %5727
      %5729 = vrot.lane.b32.xlu0 %v5263, 24
      %v5730 = vpop.permute.xlu0 %5729
      %5731 = vrot.lane.b32.xlu0 %v5265, 24
      %v5732 = vpop.permute.xlu0 %5731
      %5733 = vrot.lane.b32.xlu0 %v5321, 24
      %v5734 = vpop.permute.xlu0 %5733
      %5735 = vrot.lane.b32.xlu0 %v5323, 24
      %v5736 = vpop.permute.xlu0 %5735
      %5737 = vrot.lane.b32.xlu0 %v5326, 24
      %v5738 = vpop.permute.xlu0 %5737
      %5739 = vrot.lane.b32.xlu0 %v5328, 24
      %v5740 = vpop.permute.xlu0 %5739
      %5741 = vrot.lane.b32.xlu0 %v5331, 24
      %v5742 = vpop.permute.xlu0 %5741
      %5743 = vrot.lane.b32.xlu0 %v5333, 24
      %v5744 = vpop.permute.xlu0 %5743
      %5745 = vrot.lane.b32.xlu0 %v5336, 24
      %v5746 = vpop.permute.xlu0 %5745
      %5747 = vrot.lane.b32.xlu0 %v5338, 24
      %v5748 = vpop.permute.xlu0 %5747
      %5749 = vrot.lane.b32.xlu0 %v5394, 24
      %v5750 = vpop.permute.xlu0 %5749
      %5751 = vrot.lane.b32.xlu0 %v5396, 24
      %v5752 = vpop.permute.xlu0 %5751
      %5753 = vrot.lane.b32.xlu0 %v5399, 24
      %v5754 = vpop.permute.xlu0 %5753
      %5755 = vrot.lane.b32.xlu0 %v5401, 24
      %v5756 = vpop.permute.xlu0 %5755
      %5757 = vrot.lane.b32.xlu0 %v5404, 24
      %v5758 = vpop.permute.xlu0 %5757
      %5759 = vrot.lane.b32.xlu0 %v5406, 24
      %v5760 = vpop.permute.xlu0 %5759
      %5761 = vrot.lane.b32.xlu0 %v5409, 24
      %v5762 = vpop.permute.xlu0 %5761
      %5763 = vrot.lane.b32.xlu0 %v5411, 24
      %v5764 = vpop.permute.xlu0 %5763
      %v5797 = vsel %vm1455, %v2223, %v5446
      %v5798 = vsel %vm1455, %v2225, %v5448
      %v5799 = vsel %vm1455, %v2228, %v5450
      %v5800 = vsel %vm1455, %v2230, %v5452
      %v5801 = vsel %vm1455, %v2233, %v5454
      %v5802 = vsel %vm1455, %v2235, %v5456
      %v5803 = vsel %vm1455, %v2238, %v5458
      %v5804 = vsel %vm1455, %v2240, %v5460
      %v5805 = vsel %vm1455, %v2296, %v5462
      %v5806 = vsel %vm1455, %v2298, %v5464
      %v5807 = vsel %vm1455, %v2301, %v5466
      %v5808 = vsel %vm1455, %v2303, %v5468
      %v5809 = vsel %vm1455, %v2306, %v5470
      %v5810 = vsel %vm1455, %v2308, %v5472
      %v5811 = vsel %vm1455, %v2311, %v5474
      %v5812 = vsel %vm1455, %v2313, %v5476
      %v5813 = vsel %vm1455, %v2369, %v5478
      %v5814 = vsel %vm1455, %v2371, %v5480
      %v5815 = vsel %vm1455, %v2374, %v5482
      %v5816 = vsel %vm1455, %v2376, %v5484
      %v5817 = vsel %vm1455, %v2379, %v5486
      %v5818 = vsel %vm1455, %v2381, %v5488
      %v5819 = vsel %vm1455, %v2384, %v5490
      %v5820 = vsel %vm1455, %v2386, %v5492
      %v5821 = vsel %vm1455, %v2442, %v5494
      %v5822 = vsel %vm1455, %v2444, %v5496
      %v5823 = vsel %vm1455, %v2447, %v5498
      %v5824 = vsel %vm1455, %v2449, %v5500
      %v5825 = vsel %vm1455, %v2452, %v5502
      %v5826 = vsel %vm1455, %v2454, %v5504
      %v5827 = vsel %vm1455, %v2457, %v5506
      %v5828 = vsel %vm1455, %v2459, %v5508
      %vm5829 = vcmask 130048
      %v5830 = vsel %vm5829, %v5797, %v5574
      %v5831 = vsel %vm5829, %v5798, %v5576
      %v5832 = vsel %vm5829, %v5799, %v5578
      %v5833 = vsel %vm5829, %v5800, %v5580
      %v5834 = vsel %vm5829, %v5801, %v5582
      %v5835 = vsel %vm5829, %v5802, %v5584
      %v5836 = vsel %vm5829, %v5803, %v5586
      %v5837 = vsel %vm5829, %v5804, %v5588
      %v5838 = vsel %vm5829, %v5805, %v5590
      %v5839 = vsel %vm5829, %v5806, %v5592
      %v5840 = vsel %vm5829, %v5807, %v5594
      %v5841 = vsel %vm5829, %v5808, %v5596
      %v5842 = vsel %vm5829, %v5809, %v5598
      %v5843 = vsel %vm5829, %v5810, %v5600
      %v5844 = vsel %vm5829, %v5811, %v5602
      %v5845 = vsel %vm5829, %v5812, %v5604
      %v5846 = vsel %vm5829, %v5813, %v5606
      %v5847 = vsel %vm5829, %v5814, %v5608
      %v5848 = vsel %vm5829, %v5815, %v5610
      %v5849 = vsel %vm5829, %v5816, %v5612
      %v5850 = vsel %vm5829, %v5817, %v5614
      %v5851 = vsel %vm5829, %v5818, %v5616
      %v5852 = vsel %vm5829, %v5819, %v5618
      %v5853 = vsel %vm5829, %v5820, %v5620
      %v5854 = vsel %vm5829, %v5821, %v5622
      %v5855 = vsel %vm5829, %v5822, %v5624
      %v5856 = vsel %vm5829, %v5823, %v5626
      %v5857 = vsel %vm5829, %v5824, %v5628
      %v5858 = vsel %vm5829, %v5825, %v5630
      %v5859 = vsel %vm5829, %v5826, %v5632
      %v5860 = vsel %vm5829, %v5827, %v5634
      %v5861 = vsel %vm5829, %v5828, %v5636
      %vm5862 = vcmask 195584
      %v5863 = vsel %vm5862, %v5830, %v5702
      %v5864 = vsel %vm5862, %v5831, %v5704
      %v5865 = vsel %vm5862, %v5832, %v5706
      %v5866 = vsel %vm5862, %v5833, %v5708
      %v5867 = vsel %vm5862, %v5834, %v5710
      %v5868 = vsel %vm5862, %v5835, %v5712
      %v5869 = vsel %vm5862, %v5836, %v5714
      %v5870 = vsel %vm5862, %v5837, %v5716
      %v5871 = vsel %vm5862, %v5838, %v5718
      %v5872 = vsel %vm5862, %v5839, %v5720
      %v5873 = vsel %vm5862, %v5840, %v5722
      %v5874 = vsel %vm5862, %v5841, %v5724
      %v5875 = vsel %vm5862, %v5842, %v5726
      %v5876 = vsel %vm5862, %v5843, %v5728
      %v5877 = vsel %vm5862, %v5844, %v5730
      %v5878 = vsel %vm5862, %v5845, %v5732
      %v5879 = vsel %vm5862, %v5846, %v5734
      %v5880 = vsel %vm5862, %v5847, %v5736
      %v5881 = vsel %vm5862, %v5848, %v5738
      %v5882 = vsel %vm5862, %v5849, %v5740
      %v5883 = vsel %vm5862, %v5850, %v5742
      %v5884 = vsel %vm5862, %v5851, %v5744
      %v5885 = vsel %vm5862, %v5852, %v5746
      %v5886 = vsel %vm5862, %v5853, %v5748
      %v5887 = vsel %vm5862, %v5854, %v5750
      %v5888 = vsel %vm5862, %v5855, %v5752
      %v5889 = vsel %vm5862, %v5856, %v5754
      %v5890 = vsel %vm5862, %v5857, %v5756
      %v5891 = vsel %vm5862, %v5858, %v5758
      %v5892 = vsel %vm5862, %v5859, %v5760
      %v5893 = vsel %vm5862, %v5860, %v5762
      %v5894 = vsel %vm5862, %v5861, %v5764
      %v5895 = vpack.c.bf16 %v5864, %v5863
      %v5896 = vpack.c.bf16 %v5866, %v5865
      %v5897 = vpack.c.bf16 %v5868, %v5867
      %v5898 = vpack.c.bf16 %v5870, %v5869
      %v5899 = vpack.c.bf16 %v5872, %v5871
      %v5900 = vpack.c.bf16 %v5874, %v5873
      %v5901 = vpack.c.bf16 %v5876, %v5875
      %v5902 = vpack.c.bf16 %v5878, %v5877
      %v5903 = vpack.c.bf16 %v5880, %v5879
      %v5904 = vpack.c.bf16 %v5882, %v5881
      %v5905 = vpack.c.bf16 %v5884, %v5883
      %v5906 = vpack.c.bf16 %v5886, %v5885
      %v5907 = vpack.c.bf16 %v5888, %v5887
      %v5908 = vpack.c.bf16 %v5890, %v5889
      %v5909 = vpack.c.bf16 %v5892, %v5891
      %v5910 = vpack.c.bf16 %v5894, %v5893
      %v5911 = vld [vmem:[%s3] sm:$0xf]
      %v5912 = vld [vmem:[%s3 + $0x4] sm:$0xf]
      %v5913 = vld [vmem:[%s3 + $0x8] sm:$0xf]
      %v5914 = vld [vmem:[%s3 + $0xc] sm:$0xf]
      %v5915 = vld [vmem:[%s4] sm:$0x1]
      %v5917 = vperm.slane %v5915, 0
      %v5923 = vunpack.c.l.b16 %v5911
      %v5924 = vunpack.c.l.b16 %v5912
      %v5925 = vunpack.c.l.b16 %v5913
      %v5926 = vunpack.c.l.b16 %v5914
      %v5927 = vpack.c.b16 %v5924, %v5923
      %v5928 = vpack.c.b16 %v5926, %v5925
      %v5932 = vsel %vm374, %v5895, 0
      %v5935 = vsel %vm374, %v5896, 0
      %v5938 = vsel %vm374, %v5897, 0
      %v5941 = vsel %vm374, %v5898, 0
      %v5944 = vsel %vm374, %v5899, 0
      %v5947 = vsel %vm374, %v5900, 0
      %v5950 = vsel %vm374, %v5901, 0
      %v5953 = vsel %vm374, %v5902, 0
      %v5956 = vsel %vm374, %v5903, 0
      %v5959 = vsel %vm374, %v5904, 0
      %v5962 = vsel %vm374, %v5905, 0
      %v5965 = vsel %vm374, %v5906, 0
      %v5968 = vsel %vm374, %v5907, 0
      %v5971 = vsel %vm374, %v5908, 0
      %v5974 = vsel %vm374, %v5909, 0
      %v5977 = vsel %vm374, %v5910, 0
      %5979 = vmatpush.bf16.msra.mxu0 0
      %5980 = vmatpush.bf16.msra.mxu0 0
      %5981 = vmatpush.bf16.msra.mxu0 0
      %5982 = vmatpush.bf16.msra.mxu0 0
      %5983 = vmatpush.bf16.msra.mxu0 0
      %5984 = vmatpush.bf16.msra.mxu0 0
      %5985 = vmatpush.bf16.msra.mxu0 %v5928
      %5986 = vmatpush.bf16.msra.mxu0 %v5927
      %5987 = vmatmul.bf16.gmra.mxu0 %v5932
      %v5988 = vpop.f32.mrf.mxu0
      %v5989 = vadd.f32 %v5917, %v5988
      %v5990 = vpop.f32.mrf.mxu0
      %v5991 = vadd.f32 %v5917, %v5990
      %5992 = vmatmul.bf16.gmra.mxu0 %v5935
      %v5993 = vpop.f32.mrf.mxu0
      %v5994 = vadd.f32 %v5917, %v5993
      %v5995 = vpop.f32.mrf.mxu0
      %v5996 = vadd.f32 %v5917, %v5995
      %5997 = vmatmul.bf16.gmra.mxu0 %v5938
      %v5998 = vpop.f32.mrf.mxu0
      %v5999 = vadd.f32 %v5917, %v5998
      %v6000 = vpop.f32.mrf.mxu0
      %v6001 = vadd.f32 %v5917, %v6000
      %6002 = vmatmul.bf16.gmra.mxu0 %v5941
      %v6003 = vpop.f32.mrf.mxu0
      %v6004 = vadd.f32 %v5917, %v6003
      %v6005 = vpop.f32.mrf.mxu0
      %v6006 = vadd.f32 %v5917, %v6005
      %6007 = vmatmul.bf16.gmra.mxu0 %v5944
      %v6008 = vpop.f32.mrf.mxu0
      %v6009 = vadd.f32 %v5917, %v6008
      %v6010 = vpop.f32.mrf.mxu0
      %v6011 = vadd.f32 %v5917, %v6010
      %6012 = vmatmul.bf16.gmra.mxu0 %v5947
      %v6013 = vpop.f32.mrf.mxu0
      %v6014 = vadd.f32 %v5917, %v6013
      %v6015 = vpop.f32.mrf.mxu0
      %v6016 = vadd.f32 %v5917, %v6015
      %6017 = vmatmul.bf16.gmra.mxu0 %v5950
      %v6018 = vpop.f32.mrf.mxu0
      %v6019 = vadd.f32 %v5917, %v6018
      %v6020 = vpop.f32.mrf.mxu0
      %v6021 = vadd.f32 %v5917, %v6020
      %6022 = vmatmul.bf16.gmra.mxu0 %v5953
      %v6023 = vpop.f32.mrf.mxu0
      %v6024 = vadd.f32 %v5917, %v6023
      %v6025 = vpop.f32.mrf.mxu0
      %v6026 = vadd.f32 %v5917, %v6025
      %6027 = vmatmul.bf16.gmra.mxu0 %v5956
      %v6028 = vpop.f32.mrf.mxu0
      %v6029 = vadd.f32 %v5917, %v6028
      %v6030 = vpop.f32.mrf.mxu0
      %v6031 = vadd.f32 %v5917, %v6030
      %6032 = vmatmul.bf16.gmra.mxu0 %v5959
      %v6033 = vpop.f32.mrf.mxu0
      %v6034 = vadd.f32 %v5917, %v6033
      %v6035 = vpop.f32.mrf.mxu0
      %v6036 = vadd.f32 %v5917, %v6035
      %6037 = vmatmul.bf16.gmra.mxu0 %v5962
      %v6038 = vpop.f32.mrf.mxu0
      %v6039 = vadd.f32 %v5917, %v6038
      %v6040 = vpop.f32.mrf.mxu0
      %v6041 = vadd.f32 %v5917, %v6040
      %6042 = vmatmul.bf16.gmra.mxu0 %v5965
      %v6043 = vpop.f32.mrf.mxu0
      %v6044 = vadd.f32 %v5917, %v6043
      %v6045 = vpop.f32.mrf.mxu0
      %v6046 = vadd.f32 %v5917, %v6045
      %6047 = vmatmul.bf16.gmra.mxu0 %v5968
      %v6048 = vpop.f32.mrf.mxu0
      %v6049 = vadd.f32 %v5917, %v6048
      %v6050 = vpop.f32.mrf.mxu0
      %v6051 = vadd.f32 %v5917, %v6050
      %6052 = vmatmul.bf16.gmra.mxu0 %v5971
      %v6053 = vpop.f32.mrf.mxu0
      %v6054 = vadd.f32 %v5917, %v6053
      %v6055 = vpop.f32.mrf.mxu0
      %v6056 = vadd.f32 %v5917, %v6055
      %6057 = vmatmul.bf16.gmra.mxu0 %v5974
      %v6058 = vpop.f32.mrf.mxu0
      %v6059 = vadd.f32 %v5917, %v6058
      %v6060 = vpop.f32.mrf.mxu0
      %v6061 = vadd.f32 %v5917, %v6060
      %6062 = vmatmul.bf16.gmra.mxu0 %v5977
      %v6063 = vpop.f32.mrf.mxu0
      %v6064 = vadd.f32 %v5917, %v6063
      %v6065 = vpop.f32.mrf.mxu0
      %v6066 = vadd.f32 %v5917, %v6065
      %6067 = vdwg.mxu0
      %6068 = vst.msk [vmem:[%s339] sm:$0xff] %vm374, %v5989
      %6069 = vst.msk [vmem:[%s339 + $0x8] sm:$0xff] %vm374, %v5991
      %6070 = vst.msk [vmem:[%s339 + $0x10] sm:$0xff] %vm374, %v5994
      %6071 = vst.msk [vmem:[%s339 + $0x18] sm:$0xff] %vm374, %v5996
      %6072 = vst.msk [vmem:[%s339 + $0x20] sm:$0xff] %vm374, %v5999
      %6073 = vst.msk [vmem:[%s339 + $0x28] sm:$0xff] %vm374, %v6001
      %6074 = vst.msk [vmem:[%s339 + $0x30] sm:$0xff] %vm374, %v6004
      %6075 = vst.msk [vmem:[%s339 + $0x38] sm:$0xff] %vm374, %v6006
      %6076 = vst.msk [vmem:[%s339 + $0x40] sm:$0xff] %vm374, %v6009
      %6077 = vst.msk [vmem:[%s339 + $0x48] sm:$0xff] %vm374, %v6011
      %6078 = vst.msk [vmem:[%s339 + $0x50] sm:$0xff] %vm374, %v6014
      %6079 = vst.msk [vmem:[%s339 + $0x58] sm:$0xff] %vm374, %v6016
      %6080 = vst.msk [vmem:[%s339 + $0x60] sm:$0xff] %vm374, %v6019
      %6081 = vst.msk [vmem:[%s339 + $0x68] sm:$0xff] %vm374, %v6021
      %6082 = vst.msk [vmem:[%s339 + $0x70] sm:$0xff] %vm374, %v6024
      %6083 = vst.msk [vmem:[%s339 + $0x78] sm:$0xff] %vm374, %v6026
      %6084 = vst.msk [vmem:[%s339 + $0x80] sm:$0xff] %vm374, %v6029
      %6085 = vst.msk [vmem:[%s339 + $0x88] sm:$0xff] %vm374, %v6031
      %6086 = vst.msk [vmem:[%s339 + $0x90] sm:$0xff] %vm374, %v6034
      %6087 = vst.msk [vmem:[%s339 + $0x98] sm:$0xff] %vm374, %v6036
      %6088 = vst.msk [vmem:[%s339 + $0xa0] sm:$0xff] %vm374, %v6039
      %6089 = vst.msk [vmem:[%s339 + $0xa8] sm:$0xff] %vm374, %v6041
      %6090 = vst.msk [vmem:[%s339 + $0xb0] sm:$0xff] %vm374, %v6044
      %6091 = vst.msk [vmem:[%s339 + $0xb8] sm:$0xff] %vm374, %v6046
      %6092 = vst.msk [vmem:[%s339 + $0xc0] sm:$0xff] %vm374, %v6049
      %6093 = vst.msk [vmem:[%s339 + $0xc8] sm:$0xff] %vm374, %v6051
      %6094 = vst.msk [vmem:[%s339 + $0xd0] sm:$0xff] %vm374, %v6054
      %6095 = vst.msk [vmem:[%s339 + $0xd8] sm:$0xff] %vm374, %v6056
      %6096 = vst.msk [vmem:[%s339 + $0xe0] sm:$0xff] %vm374, %v6059
      %6097 = vst.msk [vmem:[%s339 + $0xe8] sm:$0xff] %vm374, %v6061
      %6098 = vst.msk [vmem:[%s339 + $0xf0] sm:$0xff] %vm374, %v6064
      %6099 = vst.msk [vmem:[%s339 + $0xf8] sm:$0xff] %vm374, %v6066
      %s6100 = smul.u32 4, %s20
      %p6101 = scmp.lt.s32.totalorder %s6100, 7
      %s6102 = scalar_select %p6101, %s6100, 7
      %s6103 = smul.addr %s6102, 8
      %s6104 = smul.addr %s6103, 8
      %s6105 = scalar_lea.vmem %s9, %s6104
      // Predicated region
      $region57: #{tpu_custom_call.1} parent=55 // pred_check
        %p6106 = pneg %p232
      $region58: #{tpu_custom_call.1} parent=55 // pred_check_branch
        %6108 = sbr.rel (%p6106) target = $region60
      $region59: #{tpu_custom_call.1} parent=55 // pred_region
        %s6109 = smul.u32 4, %s20
      $region60: #{tpu_custom_call.1} parent=55 // pred_fallthru
        _
    $region56: #{tpu_custom_call.1} parent=5 // pred_fallthru
      _
    %p6110 = scmp.le.s32.totalorder 2, %s15
    // Predicated region
    $region61: #{tpu_custom_call.1} parent=5 // pred_check
      %p6111 = pneg %p6110
    $region62: #{tpu_custom_call.1} parent=5 // pred_check_branch
      %6113 = sbr.rel (%p6111) target = $region64
    $region63: #{tpu_custom_call.1} parent=5 // pred_region
      %s6114 = ssub.s32 %s15, 2
      // Predicated region
      $region65: #{tpu_custom_call.1} parent=63 // pred_check
        %p6115 = pneg %p238
      $region66: #{tpu_custom_call.1} parent=63 // pred_check_branch
        %6117 = sbr.rel (%p6115) target = $region68
      $region67: #{tpu_custom_call.1} parent=63 // pred_region
        %s6118 = smul.u32 4, %s21
        %p6119 = scmp.lt.s32.totalorder %s6118, 7
        %s6120 = scalar_select %p6119, %s6118, 7
        %s6121 = smul.addr %s6120, 8
        %s6122 = smul.addr %s6121, 8
        %s6123 = scalar_lea.vmem %s9, %s6122
      $region68: #{tpu_custom_call.1} parent=63 // pred_fallthru
        _
    $region64: #{tpu_custom_call.1} parent=5 // pred_fallthru
      _
  $region6: #{tpu_custom_call.1} parent=0 // loop_footer
    %s19 = sadd.s32 1, %s15
  $region7: #{tpu_custom_call.1} parent=0 // loop_footer_branch
    %14 = sbr.rel target = $region3
  $region8: #{tpu_custom_call.1} parent=0 // loop_exit
    _

</llo_original>
